<compile_context>
chip_gen: v7x
topology: tpu7x:2x2x1
jax: 0.10.0
libtpu: 0.0.40
codegen_flags: <defaults>
</compile_context>

<pallas_src>
import numpy as np
import jax
import jax.numpy as jnp
from jax import lax
from jax.experimental import pallas as pl
from jax.experimental.pallas import tpu as pltpu


# ------------------------- kernel factories -------------------------
def _make_conv1_kernel(K, Wp, L, Cin):
    """conv1 (per-tap matmuls, bf16 x bf16 -> f32) + per-batch BN partial sums."""
    def kernel(x_ref, w_ref, mask_ref, y_ref, s1_ref, s2_ref):
        # x_ref   : [1, Cin, L2]  bf16 (flattened padded image + margin)
        # w_ref   : [K*K, Cin, Cin] bf16 (per-tap transposed weights)
        # mask_ref: [1, L] f32  (1 = real pixel, 0 = padding border)
        # y_ref   : [1, Cin, L] f32 ; s1_ref/s2_ref : [1, Cin, 1] f32
        acc = jnp.zeros((Cin, L), jnp.float32)
        for kh in range(K):
            for kw in range(K):
                off = kh * Wp + kw                       # static slice start
                acc = acc + jnp.dot(
                    w_ref[kh * K + kw],                  # [Cin, Cin] bf16
                    x_ref[0, :, off:off + L],            # [Cin, L]   bf16
                    preferred_element_type=jnp.float32)
        y_ref[0] = acc
        am = acc * mask_ref[...]                          # mask border out of stats
        s1_ref[0] = jnp.sum(am, axis=1, keepdims=True)        # sum(y1)
        s2_ref[0] = jnp.sum(am * acc, axis=1, keepdims=True)  # sum(y1^2)
    return kernel


def _make_conv2_kernel(K, Wp, L, L2, m, Cin, Cout):
    """Fused BN-apply + ReLU + zero-pad + conv2 (per-tap matmuls) + bias."""
    def kernel(y1_ref, scale_ref, shift_ref, mask_ref, w_ref, b_ref, o_ref, a_pad):
        # y1_ref : [1, Cin, L] f32 ; scale/shift : [Cin, 1] f32 ; mask : [1, L] f32
        # w_ref  : [K*K, Cout, Cin] bf16 ; b_ref : [Cout, 1] f32
        # o_ref  : [1, Cout, L] f32 ; a_pad scratch : [Cin, L2] bf16
        a = jnp.maximum(y1_ref[0] * scale_ref[...] + shift_ref[...], 0.0)
        a = a * mask_ref[...]                 # border -> 0 == conv2 zero padding
        a_pad[...] = jnp.zeros((Cin, L2), jnp.bfloat16)
        a_pad[:, m:m + L] = a.astype(jnp.bfloat16)
        acc = jnp.zeros((Cout, L), jnp.float32)
        for kh in range(K):
            for kw in range(K):
                off = kh * Wp + kw
                acc = acc + jnp.dot(
                    w_ref[kh * K + kw],                  # [Cout, Cin] bf16
                    a_pad[:, off:off + L],               # [Cin, L]    bf16
                    preferred_element_type=jnp.float32)
        o_ref[0] = acc + b_ref[...]
    return kernel


# ------------------------- pallas_call wrappers -------------------------
def _conv1_bn_stats(xflat2, w1t, mask, *, B, Cin, K, Wp, L, L2):
    KK = K * K
    return pl.pallas_call(
        _make_conv1_kernel(K, Wp, L, Cin),
        out_shape=(
            jax.ShapeDtypeStruct((B, Cin, L), jnp.float32),   # conv1 output
            jax.ShapeDtypeStruct((B, Cin, 1), jnp.float32),   # per-batch sum
            jax.ShapeDtypeStruct((B, Cin, 1), jnp.float32),   # per-batch sum of squares
        ),
        grid=(B,),
        in_specs=[
            pl.BlockSpec((1, Cin, L2), lambda b: (b, 0, 0)),
            pl.BlockSpec((KK, Cin, Cin), lambda b: (0, 0, 0)),
            pl.BlockSpec((1, L), lambda b: (0, 0)),
        ],
        out_specs=(
            pl.BlockSpec((1, Cin, L), lambda b: (b, 0, 0)),
            pl.BlockSpec((1, Cin, 1), lambda b: (b, 0, 0)),
            pl.BlockSpec((1, Cin, 1), lambda b: (b, 0, 0)),
        ),
        compiler_params=pltpu.CompilerParams(
            dimension_semantics=("parallel",),
            vmem_limit_bytes=32 * 1024 * 1024,
        ),
    )(xflat2, w1t, mask)


def _bn_relu_conv2(y1, scale, shift, mask, w2t, b2, *, B, Cin, Cout, K, Wp, L, L2, m):
    KK = K * K
    return pl.pallas_call(
        _make_conv2_kernel(K, Wp, L, L2, m, Cin, Cout),
        out_shape=jax.ShapeDtypeStruct((B, Cout, L), jnp.float32),
        grid=(B,),
        in_specs=[
            pl.BlockSpec((1, Cin, L), lambda b: (b, 0, 0)),
            pl.BlockSpec((Cin, 1), lambda b: (0, 0)),
            pl.BlockSpec((Cin, 1), lambda b: (0, 0)),
            pl.BlockSpec((1, L), lambda b: (0, 0)),
            pl.BlockSpec((KK, Cout, Cin), lambda b: (0, 0, 0)),
            pl.BlockSpec((Cout, 1), lambda b: (0, 0)),
        ],
        out_specs=pl.BlockSpec((1, Cout, L), lambda b: (b, 0, 0)),
        scratch_shapes=[pltpu.VMEM((Cin, L2), jnp.bfloat16)],
        compiler_params=pltpu.CompilerParams(
            dimension_semantics=("parallel",),
            vmem_limit_bytes=32 * 1024 * 1024,
        ),
    )(y1, scale, shift, mask, w2t, b2)


# ------------------------- module wrapper -------------------------
def classify_layer(x_nchw, params, kernel_size, eps=1e-5):
    """params: (w1 [K,K,Cin,Cin] HWIO, gamma [Cin], beta [Cin],
                w2 [K,K,Cin,Cout] HWIO, b2 [Cout]).  x/out are NCHW."""
    w1, gamma, beta, w2, b2 = params
    K = kernel_size
    p = K // 2
    B, Cin, H, W = x_nchw.shape
    Cout = w2.shape[-1]
    Hp, Wp = H + 2 * p, W + 2 * p
    L = Hp * Wp                      # flattened padded pixel axis
    m = p * Wp + p                   # shift margin so every tap is a contiguous slice
    L2 = L + 2 * m

    # NCHW is already the lane-dense layout for the (channels x pixels) matmuls.
    xpad = jnp.pad(x_nchw, ((0, 0), (0, 0), (p, p), (p, p)))
    xflat2 = jnp.pad(xpad.reshape(B, Cin, L), ((0, 0), (0, 0), (m, m)))
    xflat2 = xflat2.astype(jnp.bfloat16)

    # per-tap transposed weights [K*K, Cout, Cin] in bf16 for the MXU
    w1t = jnp.transpose(w1, (0, 1, 3, 2)).reshape(K * K, Cin, Cin).astype(jnp.bfloat16)
    w2t = jnp.transpose(w2, (0, 1, 3, 2)).reshape(K * K, Cout, Cin).astype(jnp.bfloat16)

    # interior mask over the padded Hp*Wp grid (1 = real pixel, 0 = border)
    hh = (jnp.arange(Hp) >= p) & (jnp.arange(Hp) < p + H)
    ww = (jnp.arange(Wp) >= p) & (jnp.arange(Wp) < p + W)
    mask = (hh[:, None] & ww[None, :]).reshape(1, L).astype(jnp.float32)

    # pass 1: conv1 + per-batch BN partial sums
    y1, s1, s2 = _conv1_bn_stats(xflat2, w1t, mask, B=B, Cin=Cin, K=K, Wp=Wp, L=L, L2=L2)

    # tiny [B, Cin] reduction + BN scale/shift in f32 (JAX glue)
    n = B * H * W
    mean = jnp.sum(s1[:, :, 0], axis=0) / n                      # [Cin]
    var = jnp.sum(s2[:, :, 0], axis=0) / n - mean * mean         # biased (training BN)
    scale = (gamma * lax.rsqrt(var + eps)).astype(jnp.float32)
    shift = (beta - mean * scale).astype(jnp.float32)

    # pass 2: fused BN-apply + ReLU + zero-pad + conv2 + bias
    y2 = _bn_relu_conv2(y1, scale.reshape(Cin, 1), shift.reshape(Cin, 1), mask,
                        w2t, b2.reshape(Cout, 1).astype(jnp.float32),
                        B=B, Cin=Cin, Cout=Cout, K=K, Wp=Wp, L=L, L2=L2, m=m)

    # drop the border pixels, back to NCHW spatial
    return y2.reshape(B, Cout, Hp, Wp)[:, :, p:p + H, p:p + W]


# ------------------------- pure-JAX references -------------------------
def classify_layer_ref(x_nchw, params, kernel_size, eps=1e-5, matmul_dtype=jnp.float32):
    """matmul_dtype=f32: exact module semantics; bf16: precision-matched to the kernel."""
    w1, gamma, beta, w2, b2 = params
    x = jnp.transpose(x_nchw, (0, 2, 3, 1))                       # NHWC
    dn1 = lax.conv_dimension_numbers(x.shape, w1.shape, ('NHWC', 'HWIO', 'NHWC'))
    y1 = lax.conv_general_dilated(
        x.astype(matmul_dtype), w1.astype(matmul_dtype), (1, 1), 'SAME',
        dimension_numbers=dn1, preferred_element_type=jnp.float32)
    mean = jnp.mean(y1, axis=(0, 1, 2), keepdims=True)
    var = jnp.mean(jnp.square(y1 - mean), axis=(0, 1, 2), keepdims=True)
    a = jnp.maximum((y1 - mean) * lax.rsqrt(var + eps) * gamma + beta, 0.0)
    dn2 = lax.conv_dimension_numbers(a.shape, w2.shape, ('NHWC', 'HWIO', 'NHWC'))
    y2 = lax.conv_general_dilated(
        a.astype(matmul_dtype), w2.astype(matmul_dtype), (1, 1), 'SAME',
        dimension_numbers=dn2, preferred_element_type=jnp.float32) + b2
    return jnp.transpose(y2, (0, 3, 1, 2))


# ------------------------- main -------------------------
if __name__ == "__main__":
    B, Cin, Cout, H, W, K = 2, 4, 8, 16, 16, 3

    key = jax.random.PRNGKey(0)
    kx, kw1, kg, kb, kw2, kb2 = jax.random.split(key, 6)

    x = jax.random.normal(kx, (B, Cin, H, W), jnp.float32)             # NCHW input
    w1 = 0.2 * jax.random.normal(kw1, (K, K, Cin, Cin), jnp.float32)   # conv1 (no bias)
    gamma = 1.0 + 0.1 * jax.random.normal(kg, (Cin,), jnp.float32)     # BN weight
    beta = 0.1 * jax.random.normal(kb, (Cin,), jnp.float32)            # BN bias
    w2 = 0.2 * jax.random.normal(kw2, (K, K, Cin, Cout), jnp.float32)  # conv2 weight
    b2 = 0.1 * jax.random.normal(kb2, (Cout,), jnp.float32)            # conv2 bias
    params = (w1, gamma, beta, w2, b2)

    fwd = jax.jit(classify_layer, static_argnums=(2,))
    out = jax.block_until_ready(fwd(x, params, K))
    assert out.shape == (B, Cout, H, W)

    # precision-matched (bf16 matmuls, f32 accumulation/BN) reference: tight check
    ref_bf16 = classify_layer_ref(x, params, K, matmul_dtype=jnp.bfloat16)
    np.testing.assert_allclose(np.asarray(out), np.asarray(ref_bf16), atol=2e-2, rtol=2e-2)

    # full-f32 module semantics: loose check (bf16 mixed-precision on the MXU)
    ref_f32 = classify_layer_ref(x, params, K, matmul_dtype=jnp.float32)
    np.testing.assert_allclose(np.asarray(out), np.asarray(ref_f32), atol=6e-2, rtol=6e-2)

    print("KERNEL_OK")
</pallas_src>

<mosaic_0001>
module attributes {stable_mosaic.version = 11 : i64} {
  func.func @kernel(%arg0: i32, %arg1: memref<1x4x362xbf16, #tpu.memory_space<vmem>>, %arg2: memref<9x4x4xbf16, #tpu.memory_space<vmem>>, %arg3: memref<1x324xf32, #tpu.memory_space<vmem>>, %arg4: memref<1x4x324xf32, #tpu.memory_space<vmem>>, %arg5: memref<1x4x1xf32, #tpu.memory_space<vmem>>, %arg6: memref<1x4x1xf32, #tpu.memory_space<vmem>>) attributes {dimension_semantics = [#tpu.dimension_semantics<parallel>], iteration_bounds = array<i64: 2>, scalar_prefetch = 0 : i64, scratch_operands = 0 : i64, tpu.core_type = #tpu.core_type<tc>, window_params = [{transform_indices = @transform_0, window_bounds = array<i64: 1, 4, 362>}, {pipeline_mode = #tpu.pipeline_mode<synchronous>, transform_indices = @transform_1, window_bounds = array<i64: 9, 4, 4>}, {pipeline_mode = #tpu.pipeline_mode<synchronous>, transform_indices = @transform_2, window_bounds = array<i64: 1, 324>}, {transform_indices = @transform_3, window_bounds = array<i64: 1, 4, 324>}, {transform_indices = @transform_4, window_bounds = array<i64: 1, 4, 1>}, {transform_indices = @transform_5, window_bounds = array<i64: 1, 4, 1>}]} {
    %cst = arith.constant 0.000000e+00 : f32
    %0 = vector.broadcast %cst : f32 to vector<4x324xf32>
    %c0 = arith.constant 0 : index
    %c0_0 = arith.constant 0 : index
    %c0_1 = arith.constant 0 : index
    %1 = vector.load %arg2[%c0, %c0_0, %c0_1] : memref<9x4x4xbf16, #tpu.memory_space<vmem>>, vector<1x4x4xbf16>
    %2 = vector.shape_cast %1 : vector<1x4x4xbf16> to vector<4x4xbf16>
    %c0_2 = arith.constant 0 : index
    %c0_3 = arith.constant 0 : index
    %c0_4 = arith.constant 0 : index
    %3 = vector.load %arg1[%c0_2, %c0_3, %c0_4] : memref<1x4x362xbf16, #tpu.memory_space<vmem>>, vector<1x4x324xbf16>
    %4 = vector.shape_cast %3 : vector<1x4x324xbf16> to vector<4x324xbf16>
    %cst_5 = arith.constant dense<0.000000e+00> : vector<4x324xf32>
    %5 = tpu.matmul %2, %4, %cst_5 {dimension_numbers = #tpu.dot_dimension_numbers<[1], [0], [0], [1], [0, 0, 1, 1], [], []>} : vector<4x4xbf16>, vector<4x324xbf16>, vector<4x324xf32> -> vector<4x324xf32>
    %6 = arith.addf %0, %5 : vector<4x324xf32>
    %c1 = arith.constant 1 : index
    %c0_6 = arith.constant 0 : index
    %c0_7 = arith.constant 0 : index
    %7 = vector.load %arg2[%c1, %c0_6, %c0_7] : memref<9x4x4xbf16, #tpu.memory_space<vmem>>, vector<1x4x4xbf16>
    %8 = vector.shape_cast %7 : vector<1x4x4xbf16> to vector<4x4xbf16>
    %c0_8 = arith.constant 0 : index
    %c0_9 = arith.constant 0 : index
    %c1_10 = arith.constant 1 : index
    %9 = vector.load %arg1[%c0_8, %c0_9, %c1_10] : memref<1x4x362xbf16, #tpu.memory_space<vmem>>, vector<1x4x324xbf16>
    %10 = vector.shape_cast %9 : vector<1x4x324xbf16> to vector<4x324xbf16>
    %cst_11 = arith.constant dense<0.000000e+00> : vector<4x324xf32>
    %11 = tpu.matmul %8, %10, %cst_11 {dimension_numbers = #tpu.dot_dimension_numbers<[1], [0], [0], [1], [0, 0, 1, 1], [], []>} : vector<4x4xbf16>, vector<4x324xbf16>, vector<4x324xf32> -> vector<4x324xf32>
    %12 = arith.addf %6, %11 : vector<4x324xf32>
    %c2 = arith.constant 2 : index
    %c0_12 = arith.constant 0 : index
    %c0_13 = arith.constant 0 : index
    %13 = vector.load %arg2[%c2, %c0_12, %c0_13] : memref<9x4x4xbf16, #tpu.memory_space<vmem>>, vector<1x4x4xbf16>
    %14 = vector.shape_cast %13 : vector<1x4x4xbf16> to vector<4x4xbf16>
    %c0_14 = arith.constant 0 : index
    %c0_15 = arith.constant 0 : index
    %c2_16 = arith.constant 2 : index
    %15 = vector.load %arg1[%c0_14, %c0_15, %c2_16] : memref<1x4x362xbf16, #tpu.memory_space<vmem>>, vector<1x4x324xbf16>
    %16 = vector.shape_cast %15 : vector<1x4x324xbf16> to vector<4x324xbf16>
    %cst_17 = arith.constant dense<0.000000e+00> : vector<4x324xf32>
    %17 = tpu.matmul %14, %16, %cst_17 {dimension_numbers = #tpu.dot_dimension_numbers<[1], [0], [0], [1], [0, 0, 1, 1], [], []>} : vector<4x4xbf16>, vector<4x324xbf16>, vector<4x324xf32> -> vector<4x324xf32>
    %18 = arith.addf %12, %17 : vector<4x324xf32>
    %c3 = arith.constant 3 : index
    %c0_18 = arith.constant 0 : index
    %c0_19 = arith.constant 0 : index
    %19 = vector.load %arg2[%c3, %c0_18, %c0_19] : memref<9x4x4xbf16, #tpu.memory_space<vmem>>, vector<1x4x4xbf16>
    %20 = vector.shape_cast %19 : vector<1x4x4xbf16> to vector<4x4xbf16>
    %c0_20 = arith.constant 0 : index
    %c0_21 = arith.constant 0 : index
    %c18 = arith.constant 18 : index
    %21 = vector.load %arg1[%c0_20, %c0_21, %c18] : memref<1x4x362xbf16, #tpu.memory_space<vmem>>, vector<1x4x324xbf16>
    %22 = vector.shape_cast %21 : vector<1x4x324xbf16> to vector<4x324xbf16>
    %cst_22 = arith.constant dense<0.000000e+00> : vector<4x324xf32>
    %23 = tpu.matmul %20, %22, %cst_22 {dimension_numbers = #tpu.dot_dimension_numbers<[1], [0], [0], [1], [0, 0, 1, 1], [], []>} : vector<4x4xbf16>, vector<4x324xbf16>, vector<4x324xf32> -> vector<4x324xf32>
    %24 = arith.addf %18, %23 : vector<4x324xf32>
    %c4 = arith.constant 4 : index
    %c0_23 = arith.constant 0 : index
    %c0_24 = arith.constant 0 : index
    %25 = vector.load %arg2[%c4, %c0_23, %c0_24] : memref<9x4x4xbf16, #tpu.memory_space<vmem>>, vector<1x4x4xbf16>
    %26 = vector.shape_cast %25 : vector<1x4x4xbf16> to vector<4x4xbf16>
    %c0_25 = arith.constant 0 : index
    %c0_26 = arith.constant 0 : index
    %c19 = arith.constant 19 : index
    %27 = vector.load %arg1[%c0_25, %c0_26, %c19] : memref<1x4x362xbf16, #tpu.memory_space<vmem>>, vector<1x4x324xbf16>
    %28 = vector.shape_cast %27 : vector<1x4x324xbf16> to vector<4x324xbf16>
    %cst_27 = arith.constant dense<0.000000e+00> : vector<4x324xf32>
    %29 = tpu.matmul %26, %28, %cst_27 {dimension_numbers = #tpu.dot_dimension_numbers<[1], [0], [0], [1], [0, 0, 1, 1], [], []>} : vector<4x4xbf16>, vector<4x324xbf16>, vector<4x324xf32> -> vector<4x324xf32>
    %30 = arith.addf %24, %29 : vector<4x324xf32>
    %c5 = arith.constant 5 : index
    %c0_28 = arith.constant 0 : index
    %c0_29 = arith.constant 0 : index
    %31 = vector.load %arg2[%c5, %c0_28, %c0_29] : memref<9x4x4xbf16, #tpu.memory_space<vmem>>, vector<1x4x4xbf16>
    %32 = vector.shape_cast %31 : vector<1x4x4xbf16> to vector<4x4xbf16>
    %c0_30 = arith.constant 0 : index
    %c0_31 = arith.constant 0 : index
    %c20 = arith.constant 20 : index
    %33 = vector.load %arg1[%c0_30, %c0_31, %c20] : memref<1x4x362xbf16, #tpu.memory_space<vmem>>, vector<1x4x324xbf16>
    %34 = vector.shape_cast %33 : vector<1x4x324xbf16> to vector<4x324xbf16>
    %cst_32 = arith.constant dense<0.000000e+00> : vector<4x324xf32>
    %35 = tpu.matmul %32, %34, %cst_32 {dimension_numbers = #tpu.dot_dimension_numbers<[1], [0], [0], [1], [0, 0, 1, 1], [], []>} : vector<4x4xbf16>, vector<4x324xbf16>, vector<4x324xf32> -> vector<4x324xf32>
    %36 = arith.addf %30, %35 : vector<4x324xf32>
    %c6 = arith.constant 6 : index
    %c0_33 = arith.constant 0 : index
    %c0_34 = arith.constant 0 : index
    %37 = vector.load %arg2[%c6, %c0_33, %c0_34] : memref<9x4x4xbf16, #tpu.memory_space<vmem>>, vector<1x4x4xbf16>
    %38 = vector.shape_cast %37 : vector<1x4x4xbf16> to vector<4x4xbf16>
    %c0_35 = arith.constant 0 : index
    %c0_36 = arith.constant 0 : index
    %c36 = arith.constant 36 : index
    %39 = vector.load %arg1[%c0_35, %c0_36, %c36] : memref<1x4x362xbf16, #tpu.memory_space<vmem>>, vector<1x4x324xbf16>
    %40 = vector.shape_cast %39 : vector<1x4x324xbf16> to vector<4x324xbf16>
    %cst_37 = arith.constant dense<0.000000e+00> : vector<4x324xf32>
    %41 = tpu.matmul %38, %40, %cst_37 {dimension_numbers = #tpu.dot_dimension_numbers<[1], [0], [0], [1], [0, 0, 1, 1], [], []>} : vector<4x4xbf16>, vector<4x324xbf16>, vector<4x324xf32> -> vector<4x324xf32>
    %42 = arith.addf %36, %41 : vector<4x324xf32>
    %c7 = arith.constant 7 : index
    %c0_38 = arith.constant 0 : index
    %c0_39 = arith.constant 0 : index
    %43 = vector.load %arg2[%c7, %c0_38, %c0_39] : memref<9x4x4xbf16, #tpu.memory_space<vmem>>, vector<1x4x4xbf16>
    %44 = vector.shape_cast %43 : vector<1x4x4xbf16> to vector<4x4xbf16>
    %c0_40 = arith.constant 0 : index
    %c0_41 = arith.constant 0 : index
    %c37 = arith.constant 37 : index
    %45 = vector.load %arg1[%c0_40, %c0_41, %c37] : memref<1x4x362xbf16, #tpu.memory_space<vmem>>, vector<1x4x324xbf16>
    %46 = vector.shape_cast %45 : vector<1x4x324xbf16> to vector<4x324xbf16>
    %cst_42 = arith.constant dense<0.000000e+00> : vector<4x324xf32>
    %47 = tpu.matmul %44, %46, %cst_42 {dimension_numbers = #tpu.dot_dimension_numbers<[1], [0], [0], [1], [0, 0, 1, 1], [], []>} : vector<4x4xbf16>, vector<4x324xbf16>, vector<4x324xf32> -> vector<4x324xf32>
    %48 = arith.addf %42, %47 : vector<4x324xf32>
    %c8 = arith.constant 8 : index
    %c0_43 = arith.constant 0 : index
    %c0_44 = arith.constant 0 : index
    %49 = vector.load %arg2[%c8, %c0_43, %c0_44] : memref<9x4x4xbf16, #tpu.memory_space<vmem>>, vector<1x4x4xbf16>
    %50 = vector.shape_cast %49 : vector<1x4x4xbf16> to vector<4x4xbf16>
    %c0_45 = arith.constant 0 : index
    %c0_46 = arith.constant 0 : index
    %c38 = arith.constant 38 : index
    %51 = vector.load %arg1[%c0_45, %c0_46, %c38] : memref<1x4x362xbf16, #tpu.memory_space<vmem>>, vector<1x4x324xbf16>
    %52 = vector.shape_cast %51 : vector<1x4x324xbf16> to vector<4x324xbf16>
    %cst_47 = arith.constant dense<0.000000e+00> : vector<4x324xf32>
    %53 = tpu.matmul %50, %52, %cst_47 {dimension_numbers = #tpu.dot_dimension_numbers<[1], [0], [0], [1], [0, 0, 1, 1], [], []>} : vector<4x4xbf16>, vector<4x324xbf16>, vector<4x324xf32> -> vector<4x324xf32>
    %54 = arith.addf %48, %53 : vector<4x324xf32>
    %c0_48 = arith.constant 0 : index
    %c0_49 = arith.constant 0 : index
    %c0_50 = arith.constant 0 : index
    %55 = vector.load %arg4[%c0_48, %c0_49, %c0_50] : memref<1x4x324xf32, #tpu.memory_space<vmem>>, vector<1x4x324xf32>
    %56 = vector.shape_cast %55 : vector<1x4x324xf32> to vector<4x324xf32>
    %57 = vector.shape_cast %54 : vector<4x324xf32> to vector<1x4x324xf32>
    tpu.vector_store %arg4[%c0_48, %c0_49, %c0_50], %57 {strides = array<i32>} : memref<1x4x324xf32, #tpu.memory_space<vmem>>, vector<1x4x324xf32>,
    %c0_51 = arith.constant 0 : index
    %c0_52 = arith.constant 0 : index
    %58 = vector.load %arg3[%c0_51, %c0_52] : memref<1x324xf32, #tpu.memory_space<vmem>>, vector<1x324xf32>
    %59 = vector.broadcast %58 : vector<1x324xf32> to vector<4x324xf32>
    %60 = arith.mulf %54, %59 : vector<4x324xf32>
    %cst_53 = arith.constant dense<0.000000e+00> : vector<4xf32>
    %61 = vector.multi_reduction <add>, %60, %cst_53 [1] : vector<4x324xf32> to vector<4xf32>
    %62 = vector.shape_cast %61 : vector<4xf32> to vector<4x1xf32>
    %c0_54 = arith.constant 0 : index
    %c0_55 = arith.constant 0 : index
    %c0_56 = arith.constant 0 : index
    %63 = vector.load %arg5[%c0_54, %c0_55, %c0_56] : memref<1x4x1xf32, #tpu.memory_space<vmem>>, vector<1x4x1xf32>
    %64 = vector.shape_cast %63 : vector<1x4x1xf32> to vector<4x1xf32>
    %65 = vector.shape_cast %62 : vector<4x1xf32> to vector<1x4x1xf32>
    tpu.vector_store %arg5[%c0_54, %c0_55, %c0_56], %65 {strides = array<i32>} : memref<1x4x1xf32, #tpu.memory_space<vmem>>, vector<1x4x1xf32>,
    %66 = arith.mulf %60, %54 : vector<4x324xf32>
    %cst_57 = arith.constant dense<0.000000e+00> : vector<4xf32>
    %67 = vector.multi_reduction <add>, %66, %cst_57 [1] : vector<4x324xf32> to vector<4xf32>
    %68 = vector.shape_cast %67 : vector<4xf32> to vector<4x1xf32>
    %c0_58 = arith.constant 0 : index
    %c0_59 = arith.constant 0 : index
    %c0_60 = arith.constant 0 : index
    %69 = vector.load %arg6[%c0_58, %c0_59, %c0_60] : memref<1x4x1xf32, #tpu.memory_space<vmem>>, vector<1x4x1xf32>
    %70 = vector.shape_cast %69 : vector<1x4x1xf32> to vector<4x1xf32>
    %71 = vector.shape_cast %68 : vector<4x1xf32> to vector<1x4x1xf32>
    tpu.vector_store %arg6[%c0_58, %c0_59, %c0_60], %71 {strides = array<i32>} : memref<1x4x1xf32, #tpu.memory_space<vmem>>, vector<1x4x1xf32>,
    return
  }
  func.func @transform_0(%arg0: i32) -> (i32, i32, i32) {
    %c0_i32 = arith.constant 0 : i32
    %c0_i32_0 = arith.constant 0 : i32
    %c0_i32_1 = arith.constant 0 : i32
    return %arg0, %c0_i32, %c0_i32_0 : i32, i32, i32
  }
  func.func @transform_1(%arg0: i32) -> (i32, i32, i32) {
    %c0_i32 = arith.constant 0 : i32
    %c0_i32_0 = arith.constant 0 : i32
    %c0_i32_1 = arith.constant 0 : i32
    %c0_i32_2 = arith.constant 0 : i32
    return %c0_i32, %c0_i32_0, %c0_i32_1 : i32, i32, i32
  }
  func.func @transform_2(%arg0: i32) -> (i32, i32) {
    %c0_i32 = arith.constant 0 : i32
    %c0_i32_0 = arith.constant 0 : i32
    %c0_i32_1 = arith.constant 0 : i32
    return %c0_i32, %c0_i32_0 : i32, i32
  }
  func.func @transform_3(%arg0: i32) -> (i32, i32, i32) {
    %c0_i32 = arith.constant 0 : i32
    %c0_i32_0 = arith.constant 0 : i32
    %c0_i32_1 = arith.constant 0 : i32
    return %arg0, %c0_i32, %c0_i32_0 : i32, i32, i32
  }
  func.func @transform_4(%arg0: i32) -> (i32, i32, i32) {
    %c0_i32 = arith.constant 0 : i32
    %c0_i32_0 = arith.constant 0 : i32
    %c0_i32_1 = arith.constant 0 : i32
    return %arg0, %c0_i32, %c0_i32_0 : i32, i32, i32
  }
  func.func @transform_5(%arg0: i32) -> (i32, i32, i32) {
    %c0_i32 = arith.constant 0 : i32
    %c0_i32_0 = arith.constant 0 : i32
    %c0_i32_1 = arith.constant 0 : i32
    return %arg0, %c0_i32, %c0_i32_0 : i32, i32, i32
  }
}

module attributes {stable_mosaic.version = 11 : i64} {
  func.func @kernel(%arg0: i32, %arg1: memref<1x4x324xf32, #tpu.memory_space<vmem>>, %arg2: memref<4x1xf32, #tpu.memory_space<vmem>>, %arg3: memref<4x1xf32, #tpu.memory_space<vmem>>, %arg4: memref<1x324xf32, #tpu.memory_space<vmem>>, %arg5: memref<9x8x4xbf16, #tpu.memory_space<vmem>>, %arg6: memref<8x1xf32, #tpu.memory_space<vmem>>, %arg7: memref<1x8x324xf32, #tpu.memory_space<vmem>>, %arg8: memref<4x362xbf16, #tpu.memory_space<vmem>>) attributes {dimension_semantics = [#tpu.dimension_semantics<parallel>], iteration_bounds = array<i64: 2>, scalar_prefetch = 0 : i64, scratch_operands = 1 : i64, tpu.core_type = #tpu.core_type<tc>, window_params = [{transform_indices = @transform_0, window_bounds = array<i64: 1, 4, 324>}, {pipeline_mode = #tpu.pipeline_mode<synchronous>, transform_indices = @transform_1, window_bounds = array<i64: 4, 1>}, {pipeline_mode = #tpu.pipeline_mode<synchronous>, transform_indices = @transform_2, window_bounds = array<i64: 4, 1>}, {pipeline_mode = #tpu.pipeline_mode<synchronous>, transform_indices = @transform_3, window_bounds = array<i64: 1, 324>}, {pipeline_mode = #tpu.pipeline_mode<synchronous>, transform_indices = @transform_4, window_bounds = array<i64: 9, 8, 4>}, {pipeline_mode = #tpu.pipeline_mode<synchronous>, transform_indices = @transform_5, window_bounds = array<i64: 8, 1>}, {transform_indices = @transform_6, window_bounds = array<i64: 1, 8, 324>}]} {
    %c0 = arith.constant 0 : index
    %c0_0 = arith.constant 0 : index
    %c0_1 = arith.constant 0 : index
    %0 = vector.load %arg1[%c0, %c0_0, %c0_1] : memref<1x4x324xf32, #tpu.memory_space<vmem>>, vector<1x4x324xf32>
    %1 = vector.shape_cast %0 : vector<1x4x324xf32> to vector<4x324xf32>
    %c0_2 = arith.constant 0 : index
    %c0_3 = arith.constant 0 : index
    %2 = vector.load %arg2[%c0_2, %c0_3] : memref<4x1xf32, #tpu.memory_space<vmem>>, vector<4x1xf32>
    %3 = vector.broadcast %2 : vector<4x1xf32> to vector<4x324xf32>
    %4 = arith.mulf %1, %3 : vector<4x324xf32>
    %c0_4 = arith.constant 0 : index
    %c0_5 = arith.constant 0 : index
    %5 = vector.load %arg3[%c0_4, %c0_5] : memref<4x1xf32, #tpu.memory_space<vmem>>, vector<4x1xf32>
    %6 = vector.broadcast %5 : vector<4x1xf32> to vector<4x324xf32>
    %7 = arith.addf %4, %6 : vector<4x324xf32>
    %cst = arith.constant 0.000000e+00 : f32
    %8 = vector.broadcast %cst : f32 to vector<4x324xf32>
    %9 = arith.maximumf %7, %8 : vector<4x324xf32>
    %c0_6 = arith.constant 0 : index
    %c0_7 = arith.constant 0 : index
    %10 = vector.load %arg4[%c0_6, %c0_7] : memref<1x324xf32, #tpu.memory_space<vmem>>, vector<1x324xf32>
    %11 = vector.broadcast %10 : vector<1x324xf32> to vector<4x324xf32>
    %12 = arith.mulf %9, %11 : vector<4x324xf32>
    %cst_8 = arith.constant 0.000000e+00 : bf16
    %13 = vector.broadcast %cst_8 : bf16 to vector<4x362xbf16>
    %c0_9 = arith.constant 0 : index
    %c0_10 = arith.constant 0 : index
    %14 = vector.load %arg8[%c0_9, %c0_10] : memref<4x362xbf16, #tpu.memory_space<vmem>>, vector<4x362xbf16>
    tpu.vector_store %arg8[%c0_9, %c0_10], %13 {strides = array<i32>} : memref<4x362xbf16, #tpu.memory_space<vmem>>, vector<4x362xbf16>,
    %15 = arith.truncf %12 : vector<4x324xf32> to vector<4x324xbf16>
    %c0_11 = arith.constant 0 : index
    %c19 = arith.constant 19 : index
    %16 = vector.load %arg8[%c0_11, %c19] : memref<4x362xbf16, #tpu.memory_space<vmem>>, vector<4x324xbf16>
    tpu.vector_store %arg8[%c0_11, %c19], %15 {strides = array<i32>} : memref<4x362xbf16, #tpu.memory_space<vmem>>, vector<4x324xbf16>,
    %cst_12 = arith.constant 0.000000e+00 : f32
    %17 = vector.broadcast %cst_12 : f32 to vector<8x324xf32>
    %c0_13 = arith.constant 0 : index
    %c0_14 = arith.constant 0 : index
    %c0_15 = arith.constant 0 : index
    %18 = vector.load %arg5[%c0_13, %c0_14, %c0_15] : memref<9x8x4xbf16, #tpu.memory_space<vmem>>, vector<1x8x4xbf16>
    %19 = vector.shape_cast %18 : vector<1x8x4xbf16> to vector<8x4xbf16>
    %c0_16 = arith.constant 0 : index
    %c0_17 = arith.constant 0 : index
    %20 = vector.load %arg8[%c0_16, %c0_17] : memref<4x362xbf16, #tpu.memory_space<vmem>>, vector<4x324xbf16>
    %cst_18 = arith.constant dense<0.000000e+00> : vector<8x324xf32>
    %21 = tpu.matmul %19, %20, %cst_18 {dimension_numbers = #tpu.dot_dimension_numbers<[1], [0], [0], [1], [0, 0, 1, 1], [], []>} : vector<8x4xbf16>, vector<4x324xbf16>, vector<8x324xf32> -> vector<8x324xf32>
    %22 = arith.addf %17, %21 : vector<8x324xf32>
    %c1 = arith.constant 1 : index
    %c0_19 = arith.constant 0 : index
    %c0_20 = arith.constant 0 : index
    %23 = vector.load %arg5[%c1, %c0_19, %c0_20] : memref<9x8x4xbf16, #tpu.memory_space<vmem>>, vector<1x8x4xbf16>
    %24 = vector.shape_cast %23 : vector<1x8x4xbf16> to vector<8x4xbf16>
    %c0_21 = arith.constant 0 : index
    %c1_22 = arith.constant 1 : index
    %25 = vector.load %arg8[%c0_21, %c1_22] : memref<4x362xbf16, #tpu.memory_space<vmem>>, vector<4x324xbf16>
    %cst_23 = arith.constant dense<0.000000e+00> : vector<8x324xf32>
    %26 = tpu.matmul %24, %25, %cst_23 {dimension_numbers = #tpu.dot_dimension_numbers<[1], [0], [0], [1], [0, 0, 1, 1], [], []>} : vector<8x4xbf16>, vector<4x324xbf16>, vector<8x324xf32> -> vector<8x324xf32>
    %27 = arith.addf %22, %26 : vector<8x324xf32>
    %c2 = arith.constant 2 : index
    %c0_24 = arith.constant 0 : index
    %c0_25 = arith.constant 0 : index
    %28 = vector.load %arg5[%c2, %c0_24, %c0_25] : memref<9x8x4xbf16, #tpu.memory_space<vmem>>, vector<1x8x4xbf16>
    %29 = vector.shape_cast %28 : vector<1x8x4xbf16> to vector<8x4xbf16>
    %c0_26 = arith.constant 0 : index
    %c2_27 = arith.constant 2 : index
    %30 = vector.load %arg8[%c0_26, %c2_27] : memref<4x362xbf16, #tpu.memory_space<vmem>>, vector<4x324xbf16>
    %cst_28 = arith.constant dense<0.000000e+00> : vector<8x324xf32>
    %31 = tpu.matmul %29, %30, %cst_28 {dimension_numbers = #tpu.dot_dimension_numbers<[1], [0], [0], [1], [0, 0, 1, 1], [], []>} : vector<8x4xbf16>, vector<4x324xbf16>, vector<8x324xf32> -> vector<8x324xf32>
    %32 = arith.addf %27, %31 : vector<8x324xf32>
    %c3 = arith.constant 3 : index
    %c0_29 = arith.constant 0 : index
    %c0_30 = arith.constant 0 : index
    %33 = vector.load %arg5[%c3, %c0_29, %c0_30] : memref<9x8x4xbf16, #tpu.memory_space<vmem>>, vector<1x8x4xbf16>
    %34 = vector.shape_cast %33 : vector<1x8x4xbf16> to vector<8x4xbf16>
    %c0_31 = arith.constant 0 : index
    %c18 = arith.constant 18 : index
    %35 = vector.load %arg8[%c0_31, %c18] : memref<4x362xbf16, #tpu.memory_space<vmem>>, vector<4x324xbf16>
    %cst_32 = arith.constant dense<0.000000e+00> : vector<8x324xf32>
    %36 = tpu.matmul %34, %35, %cst_32 {dimension_numbers = #tpu.dot_dimension_numbers<[1], [0], [0], [1], [0, 0, 1, 1], [], []>} : vector<8x4xbf16>, vector<4x324xbf16>, vector<8x324xf32> -> vector<8x324xf32>
    %37 = arith.addf %32, %36 : vector<8x324xf32>
    %c4 = arith.constant 4 : index
    %c0_33 = arith.constant 0 : index
    %c0_34 = arith.constant 0 : index
    %38 = vector.load %arg5[%c4, %c0_33, %c0_34] : memref<9x8x4xbf16, #tpu.memory_space<vmem>>, vector<1x8x4xbf16>
    %39 = vector.shape_cast %38 : vector<1x8x4xbf16> to vector<8x4xbf16>
    %c0_35 = arith.constant 0 : index
    %c19_36 = arith.constant 19 : index
    %40 = vector.load %arg8[%c0_35, %c19_36] : memref<4x362xbf16, #tpu.memory_space<vmem>>, vector<4x324xbf16>
    %cst_37 = arith.constant dense<0.000000e+00> : vector<8x324xf32>
    %41 = tpu.matmul %39, %40, %cst_37 {dimension_numbers = #tpu.dot_dimension_numbers<[1], [0], [0], [1], [0, 0, 1, 1], [], []>} : vector<8x4xbf16>, vector<4x324xbf16>, vector<8x324xf32> -> vector<8x324xf32>
    %42 = arith.addf %37, %41 : vector<8x324xf32>
    %c5 = arith.constant 5 : index
    %c0_38 = arith.constant 0 : index
    %c0_39 = arith.constant 0 : index
    %43 = vector.load %arg5[%c5, %c0_38, %c0_39] : memref<9x8x4xbf16, #tpu.memory_space<vmem>>, vector<1x8x4xbf16>
    %44 = vector.shape_cast %43 : vector<1x8x4xbf16> to vector<8x4xbf16>
    %c0_40 = arith.constant 0 : index
    %c20 = arith.constant 20 : index
    %45 = vector.load %arg8[%c0_40, %c20] : memref<4x362xbf16, #tpu.memory_space<vmem>>, vector<4x324xbf16>
    %cst_41 = arith.constant dense<0.000000e+00> : vector<8x324xf32>
    %46 = tpu.matmul %44, %45, %cst_41 {dimension_numbers = #tpu.dot_dimension_numbers<[1], [0], [0], [1], [0, 0, 1, 1], [], []>} : vector<8x4xbf16>, vector<4x324xbf16>, vector<8x324xf32> -> vector<8x324xf32>
    %47 = arith.addf %42, %46 : vector<8x324xf32>
    %c6 = arith.constant 6 : index
    %c0_42 = arith.constant 0 : index
    %c0_43 = arith.constant 0 : index
    %48 = vector.load %arg5[%c6, %c0_42, %c0_43] : memref<9x8x4xbf16, #tpu.memory_space<vmem>>, vector<1x8x4xbf16>
    %49 = vector.shape_cast %48 : vector<1x8x4xbf16> to vector<8x4xbf16>
    %c0_44 = arith.constant 0 : index
    %c36 = arith.constant 36 : index
    %50 = vector.load %arg8[%c0_44, %c36] : memref<4x362xbf16, #tpu.memory_space<vmem>>, vector<4x324xbf16>
    %cst_45 = arith.constant dense<0.000000e+00> : vector<8x324xf32>
    %51 = tpu.matmul %49, %50, %cst_45 {dimension_numbers = #tpu.dot_dimension_numbers<[1], [0], [0], [1], [0, 0, 1, 1], [], []>} : vector<8x4xbf16>, vector<4x324xbf16>, vector<8x324xf32> -> vector<8x324xf32>
    %52 = arith.addf %47, %51 : vector<8x324xf32>
    %c7 = arith.constant 7 : index
    %c0_46 = arith.constant 0 : index
    %c0_47 = arith.constant 0 : index
    %53 = vector.load %arg5[%c7, %c0_46, %c0_47] : memref<9x8x4xbf16, #tpu.memory_space<vmem>>, vector<1x8x4xbf16>
    %54 = vector.shape_cast %53 : vector<1x8x4xbf16> to vector<8x4xbf16>
    %c0_48 = arith.constant 0 : index
    %c37 = arith.constant 37 : index
    %55 = vector.load %arg8[%c0_48, %c37] : memref<4x362xbf16, #tpu.memory_space<vmem>>, vector<4x324xbf16>
    %cst_49 = arith.constant dense<0.000000e+00> : vector<8x324xf32>
    %56 = tpu.matmul %54, %55, %cst_49 {dimension_numbers = #tpu.dot_dimension_numbers<[1], [0], [0], [1], [0, 0, 1, 1], [], []>} : vector<8x4xbf16>, vector<4x324xbf16>, vector<8x324xf32> -> vector<8x324xf32>
    %57 = arith.addf %52, %56 : vector<8x324xf32>
    %c8 = arith.constant 8 : index
    %c0_50 = arith.constant 0 : index
    %c0_51 = arith.constant 0 : index
    %58 = vector.load %arg5[%c8, %c0_50, %c0_51] : memref<9x8x4xbf16, #tpu.memory_space<vmem>>, vector<1x8x4xbf16>
    %59 = vector.shape_cast %58 : vector<1x8x4xbf16> to vector<8x4xbf16>
    %c0_52 = arith.constant 0 : index
    %c38 = arith.constant 38 : index
    %60 = vector.load %arg8[%c0_52, %c38] : memref<4x362xbf16, #tpu.memory_space<vmem>>, vector<4x324xbf16>
    %cst_53 = arith.constant dense<0.000000e+00> : vector<8x324xf32>
    %61 = tpu.matmul %59, %60, %cst_53 {dimension_numbers = #tpu.dot_dimension_numbers<[1], [0], [0], [1], [0, 0, 1, 1], [], []>} : vector<8x4xbf16>, vector<4x324xbf16>, vector<8x324xf32> -> vector<8x324xf32>
    %62 = arith.addf %57, %61 : vector<8x324xf32>
    %c0_54 = arith.constant 0 : index
    %c0_55 = arith.constant 0 : index
    %63 = vector.load %arg6[%c0_54, %c0_55] : memref<8x1xf32, #tpu.memory_space<vmem>>, vector<8x1xf32>
    %64 = vector.broadcast %63 : vector<8x1xf32> to vector<8x324xf32>
    %65 = arith.addf %62, %64 : vector<8x324xf32>
    %c0_56 = arith.constant 0 : index
    %c0_57 = arith.constant 0 : index
    %c0_58 = arith.constant 0 : index
    %66 = vector.load %arg7[%c0_56, %c0_57, %c0_58] : memref<1x8x324xf32, #tpu.memory_space<vmem>>, vector<1x8x324xf32>
    %67 = vector.shape_cast %66 : vector<1x8x324xf32> to vector<8x324xf32>
    %68 = vector.shape_cast %65 : vector<8x324xf32> to vector<1x8x324xf32>
    tpu.vector_store %arg7[%c0_56, %c0_57, %c0_58], %68 {strides = array<i32>} : memref<1x8x324xf32, #tpu.memory_space<vmem>>, vector<1x8x324xf32>,
    return
  }
  func.func @transform_0(%arg0: i32) -> (i32, i32, i32) {
    %c0_i32 = arith.constant 0 : i32
    %c0_i32_0 = arith.constant 0 : i32
    %c0_i32_1 = arith.constant 0 : i32
    return %arg0, %c0_i32, %c0_i32_0 : i32, i32, i32
  }
  func.func @transform_1(%arg0: i32) -> (i32, i32) {
    %c0_i32 = arith.constant 0 : i32
    %c0_i32_0 = arith.constant 0 : i32
    %c0_i32_1 = arith.constant 0 : i32
    return %c0_i32, %c0_i32_0 : i32, i32
  }
  func.func @transform_2(%arg0: i32) -> (i32, i32) {
    %c0_i32 = arith.constant 0 : i32
    %c0_i32_0 = arith.constant 0 : i32
    %c0_i32_1 = arith.constant 0 : i32
    return %c0_i32, %c0_i32_0 : i32, i32
  }
  func.func @transform_3(%arg0: i32) -> (i32, i32) {
    %c0_i32 = arith.constant 0 : i32
    %c0_i32_0 = arith.constant 0 : i32
    %c0_i32_1 = arith.constant 0 : i32
    return %c0_i32, %c0_i32_0 : i32, i32
  }
  func.func @transform_4(%arg0: i32) -> (i32, i32, i32) {
    %c0_i32 = arith.constant 0 : i32
    %c0_i32_0 = arith.constant 0 : i32
    %c0_i32_1 = arith.constant 0 : i32
    %c0_i32_2 = arith.constant 0 : i32
    return %c0_i32, %c0_i32_0, %c0_i32_1 : i32, i32, i32
  }
  func.func @transform_5(%arg0: i32) -> (i32, i32) {
    %c0_i32 = arith.constant 0 : i32
    %c0_i32_0 = arith.constant 0 : i32
    %c0_i32_1 = arith.constant 0 : i32
    return %c0_i32, %c0_i32_0 : i32, i32
  }
  func.func @transform_6(%arg0: i32) -> (i32, i32, i32) {
    %c0_i32 = arith.constant 0 : i32
    %c0_i32_0 = arith.constant 0 : i32
    %c0_i32_1 = arith.constant 0 : i32
    return %arg0, %c0_i32, %c0_i32_0 : i32, i32, i32
  }
}

</mosaic_0001>

<llo_original>
// kernel: classify_layer.3
$region0: #{classify_layer.3}
  #allocation0 [shape = 'u32[]', space=smem, size = 0x4, offset = 0x4, fixed_abs, tag = 'smem constant byte address 0x4 - core index']
  #allocation1 [shape = 'u32[144,128]{1,0:T(1,128)}', space=vmem, size = 0x12000, scoped, tag = 'internal scratch']
  #allocation2 [shape = 'bf16[4,362]{1,0:T(4,128)(2,1)}', space=vmem, size = 0xc00, scoped, tag = 'scratch operand']
  %s0 = inlined_call_operand.vmem [shape: f32[2,4,324], index: 0, kind: input, shape index: {}]
  %s1 = inlined_call_operand.vmem [shape: f32[4,1], index: 1, kind: input, shape index: {}]
  %s2 = inlined_call_operand.vmem [shape: f32[4,1], index: 2, kind: input, shape index: {}]
  %s3 = inlined_call_operand.vmem [shape: f32[1,324], index: 3, kind: input, shape index: {}]
  %s4 = inlined_call_operand.vmem [shape: bf16[9,8,4], index: 4, kind: input, shape index: {}]
  %s5 = inlined_call_operand.vmem [shape: f32[8,1], index: 5, kind: input, shape index: {}]
  %s6 = inlined_call_operand.vmem [shape: f32[2,8,324], index: 6, kind: output, shape index: {}]
  %s7 = sld [smem:[#allocation0]]
  $region57: #{classify_layer.3} parent=0
    _
  %s9 = ssub.s32 1, %s7
  %s10 = scalar_select 0, %s9, %s7
  loop: start=0, step=1, limit=4
  $region2: #{classify_layer.3} parent=0 // loop_pre_header
    _
  $region3: #{classify_layer.3} parent=0 // loop_header
    %s12 = sphi 0, %s16
    %p13 = scmp.ge.s32.totalorder %s12, 4
    %s22 = sphi 0, %s24
    %s25 = sphi 0, %s22
    %s26 = sphi 0, %s25
    %s42 = sphi 0, %s26
    %s46 = sphi 0, %s46
    %s48 = sphi 0, %s46
    %s49 = sphi 0, %s48
    %s63 = sphi 0, %s49
    %s67 = sphi 0, %s67
    %s69 = sphi 0, %s67
    %s70 = sphi 0, %s69
    %s84 = sphi 0, %s70
    %s88 = sphi 0, %s88
    %s90 = sphi 0, %s88
    %s91 = sphi 0, %s90
    %s105 = sphi 0, %s91
    %s109 = sphi 0, %s109
    %s111 = sphi 0, %s109
    %s112 = sphi 0, %s111
    %s126 = sphi 0, %s112
    %s130 = sphi 0, %s130
    %s132 = sphi 0, %s130
    %s133 = sphi 0, %s132
    %s147 = sphi 0, %s133
    %s153 = sphi 0, %s155
    %s156 = sphi 0, %s153
    %s157 = sphi 0, %s156
    %s173 = sphi 0, %s157
  $region4: #{classify_layer.3} parent=0 // loop_header_branch
    %15 = sbr.rel (%p13) target = $region8
  $region5: #{classify_layer.3} parent=0 // loop_body
    %s17 = ssub.s32 %s12, 1
    %s18 = ssub.s32 %s12, 2
    %s19 = sadd.s32 %s12, 1
    %s20 = ssub.s32 %s12, %s19
    %p21 = scmp.eq.s32.totalorder %s20, 0
    %s23 = sadd.s32 %s22, 1
    %s24 = scalar_select %p21, %s22, %s23
    %p27 = pneg %p21
    %p28 = scmp.eq.s32.totalorder %s12, 1
    %p29 = por %p27, %p28
    %p30 = scmp.ne.s32.totalorder %s22, %s25
    %p31 = scmp.eq.s32.totalorder %s12, 0
    %p32 = por %p30, %p31
    %p33 = scmp.ne.s32.totalorder %s22, %s25
    %p34 = scmp.eq.s32.totalorder %s17, 1
    %p35 = por %p33, %p34
    %p36 = scmp.ne.s32.totalorder %s25, %s26
    %p37 = scmp.eq.s32.totalorder %s17, 0
    %p38 = por %p36, %p37
    %p39 = scmp.ne.s32.totalorder %s25, %s26
    %p40 = scmp.eq.s32.totalorder %s18, 1
    %p41 = por %p39, %p40
    %p43 = scmp.ne.s32.totalorder %s26, %s42
    %p44 = scmp.eq.s32.totalorder %s18, 0
    %p45 = por %p43, %p44
    %s47 = sadd.s32 %s46, 1
    %p50 = scmp.eq.s32.totalorder %s12, 1
    %p51 = scmp.ne.s32.totalorder %s46, %s48
    %p52 = scmp.eq.s32.totalorder %s12, 0
    %p53 = por %p51, %p52
    %p54 = scmp.ne.s32.totalorder %s46, %s48
    %p55 = scmp.eq.s32.totalorder %s17, 1
    %p56 = por %p54, %p55
    %p57 = scmp.ne.s32.totalorder %s48, %s49
    %p58 = scmp.eq.s32.totalorder %s17, 0
    %p59 = por %p57, %p58
    %p60 = scmp.ne.s32.totalorder %s48, %s49
    %p61 = scmp.eq.s32.totalorder %s18, 1
    %p62 = por %p60, %p61
    %p64 = scmp.ne.s32.totalorder %s49, %s63
    %p65 = scmp.eq.s32.totalorder %s18, 0
    %p66 = por %p64, %p65
    %s68 = sadd.s32 %s67, 1
    %p71 = scmp.eq.s32.totalorder %s12, 1
    %p72 = scmp.ne.s32.totalorder %s67, %s69
    %p73 = scmp.eq.s32.totalorder %s12, 0
    %p74 = por %p72, %p73
    %p75 = scmp.ne.s32.totalorder %s67, %s69
    %p76 = scmp.eq.s32.totalorder %s17, 1
    %p77 = por %p75, %p76
    %p78 = scmp.ne.s32.totalorder %s69, %s70
    %p79 = scmp.eq.s32.totalorder %s17, 0
    %p80 = por %p78, %p79
    %p81 = scmp.ne.s32.totalorder %s69, %s70
    %p82 = scmp.eq.s32.totalorder %s18, 1
    %p83 = por %p81, %p82
    %p85 = scmp.ne.s32.totalorder %s70, %s84
    %p86 = scmp.eq.s32.totalorder %s18, 0
    %p87 = por %p85, %p86
    %s89 = sadd.s32 %s88, 1
    %p92 = scmp.eq.s32.totalorder %s12, 1
    %p93 = scmp.ne.s32.totalorder %s88, %s90
    %p94 = scmp.eq.s32.totalorder %s12, 0
    %p95 = por %p93, %p94
    %p96 = scmp.ne.s32.totalorder %s88, %s90
    %p97 = scmp.eq.s32.totalorder %s17, 1
    %p98 = por %p96, %p97
    %p99 = scmp.ne.s32.totalorder %s90, %s91
    %p100 = scmp.eq.s32.totalorder %s17, 0
    %p101 = por %p99, %p100
    %p102 = scmp.ne.s32.totalorder %s90, %s91
    %p103 = scmp.eq.s32.totalorder %s18, 1
    %p104 = por %p102, %p103
    %p106 = scmp.ne.s32.totalorder %s91, %s105
    %p107 = scmp.eq.s32.totalorder %s18, 0
    %p108 = por %p106, %p107
    %s110 = sadd.s32 %s109, 1
    %p113 = scmp.eq.s32.totalorder %s12, 1
    %p114 = scmp.ne.s32.totalorder %s109, %s111
    %p115 = scmp.eq.s32.totalorder %s12, 0
    %p116 = por %p114, %p115
    %p117 = scmp.ne.s32.totalorder %s109, %s111
    %p118 = scmp.eq.s32.totalorder %s17, 1
    %p119 = por %p117, %p118
    %p120 = scmp.ne.s32.totalorder %s111, %s112
    %p121 = scmp.eq.s32.totalorder %s17, 0
    %p122 = por %p120, %p121
    %p123 = scmp.ne.s32.totalorder %s111, %s112
    %p124 = scmp.eq.s32.totalorder %s18, 1
    %p125 = por %p123, %p124
    %p127 = scmp.ne.s32.totalorder %s112, %s126
    %p128 = scmp.eq.s32.totalorder %s18, 0
    %p129 = por %p127, %p128
    %s131 = sadd.s32 %s130, 1
    %p134 = scmp.eq.s32.totalorder %s12, 1
    %p135 = scmp.ne.s32.totalorder %s130, %s132
    %p136 = scmp.eq.s32.totalorder %s12, 0
    %p137 = por %p135, %p136
    %p138 = scmp.ne.s32.totalorder %s130, %s132
    %p139 = scmp.eq.s32.totalorder %s17, 1
    %p140 = por %p138, %p139
    %p141 = scmp.ne.s32.totalorder %s132, %s133
    %p142 = scmp.eq.s32.totalorder %s17, 0
    %p143 = por %p141, %p142
    %p144 = scmp.ne.s32.totalorder %s132, %s133
    %p145 = scmp.eq.s32.totalorder %s18, 1
    %p146 = por %p144, %p145
    %p148 = scmp.ne.s32.totalorder %s133, %s147
    %p149 = scmp.eq.s32.totalorder %s18, 0
    %p150 = por %p148, %p149
    %s151 = ssub.s32 %s12, %s19
    %p152 = scmp.eq.s32.totalorder %s151, 0
    %s154 = sadd.s32 %s153, 1
    %s155 = scalar_select %p152, %s153, %s154
    %p158 = pneg %p152
    %p159 = scmp.eq.s32.totalorder %s12, 1
    %p160 = por %p158, %p159
    %p161 = scmp.ne.s32.totalorder %s153, %s156
    %p162 = scmp.eq.s32.totalorder %s12, 0
    %p163 = por %p161, %p162
    %p164 = scmp.ne.s32.totalorder %s153, %s156
    %p165 = scmp.eq.s32.totalorder %s17, 1
    %p166 = por %p164, %p165
    %p167 = scmp.ne.s32.totalorder %s156, %s157
    %p168 = scmp.eq.s32.totalorder %s17, 0
    %p169 = por %p167, %p168
    %p170 = scmp.ne.s32.totalorder %s156, %s157
    %p171 = scmp.eq.s32.totalorder %s18, 1
    %p172 = por %p170, %p171
    %p174 = scmp.ne.s32.totalorder %s157, %s173
    %p175 = scmp.eq.s32.totalorder %s18, 0
    %p176 = por %p174, %p175
    %p177 = scmp.le.s32.totalorder 1, %s12
    %p178 = scmp.lt.s32.totalorder %s12, 3
    %p179 = pnand %p177, %p178
    %p180 = pneg %p179
    // Predicated region
    $region9: #{classify_layer.3} parent=5 // pred_check
      _
    $region10: #{classify_layer.3} parent=5 // pred_check_branch
      %182 = sbr.rel (%p179) target = $region12
    $region11: #{classify_layer.3} parent=5 // pred_region
      %s183 = ssub.s32 %s12, 1
      // Predicated region
      $region13: #{classify_layer.3} parent=11 // pred_check
        %p184 = pneg %p59
      $region14: #{classify_layer.3} parent=11 // pred_check_branch
        %186 = sbr.rel (%p184) target = $region16
      $region15: #{classify_layer.3} parent=11 // pred_region
        _
      $region16: #{classify_layer.3} parent=11 // pred_fallthru
        _
      // Predicated region
      $region17: #{classify_layer.3} parent=11 // pred_check
        %p187 = pneg %p80
      $region18: #{classify_layer.3} parent=11 // pred_check_branch
        %189 = sbr.rel (%p187) target = $region20
      $region19: #{classify_layer.3} parent=11 // pred_region
        _
      $region20: #{classify_layer.3} parent=11 // pred_fallthru
        _
      // Predicated region
      $region21: #{classify_layer.3} parent=11 // pred_check
        %p190 = pneg %p101
      $region22: #{classify_layer.3} parent=11 // pred_check_branch
        %192 = sbr.rel (%p190) target = $region24
      $region23: #{classify_layer.3} parent=11 // pred_region
        _
      $region24: #{classify_layer.3} parent=11 // pred_fallthru
        _
      // Predicated region
      $region25: #{classify_layer.3} parent=11 // pred_check
        %p193 = pneg %p122
      $region26: #{classify_layer.3} parent=11 // pred_check_branch
        %195 = sbr.rel (%p193) target = $region28
      $region27: #{classify_layer.3} parent=11 // pred_region
        _
      $region28: #{classify_layer.3} parent=11 // pred_fallthru
        _
      // Predicated region
      $region29: #{classify_layer.3} parent=11 // pred_check
        %p196 = pneg %p143
      $region30: #{classify_layer.3} parent=11 // pred_check_branch
        %198 = sbr.rel (%p196) target = $region32
      $region31: #{classify_layer.3} parent=11 // pred_region
        _
      $region32: #{classify_layer.3} parent=11 // pred_fallthru
        _
    $region12: #{classify_layer.3} parent=5 // pred_fallthru
      _
    %p199 = scmp.lt.s32.totalorder %s12, 2
    // Predicated region
    $region33: #{classify_layer.3} parent=5 // pred_check
      %p200 = pneg %p199
    $region34: #{classify_layer.3} parent=5 // pred_check_branch
      %202 = sbr.rel (%p200) target = $region36
    $region35: #{classify_layer.3} parent=5 // pred_region
      // Predicated region
      $region37: #{classify_layer.3} parent=35 // pred_check
        %p203 = pneg %p32
      $region38: #{classify_layer.3} parent=35 // pred_check_branch
        %205 = sbr.rel (%p203) target = $region40
      $region39: #{classify_layer.3} parent=35 // pred_region
        %p206 = scmp.lt.s32.totalorder %s12, 1
        %s207 = scalar_select %p206, %s12, 1
        %s208 = smul.addr %s207, 3
        %s209 = smul.addr %s208, 4
        %s210 = scalar_lea.vmem %s0, %s209
      $region40: #{classify_layer.3} parent=35 // pred_fallthru
        _
    $region36: #{classify_layer.3} parent=5 // pred_fallthru
      _
    %p211 = scmp.le.s32.totalorder 1, %s12
    %p212 = scmp.lt.s32.totalorder %s12, 3
    %p213 = pnand %p211, %p212
    %p214 = pneg %p213
    // Predicated region
    $region41: #{classify_layer.3} parent=5 // pred_check
      _
    $region42: #{classify_layer.3} parent=5 // pred_check_branch
      %216 = sbr.rel (%p213) target = $region44
    $region43: #{classify_layer.3} parent=5 // pred_region
      %s217 = ssub.s32 %s12, 1
      %p218 = scmp.lt.s32.totalorder %s17, 1
      %s219 = scalar_select %p218, %s17, 1
      %s220 = smul.addr %s219, 3
      %s221 = smul.addr %s220, 4
      %s222 = scalar_lea.vmem %s0, %s221
      %p223 = pneg %p38
      %p224 = pneg %p35
      %p225 = pneg %p59
      %p226 = pneg %p56
      %p227 = pneg %p80
      %p228 = pneg %p77
      %p229 = pneg %p101
      %p230 = pneg %p98
      %p231 = pneg %p122
      %p232 = pneg %p119
      %p233 = pneg %p143
      %p234 = pneg %p140
      %p235 = pneg %p169
      %p236 = pneg %p166
      %p237 = scmp.lt.s32.totalorder %s17, 1
      %s238 = scalar_select %p237, %s17, 1
      %s239 = smul.addr %s238, 3
      %s240 = smul.addr %s239, 8
      %s241 = scalar_lea.vmem %s6, %s240
      %p242 = scmp.lt.s32.totalorder %s17, 1
      %s243 = scalar_select %p242, %s17, 1
      %s244 = smul.addr %s243, 3
      %s245 = smul.addr %s244, 4
      %s246 = scalar_lea.vmem %s0, %s245
      %p247 = scmp.lt.s32.totalorder %s17, 1
      %s248 = scalar_select %p247, %s17, 1
      %s249 = smul.addr %s248, 3
      %s250 = smul.addr %s249, 8
      %s251 = scalar_lea.vmem %s6, %s250
      %v253 = vld [vmem:[%s246] sm:$0xff]
      %v254 = vld [vmem:[%s246 + $0x8] sm:$0xf]
      %v255 = vld [vmem:[%s1] sm:$0xf]
      %257 = vset.pattern.permute.xlu0 0
      %258 = vperm.xlu0 %257, %v255
      %v259 = vpop.permute.xlu0 %258
      %v261 = vunpack.c.l.s4 839922192
      %v262 = vunpack.c.0.s8 %v261
      %v263 = vlaneseq
      %v264 = vshrl.u32 %v263, 7
      %v265 = vsub.s32 %v262, %v264
      %v266 = vrot.slane %v259, %v265
      %v268 = vmul.f32 %v253, %v266
      %v269 = vmul.f32 %v254, %v266
      %v270 = vld [vmem:[%s2] sm:$0xf]
      %272 = vset.pattern.permute.xlu0 0
      %273 = vperm.xlu0 %272, %v270
      %v274 = vpop.permute.xlu0 %273
      %v276 = vunpack.c.l.s4 839922192
      %v277 = vunpack.c.0.s8 %v276
      %v278 = vlaneseq
      %v279 = vshrl.u32 %v278, 7
      %v280 = vsub.s32 %v277, %v279
      %v281 = vrot.slane %v274, %v280
      %v283 = vadd.f32 %v268, %v281
      %v284 = vadd.f32 %v269, %v281
      %v285 = vmax.f32 %v283, 0.0
      %v286 = vmax.f32 %v284, 0.0
      %v287 = vld [vmem:[%s3] sm:$0x7]
      %v289 = vlaneseq
      %v290 = vshrl.u32 %v289, 7
      %v291 = vsub.s32 0, %v290
      %v292 = vrot.slane %v287, %v291
      %v293 = vlaneseq
      %v294 = vshrl.u32 %v293, 7
      %v295 = vsub.s32 1, %v294
      %v296 = vrot.slane %v287, %v295
      %v297 = vlaneseq
      %v298 = vshrl.u32 %v297, 7
      %v299 = vsub.s32 2, %v298
      %v300 = vrot.slane %v287, %v299
      %v302 = vcombine.low %v292, %v296
      %v304 = vmul.f32 %v285, %v302
      %v305 = vmul.f32 %v286, %v300
      %vm306 = vcmask 1041408
      %vm307 = vcmask 1043458
      %vm308 = vmor %vm307, %vm306
      %vm309 = vcmask 865284
      %vm310 = vmor %vm309, %vm308
      %311 = vst.msk [vmem:[#allocation2] sm:$0x3f] %vm310, 0
      %v313 = vcombine.high %v304, %v304
      %v315 = vpack.c.bf16 %v304, %v304
      %v316 = vpack.c.bf16 %v313, %v313
      %v317 = vpack.c.bf16 %v305, %v305
      %v321 = vcombine.low %v315, %v316
      %v323 = vunpack.c.l.s4 1983009808
      %v324 = vunpack.c.0.s8 %v323
      %v325 = vlaneseq
      %v326 = vshrl.u32 %v325, 7
      %v327 = vsub.s32 %v324, %v326
      %v328 = vrot.slane %v321, %v327
      %v330 = vunpack.c.l.s4 1983009808
      %v331 = vunpack.c.0.s8 %v330
      %v332 = vlaneseq
      %v333 = vshrl.u32 %v332, 7
      %v334 = vsub.s32 %v331, %v333
      %v335 = vrot.slane %v317, %v334
      %v336 = vcombine.low %v328, %v335
      %337 = vrot.lane.b32.xlu0 %v336, 19
      %v338 = vpop.permute.xlu0 %337
      %v339 = vrot.slane %v338, 6
      %vm340 = vcmask 154624
      %v341 = vsel %vm340, %v339, %v338
      %vm343 = vcmask 1041560
      %vm344 = vmor %vm307, %vm343
      %vm345 = vcmask 709636
      %vm346 = vmor %vm345, %vm344
      %347 = vst.msk [vmem:[#allocation2] sm:$0x3f] %vm346, %v341
      %v348 = vld [vmem:[%s4] sm:$0xf]
      %v349 = vld [vmem:[#allocation2] sm:$0x3f]
      %s350 = scalar_lea.vmem %s4, 4
      %v351 = vld [vmem:[%s350] sm:$0xf]
      %v353 = vcombine.high %v349, %v349
      %v355 = vunpack.c.l.s4 1983009808
      %v356 = vunpack.c.0.s8 %v355
      %v357 = vlaneseq
      %v358 = vshrl.u32 %v357, 7
      %v359 = vsub.s32 %v356, %v358
      %v360 = vrot.slane %v349, %v359
      %v362 = vunpack.c.l.s4 1983009808
      %v363 = vunpack.c.0.s8 %v362
      %v364 = vlaneseq
      %v365 = vshrl.u32 %v364, 7
      %v366 = vsub.s32 %v363, %v365
      %v367 = vrot.slane %v353, %v366
      %v368 = vcombine.high %v360, %v360
      %369 = vrot.lane.b32.xlu0 %v360, 127
      %v370 = vpop.permute.xlu0 %369
      %371 = vrot.lane.b32.xlu0 %v368, 127
      %v372 = vpop.permute.xlu0 %371
      %373 = vrot.lane.b32.xlu0 %v367, 127
      %v374 = vpop.permute.xlu0 %373
      %vm375 = vcmask 1039360
      %v376 = vsel %vm375, %v370, %v372
      %v377 = vsel %vm375, %v372, %v374
      %vm378 = vcmask 31744
      %v380 = vsel %vm378, %v351, 0
      %v383 = vsel %vm306, %v376, 0
      %v386 = vsel %vm306, %v377, 0
      %v389 = vsel %vm306, %v374, 0
      %391 = vmatprep.subr.bf16.mxu0 %v386
      %392 = vmatpush1.bf16.msra.mxu0 %v383
      %393 = vmatprep.subr.bf16.mxu0 0
      %394 = vmatpush1.bf16.msra.mxu0 0
      %395 = vmatprep.subr.bf16.mxu0 0
      %396 = vmatpush1.bf16.msra.mxu0 0
      %397 = vmatprep.subr.bf16.mxu0 0
      %398 = vmatpush1.bf16.msra.mxu0 0
      %399 = vmatprep.subr.bf16.mxu0 0
      %400 = vmatpush1.bf16.msra.mxu0 0
      %401 = vmatprep.subr.bf16.mxu0 0
      %402 = vmatpush1.bf16.msra.mxu0 0
      %403 = vmatprep.subr.bf16.mxu0 0
      %404 = vmatpush1.bf16.msra.mxu0 0
      %405 = vmatprep.subr.bf16.mxu0 0
      %406 = vmatpush1.bf16.msra.mxu0 0
      %407 = vmatprep.subr.bf16.mxu0 0
      %408 = vmatpush1.bf16.msra.mxu0 0
      %409 = vmatprep.subr.bf16.mxu0 0
      %410 = vmatpush1.bf16.msra.mxu0 0
      %411 = vmatprep.subr.bf16.mxu0 0
      %412 = vmatpush1.bf16.msra.mxu0 0
      %413 = vmatprep.subr.bf16.mxu0 0
      %414 = vmatpush1.bf16.msra.mxu0 0
      %415 = vmatprep.subr.bf16.mxu0 0
      %416 = vmatpush1.bf16.msra.mxu0 0
      %417 = vmatprep.subr.bf16.mxu0 0
      %418 = vmatpush1.bf16.msra.mxu0 0
      %419 = vmatprep.subr.bf16.mxu0 0
      %420 = vmatpush1.bf16.msra.mxu0 0
      %421 = vmatprep.subr.bf16.mxu0 0
      %422 = vmatpush1.bf16.msra.mxu0 0
      %423 = vmatprep.mubr.bf16.mxu0 0
      %424 = vmatmul.mubr.bf16.gmra.mrb[0].mxu0 %v380
      %v425 = vpop.f32.mrb[0].mxu0
      %v426 = vadd.f32 0.0, %v425
      %v427 = vpop.f32.mrb[0].mxu0
      %v428 = vadd.f32 0.0, %v427
      %v429 = vpop.f32.mrb[0].mxu0
      %v430 = vpop.f32.mrb[0].mxu0
      %431 = vdwg.mxu0
      %432 = vmatprep.subr.bf16.mxu0 0
      %433 = vmatpush1.bf16.msra.mxu0 %v389
      %434 = vmatprep.subr.bf16.mxu0 0
      %435 = vmatpush1.bf16.msra.mxu0 0
      %436 = vmatprep.subr.bf16.mxu0 0
      %437 = vmatpush1.bf16.msra.mxu0 0
      %438 = vmatprep.subr.bf16.mxu0 0
      %439 = vmatpush1.bf16.msra.mxu0 0
      %440 = vmatprep.subr.bf16.mxu0 0
      %441 = vmatpush1.bf16.msra.mxu0 0
      %442 = vmatprep.subr.bf16.mxu0 0
      %443 = vmatpush1.bf16.msra.mxu0 0
      %444 = vmatprep.subr.bf16.mxu0 0
      %445 = vmatpush1.bf16.msra.mxu0 0
      %446 = vmatprep.subr.bf16.mxu0 0
      %447 = vmatpush1.bf16.msra.mxu0 0
      %448 = vmatprep.subr.bf16.mxu0 0
      %449 = vmatpush1.bf16.msra.mxu0 0
      %450 = vmatprep.subr.bf16.mxu0 0
      %451 = vmatpush1.bf16.msra.mxu0 0
      %452 = vmatprep.subr.bf16.mxu0 0
      %453 = vmatpush1.bf16.msra.mxu0 0
      %454 = vmatprep.subr.bf16.mxu0 0
      %455 = vmatpush1.bf16.msra.mxu0 0
      %456 = vmatprep.subr.bf16.mxu0 0
      %457 = vmatpush1.bf16.msra.mxu0 0
      %458 = vmatprep.subr.bf16.mxu0 0
      %459 = vmatpush1.bf16.msra.mxu0 0
      %460 = vmatprep.subr.bf16.mxu0 0
      %461 = vmatpush1.bf16.msra.mxu0 0
      %462 = vmatprep.subr.bf16.mxu0 0
      %463 = vmatpush1.bf16.msra.mxu0 0
      %464 = vmatprep.mubr.bf16.mxu0 0
      %465 = vmatmul.mubr.bf16.gmra.mrb[0].mxu0 %v380
      %v466 = vpop.f32.mrb[0].mxu0
      %v467 = vadd.f32 0.0, %v466
      %v468 = vpop.f32.mrb[0].mxu0
      %v469 = vpop.f32.mrb[0].mxu0
      %v470 = vpop.f32.mrb[0].mxu0
      %471 = vdwg.mxu0
      %v473 = vsel %vm378, %v348, 0
      %v476 = vsel %vm306, %v360, 0
      %v479 = vsel %vm306, %v368, 0
      %v482 = vsel %vm306, %v367, 0
      %484 = vmatprep.subr.bf16.mxu0 %v479
      %485 = vmatpush1.bf16.msra.mxu0 %v476
      %486 = vmatprep.subr.bf16.mxu0 0
      %487 = vmatpush1.bf16.msra.mxu0 0
      %488 = vmatprep.subr.bf16.mxu0 0
      %489 = vmatpush1.bf16.msra.mxu0 0
      %490 = vmatprep.subr.bf16.mxu0 0
      %491 = vmatpush1.bf16.msra.mxu0 0
      %492 = vmatprep.subr.bf16.mxu0 0
      %493 = vmatpush1.bf16.msra.mxu0 0
      %494 = vmatprep.subr.bf16.mxu0 0
      %495 = vmatpush1.bf16.msra.mxu0 0
      %496 = vmatprep.subr.bf16.mxu0 0
      %497 = vmatpush1.bf16.msra.mxu0 0
      %498 = vmatprep.subr.bf16.mxu0 0
      %499 = vmatpush1.bf16.msra.mxu0 0
      %500 = vmatprep.subr.bf16.mxu0 0
      %501 = vmatpush1.bf16.msra.mxu0 0
      %502 = vmatprep.subr.bf16.mxu0 0
      %503 = vmatpush1.bf16.msra.mxu0 0
      %504 = vmatprep.subr.bf16.mxu0 0
      %505 = vmatpush1.bf16.msra.mxu0 0
      %506 = vmatprep.subr.bf16.mxu0 0
      %507 = vmatpush1.bf16.msra.mxu0 0
      %508 = vmatprep.subr.bf16.mxu0 0
      %509 = vmatpush1.bf16.msra.mxu0 0
      %510 = vmatprep.subr.bf16.mxu0 0
      %511 = vmatpush1.bf16.msra.mxu0 0
      %512 = vmatprep.subr.bf16.mxu0 0
      %513 = vmatpush1.bf16.msra.mxu0 0
      %514 = vmatprep.subr.bf16.mxu0 0
      %515 = vmatpush1.bf16.msra.mxu0 0
      %516 = vmatprep.mubr.bf16.mxu0 0
      %517 = vmatmul.mubr.bf16.gmra.mrb[0].mxu0 %v473
      %v518 = vpop.f32.mrb[0].mxu0
      %v519 = vadd.f32 %v426, %v518
      %v520 = vpop.f32.mrb[0].mxu0
      %v521 = vadd.f32 %v428, %v520
      %v522 = vpop.f32.mrb[0].mxu0
      %v523 = vpop.f32.mrb[0].mxu0
      %524 = vdwg.mxu0
      %525 = vmatprep.subr.bf16.mxu0 0
      %526 = vmatpush1.bf16.msra.mxu0 %v482
      %527 = vmatprep.subr.bf16.mxu0 0
      %528 = vmatpush1.bf16.msra.mxu0 0
      %529 = vmatprep.subr.bf16.mxu0 0
      %530 = vmatpush1.bf16.msra.mxu0 0
      %531 = vmatprep.subr.bf16.mxu0 0
      %532 = vmatpush1.bf16.msra.mxu0 0
      %533 = vmatprep.subr.bf16.mxu0 0
      %534 = vmatpush1.bf16.msra.mxu0 0
      %535 = vmatprep.subr.bf16.mxu0 0
      %536 = vmatpush1.bf16.msra.mxu0 0
      %537 = vmatprep.subr.bf16.mxu0 0
      %538 = vmatpush1.bf16.msra.mxu0 0
      %539 = vmatprep.subr.bf16.mxu0 0
      %540 = vmatpush1.bf16.msra.mxu0 0
      %541 = vmatprep.subr.bf16.mxu0 0
      %542 = vmatpush1.bf16.msra.mxu0 0
      %543 = vmatprep.subr.bf16.mxu0 0
      %544 = vmatpush1.bf16.msra.mxu0 0
      %545 = vmatprep.subr.bf16.mxu0 0
      %546 = vmatpush1.bf16.msra.mxu0 0
      %547 = vmatprep.subr.bf16.mxu0 0
      %548 = vmatpush1.bf16.msra.mxu0 0
      %549 = vmatprep.subr.bf16.mxu0 0
      %550 = vmatpush1.bf16.msra.mxu0 0
      %551 = vmatprep.subr.bf16.mxu0 0
      %552 = vmatpush1.bf16.msra.mxu0 0
      %553 = vmatprep.subr.bf16.mxu0 0
      %554 = vmatpush1.bf16.msra.mxu0 0
      %555 = vmatprep.subr.bf16.mxu0 0
      %556 = vmatpush1.bf16.msra.mxu0 0
      %557 = vmatprep.mubr.bf16.mxu0 0
      %558 = vmatmul.mubr.bf16.gmra.mrb[0].mxu0 %v473
      %v559 = vpop.f32.mrb[0].mxu0
      %v560 = vadd.f32 %v467, %v559
      %v561 = vpop.f32.mrb[0].mxu0
      %v562 = vpop.f32.mrb[0].mxu0
      %v563 = vpop.f32.mrb[0].mxu0
      %564 = vdwg.mxu0
      %s565 = scalar_lea.vmem %s4, 8
      %v566 = vld [vmem:[%s565] sm:$0xf]
      %v567 = vld [vmem:[#allocation2] sm:$0x3f]
      %v569 = vcombine.high %v567, %v567
      %v571 = vunpack.c.l.s4 1983009808
      %v572 = vunpack.c.0.s8 %v571
      %v573 = vlaneseq
      %v574 = vshrl.u32 %v573, 7
      %v575 = vsub.s32 %v572, %v574
      %v576 = vrot.slane %v567, %v575
      %v578 = vunpack.c.l.s4 1983009808
      %v579 = vunpack.c.0.s8 %v578
      %v580 = vlaneseq
      %v581 = vshrl.u32 %v580, 7
      %v582 = vsub.s32 %v579, %v581
      %v583 = vrot.slane %v569, %v582
      %v584 = vcombine.high %v576, %v576
      %585 = vrot.lane.b32.xlu0 %v576, 126
      %v586 = vpop.permute.xlu0 %585
      %587 = vrot.lane.b32.xlu0 %v584, 126
      %v588 = vpop.permute.xlu0 %587
      %589 = vrot.lane.b32.xlu0 %v583, 126
      %v590 = vpop.permute.xlu0 %589
      %vm591 = vcmask 1031168
      %v592 = vsel %vm591, %v586, %v588
      %v593 = vsel %vm591, %v588, %v590
      %v595 = vsel %vm378, %v566, 0
      %v598 = vsel %vm306, %v592, 0
      %v601 = vsel %vm306, %v593, 0
      %v604 = vsel %vm306, %v590, 0
      %606 = vmatprep.subr.bf16.mxu0 %v601
      %607 = vmatpush1.bf16.msra.mxu0 %v598
      %608 = vmatprep.subr.bf16.mxu0 0
      %609 = vmatpush1.bf16.msra.mxu0 0
      %610 = vmatprep.subr.bf16.mxu0 0
      %611 = vmatpush1.bf16.msra.mxu0 0
      %612 = vmatprep.subr.bf16.mxu0 0
      %613 = vmatpush1.bf16.msra.mxu0 0
      %614 = vmatprep.subr.bf16.mxu0 0
      %615 = vmatpush1.bf16.msra.mxu0 0
      %616 = vmatprep.subr.bf16.mxu0 0
      %617 = vmatpush1.bf16.msra.mxu0 0
      %618 = vmatprep.subr.bf16.mxu0 0
      %619 = vmatpush1.bf16.msra.mxu0 0
      %620 = vmatprep.subr.bf16.mxu0 0
      %621 = vmatpush1.bf16.msra.mxu0 0
      %622 = vmatprep.subr.bf16.mxu0 0
      %623 = vmatpush1.bf16.msra.mxu0 0
      %624 = vmatprep.subr.bf16.mxu0 0
      %625 = vmatpush1.bf16.msra.mxu0 0
      %626 = vmatprep.subr.bf16.mxu0 0
      %627 = vmatpush1.bf16.msra.mxu0 0
      %628 = vmatprep.subr.bf16.mxu0 0
      %629 = vmatpush1.bf16.msra.mxu0 0
      %630 = vmatprep.subr.bf16.mxu0 0
      %631 = vmatpush1.bf16.msra.mxu0 0
      %632 = vmatprep.subr.bf16.mxu0 0
      %633 = vmatpush1.bf16.msra.mxu0 0
      %634 = vmatprep.subr.bf16.mxu0 0
      %635 = vmatpush1.bf16.msra.mxu0 0
      %636 = vmatprep.subr.bf16.mxu0 0
      %637 = vmatpush1.bf16.msra.mxu0 0
      %638 = vmatprep.mubr.bf16.mxu0 0
      %639 = vmatmul.mubr.bf16.gmra.mrb[0].mxu0 %v595
      %v640 = vpop.f32.mrb[0].mxu0
      %v641 = vadd.f32 0.0, %v640
      %v642 = vpop.f32.mrb[0].mxu0
      %v643 = vadd.f32 0.0, %v642
      %v644 = vpop.f32.mrb[0].mxu0
      %v645 = vpop.f32.mrb[0].mxu0
      %646 = vdwg.mxu0
      %647 = vmatprep.subr.bf16.mxu0 0
      %648 = vmatpush1.bf16.msra.mxu0 %v604
      %649 = vmatprep.subr.bf16.mxu0 0
      %650 = vmatpush1.bf16.msra.mxu0 0
      %651 = vmatprep.subr.bf16.mxu0 0
      %652 = vmatpush1.bf16.msra.mxu0 0
      %653 = vmatprep.subr.bf16.mxu0 0
      %654 = vmatpush1.bf16.msra.mxu0 0
      %655 = vmatprep.subr.bf16.mxu0 0
      %656 = vmatpush1.bf16.msra.mxu0 0
      %657 = vmatprep.subr.bf16.mxu0 0
      %658 = vmatpush1.bf16.msra.mxu0 0
      %659 = vmatprep.subr.bf16.mxu0 0
      %660 = vmatpush1.bf16.msra.mxu0 0
      %661 = vmatprep.subr.bf16.mxu0 0
      %662 = vmatpush1.bf16.msra.mxu0 0
      %663 = vmatprep.subr.bf16.mxu0 0
      %664 = vmatpush1.bf16.msra.mxu0 0
      %665 = vmatprep.subr.bf16.mxu0 0
      %666 = vmatpush1.bf16.msra.mxu0 0
      %667 = vmatprep.subr.bf16.mxu0 0
      %668 = vmatpush1.bf16.msra.mxu0 0
      %669 = vmatprep.subr.bf16.mxu0 0
      %670 = vmatpush1.bf16.msra.mxu0 0
      %671 = vmatprep.subr.bf16.mxu0 0
      %672 = vmatpush1.bf16.msra.mxu0 0
      %673 = vmatprep.subr.bf16.mxu0 0
      %674 = vmatpush1.bf16.msra.mxu0 0
      %675 = vmatprep.subr.bf16.mxu0 0
      %676 = vmatpush1.bf16.msra.mxu0 0
      %677 = vmatprep.subr.bf16.mxu0 0
      %678 = vmatpush1.bf16.msra.mxu0 0
      %679 = vmatprep.mubr.bf16.mxu0 0
      %680 = vmatmul.mubr.bf16.gmra.mrb[0].mxu0 %v595
      %v681 = vpop.f32.mrb[0].mxu0
      %v682 = vadd.f32 0.0, %v681
      %v683 = vpop.f32.mrb[0].mxu0
      %v684 = vpop.f32.mrb[0].mxu0
      %v685 = vpop.f32.mrb[0].mxu0
      %686 = vdwg.mxu0
      %v687 = vadd.f32 %v519, %v641
      %v688 = vadd.f32 %v521, %v643
      %v689 = vadd.f32 %v560, %v682
      %s690 = scalar_lea.vmem %s4, 12
      %v691 = vld [vmem:[%s690] sm:$0xf]
      %v692 = vld [vmem:[#allocation2] sm:$0x3f]
      %v694 = vcombine.high %v692, %v692
      %v696 = vunpack.c.l.s4 1983009808
      %v697 = vunpack.c.0.s8 %v696
      %v698 = vlaneseq
      %v699 = vshrl.u32 %v698, 7
      %v700 = vsub.s32 %v697, %v699
      %v701 = vrot.slane %v692, %v700
      %v703 = vunpack.c.l.s4 1983009808
      %v704 = vunpack.c.0.s8 %v703
      %v705 = vlaneseq
      %v706 = vshrl.u32 %v705, 7
      %v707 = vsub.s32 %v704, %v706
      %v708 = vrot.slane %v694, %v707
      %v709 = vcombine.high %v701, %v701
      %710 = vrot.lane.b32.xlu0 %v701, 110
      %v711 = vpop.permute.xlu0 %710
      %712 = vrot.lane.b32.xlu0 %v709, 110
      %v713 = vpop.permute.xlu0 %712
      %714 = vrot.lane.b32.xlu0 %v708, 110
      %v715 = vpop.permute.xlu0 %714
      %vm716 = vcmask 900096
      %v717 = vsel %vm716, %v711, %v713
      %v718 = vsel %vm716, %v713, %v715
      %v720 = vsel %vm378, %v691, 0
      %v723 = vsel %vm306, %v717, 0
      %v726 = vsel %vm306, %v718, 0
      %v729 = vsel %vm306, %v715, 0
      %731 = vmatprep.subr.bf16.mxu0 %v726
      %732 = vmatpush1.bf16.msra.mxu0 %v723
      %733 = vmatprep.subr.bf16.mxu0 0
      %734 = vmatpush1.bf16.msra.mxu0 0
      %735 = vmatprep.subr.bf16.mxu0 0
      %736 = vmatpush1.bf16.msra.mxu0 0
      %737 = vmatprep.subr.bf16.mxu0 0
      %738 = vmatpush1.bf16.msra.mxu0 0
      %739 = vmatprep.subr.bf16.mxu0 0
      %740 = vmatpush1.bf16.msra.mxu0 0
      %741 = vmatprep.subr.bf16.mxu0 0
      %742 = vmatpush1.bf16.msra.mxu0 0
      %743 = vmatprep.subr.bf16.mxu0 0
      %744 = vmatpush1.bf16.msra.mxu0 0
      %745 = vmatprep.subr.bf16.mxu0 0
      %746 = vmatpush1.bf16.msra.mxu0 0
      %747 = vmatprep.subr.bf16.mxu0 0
      %748 = vmatpush1.bf16.msra.mxu0 0
      %749 = vmatprep.subr.bf16.mxu0 0
      %750 = vmatpush1.bf16.msra.mxu0 0
      %751 = vmatprep.subr.bf16.mxu0 0
      %752 = vmatpush1.bf16.msra.mxu0 0
      %753 = vmatprep.subr.bf16.mxu0 0
      %754 = vmatpush1.bf16.msra.mxu0 0
      %755 = vmatprep.subr.bf16.mxu0 0
      %756 = vmatpush1.bf16.msra.mxu0 0
      %757 = vmatprep.subr.bf16.mxu0 0
      %758 = vmatpush1.bf16.msra.mxu0 0
      %759 = vmatprep.subr.bf16.mxu0 0
      %760 = vmatpush1.bf16.msra.mxu0 0
      %761 = vmatprep.subr.bf16.mxu0 0
      %762 = vmatpush1.bf16.msra.mxu0 0
      %763 = vmatprep.mubr.bf16.mxu0 0
      %764 = vmatmul.mubr.bf16.gmra.mrb[0].mxu0 %v720
      %v765 = vpop.f32.mrb[0].mxu0
      %v766 = vadd.f32 0.0, %v765
      %v767 = vpop.f32.mrb[0].mxu0
      %v768 = vadd.f32 0.0, %v767
      %v769 = vpop.f32.mrb[0].mxu0
      %v770 = vpop.f32.mrb[0].mxu0
      %771 = vdwg.mxu0
      %772 = vmatprep.subr.bf16.mxu0 0
      %773 = vmatpush1.bf16.msra.mxu0 %v729
      %774 = vmatprep.subr.bf16.mxu0 0
      %775 = vmatpush1.bf16.msra.mxu0 0
      %776 = vmatprep.subr.bf16.mxu0 0
      %777 = vmatpush1.bf16.msra.mxu0 0
      %778 = vmatprep.subr.bf16.mxu0 0
      %779 = vmatpush1.bf16.msra.mxu0 0
      %780 = vmatprep.subr.bf16.mxu0 0
      %781 = vmatpush1.bf16.msra.mxu0 0
      %782 = vmatprep.subr.bf16.mxu0 0
      %783 = vmatpush1.bf16.msra.mxu0 0
      %784 = vmatprep.subr.bf16.mxu0 0
      %785 = vmatpush1.bf16.msra.mxu0 0
      %786 = vmatprep.subr.bf16.mxu0 0
      %787 = vmatpush1.bf16.msra.mxu0 0
      %788 = vmatprep.subr.bf16.mxu0 0
      %789 = vmatpush1.bf16.msra.mxu0 0
      %790 = vmatprep.subr.bf16.mxu0 0
      %791 = vmatpush1.bf16.msra.mxu0 0
      %792 = vmatprep.subr.bf16.mxu0 0
      %793 = vmatpush1.bf16.msra.mxu0 0
      %794 = vmatprep.subr.bf16.mxu0 0
      %795 = vmatpush1.bf16.msra.mxu0 0
      %796 = vmatprep.subr.bf16.mxu0 0
      %797 = vmatpush1.bf16.msra.mxu0 0
      %798 = vmatprep.subr.bf16.mxu0 0
      %799 = vmatpush1.bf16.msra.mxu0 0
      %800 = vmatprep.subr.bf16.mxu0 0
      %801 = vmatpush1.bf16.msra.mxu0 0
      %802 = vmatprep.subr.bf16.mxu0 0
      %803 = vmatpush1.bf16.msra.mxu0 0
      %804 = vmatprep.mubr.bf16.mxu0 0
      %805 = vmatmul.mubr.bf16.gmra.mrb[0].mxu0 %v720
      %v806 = vpop.f32.mrb[0].mxu0
      %v807 = vadd.f32 0.0, %v806
      %v808 = vpop.f32.mrb[0].mxu0
      %v809 = vpop.f32.mrb[0].mxu0
      %v810 = vpop.f32.mrb[0].mxu0
      %811 = vdwg.mxu0
      %v812 = vadd.f32 %v687, %v766
      %v813 = vadd.f32 %v688, %v768
      %v814 = vadd.f32 %v689, %v807
      %s815 = scalar_lea.vmem %s4, 16
      %v816 = vld [vmem:[%s815] sm:$0xf]
      %v817 = vld [vmem:[#allocation2] sm:$0x3f]
      %v819 = vcombine.high %v817, %v817
      %v821 = vunpack.c.l.s4 1983009808
      %v822 = vunpack.c.0.s8 %v821
      %v823 = vlaneseq
      %v824 = vshrl.u32 %v823, 7
      %v825 = vsub.s32 %v822, %v824
      %v826 = vrot.slane %v817, %v825
      %v828 = vunpack.c.l.s4 1983009808
      %v829 = vunpack.c.0.s8 %v828
      %v830 = vlaneseq
      %v831 = vshrl.u32 %v830, 7
      %v832 = vsub.s32 %v829, %v831
      %v833 = vrot.slane %v819, %v832
      %v834 = vcombine.high %v826, %v826
      %835 = vrot.lane.b32.xlu0 %v826, 109
      %v836 = vpop.permute.xlu0 %835
      %837 = vrot.lane.b32.xlu0 %v834, 109
      %v838 = vpop.permute.xlu0 %837
      %839 = vrot.lane.b32.xlu0 %v833, 109
      %v840 = vpop.permute.xlu0 %839
      %vm841 = vcmask 891904
      %v842 = vsel %vm841, %v836, %v838
      %v843 = vsel %vm841, %v838, %v840
      %v845 = vsel %vm378, %v816, 0
      %v848 = vsel %vm306, %v842, 0
      %v851 = vsel %vm306, %v843, 0
      %v854 = vsel %vm306, %v840, 0
      %856 = vmatprep.subr.bf16.mxu0 %v851
      %857 = vmatpush1.bf16.msra.mxu0 %v848
      %858 = vmatprep.subr.bf16.mxu0 0
      %859 = vmatpush1.bf16.msra.mxu0 0
      %860 = vmatprep.subr.bf16.mxu0 0
      %861 = vmatpush1.bf16.msra.mxu0 0
      %862 = vmatprep.subr.bf16.mxu0 0
      %863 = vmatpush1.bf16.msra.mxu0 0
      %864 = vmatprep.subr.bf16.mxu0 0
      %865 = vmatpush1.bf16.msra.mxu0 0
      %866 = vmatprep.subr.bf16.mxu0 0
      %867 = vmatpush1.bf16.msra.mxu0 0
      %868 = vmatprep.subr.bf16.mxu0 0
      %869 = vmatpush1.bf16.msra.mxu0 0
      %870 = vmatprep.subr.bf16.mxu0 0
      %871 = vmatpush1.bf16.msra.mxu0 0
      %872 = vmatprep.subr.bf16.mxu0 0
      %873 = vmatpush1.bf16.msra.mxu0 0
      %874 = vmatprep.subr.bf16.mxu0 0
      %875 = vmatpush1.bf16.msra.mxu0 0
      %876 = vmatprep.subr.bf16.mxu0 0
      %877 = vmatpush1.bf16.msra.mxu0 0
      %878 = vmatprep.subr.bf16.mxu0 0
      %879 = vmatpush1.bf16.msra.mxu0 0
      %880 = vmatprep.subr.bf16.mxu0 0
      %881 = vmatpush1.bf16.msra.mxu0 0
      %882 = vmatprep.subr.bf16.mxu0 0
      %883 = vmatpush1.bf16.msra.mxu0 0
      %884 = vmatprep.subr.bf16.mxu0 0
      %885 = vmatpush1.bf16.msra.mxu0 0
      %886 = vmatprep.subr.bf16.mxu0 0
      %887 = vmatpush1.bf16.msra.mxu0 0
      %888 = vmatprep.mubr.bf16.mxu0 0
      %889 = vmatmul.mubr.bf16.gmra.mrb[0].mxu0 %v845
      %v890 = vpop.f32.mrb[0].mxu0
      %v891 = vadd.f32 0.0, %v890
      %v892 = vpop.f32.mrb[0].mxu0
      %v893 = vadd.f32 0.0, %v892
      %v894 = vpop.f32.mrb[0].mxu0
      %v895 = vpop.f32.mrb[0].mxu0
      %896 = vdwg.mxu0
      %897 = vmatprep.subr.bf16.mxu0 0
      %898 = vmatpush1.bf16.msra.mxu0 %v854
      %899 = vmatprep.subr.bf16.mxu0 0
      %900 = vmatpush1.bf16.msra.mxu0 0
      %901 = vmatprep.subr.bf16.mxu0 0
      %902 = vmatpush1.bf16.msra.mxu0 0
      %903 = vmatprep.subr.bf16.mxu0 0
      %904 = vmatpush1.bf16.msra.mxu0 0
      %905 = vmatprep.subr.bf16.mxu0 0
      %906 = vmatpush1.bf16.msra.mxu0 0
      %907 = vmatprep.subr.bf16.mxu0 0
      %908 = vmatpush1.bf16.msra.mxu0 0
      %909 = vmatprep.subr.bf16.mxu0 0
      %910 = vmatpush1.bf16.msra.mxu0 0
      %911 = vmatprep.subr.bf16.mxu0 0
      %912 = vmatpush1.bf16.msra.mxu0 0
      %913 = vmatprep.subr.bf16.mxu0 0
      %914 = vmatpush1.bf16.msra.mxu0 0
      %915 = vmatprep.subr.bf16.mxu0 0
      %916 = vmatpush1.bf16.msra.mxu0 0
      %917 = vmatprep.subr.bf16.mxu0 0
      %918 = vmatpush1.bf16.msra.mxu0 0
      %919 = vmatprep.subr.bf16.mxu0 0
      %920 = vmatpush1.bf16.msra.mxu0 0
      %921 = vmatprep.subr.bf16.mxu0 0
      %922 = vmatpush1.bf16.msra.mxu0 0
      %923 = vmatprep.subr.bf16.mxu0 0
      %924 = vmatpush1.bf16.msra.mxu0 0
      %925 = vmatprep.subr.bf16.mxu0 0
      %926 = vmatpush1.bf16.msra.mxu0 0
      %927 = vmatprep.subr.bf16.mxu0 0
      %928 = vmatpush1.bf16.msra.mxu0 0
      %929 = vmatprep.mubr.bf16.mxu0 0
      %930 = vmatmul.mubr.bf16.gmra.mrb[0].mxu0 %v845
      %v931 = vpop.f32.mrb[0].mxu0
      %v932 = vadd.f32 0.0, %v931
      %v933 = vpop.f32.mrb[0].mxu0
      %v934 = vpop.f32.mrb[0].mxu0
      %v935 = vpop.f32.mrb[0].mxu0
      %936 = vdwg.mxu0
      %v937 = vadd.f32 %v812, %v891
      %v938 = vadd.f32 %v813, %v893
      %v939 = vadd.f32 %v814, %v932
      %s940 = scalar_lea.vmem %s4, 20
      %v941 = vld [vmem:[%s940] sm:$0xf]
      %v942 = vld [vmem:[#allocation2] sm:$0x3f]
      %v944 = vcombine.high %v942, %v942
      %v946 = vunpack.c.l.s4 1983009808
      %v947 = vunpack.c.0.s8 %v946
      %v948 = vlaneseq
      %v949 = vshrl.u32 %v948, 7
      %v950 = vsub.s32 %v947, %v949
      %v951 = vrot.slane %v942, %v950
      %v953 = vunpack.c.l.s4 1983009808
      %v954 = vunpack.c.0.s8 %v953
      %v955 = vlaneseq
      %v956 = vshrl.u32 %v955, 7
      %v957 = vsub.s32 %v954, %v956
      %v958 = vrot.slane %v944, %v957
      %v959 = vcombine.high %v951, %v951
      %960 = vrot.lane.b32.xlu0 %v951, 108
      %v961 = vpop.permute.xlu0 %960
      %962 = vrot.lane.b32.xlu0 %v959, 108
      %v963 = vpop.permute.xlu0 %962
      %964 = vrot.lane.b32.xlu0 %v958, 108
      %v965 = vpop.permute.xlu0 %964
      %vm966 = vcmask 883712
      %v967 = vsel %vm966, %v961, %v963
      %v968 = vsel %vm966, %v963, %v965
      %v970 = vsel %vm378, %v941, 0
      %v973 = vsel %vm306, %v967, 0
      %v976 = vsel %vm306, %v968, 0
      %v979 = vsel %vm306, %v965, 0
      %981 = vmatprep.subr.bf16.mxu0 %v976
      %982 = vmatpush1.bf16.msra.mxu0 %v973
      %983 = vmatprep.subr.bf16.mxu0 0
      %984 = vmatpush1.bf16.msra.mxu0 0
      %985 = vmatprep.subr.bf16.mxu0 0
      %986 = vmatpush1.bf16.msra.mxu0 0
      %987 = vmatprep.subr.bf16.mxu0 0
      %988 = vmatpush1.bf16.msra.mxu0 0
      %989 = vmatprep.subr.bf16.mxu0 0
      %990 = vmatpush1.bf16.msra.mxu0 0
      %991 = vmatprep.subr.bf16.mxu0 0
      %992 = vmatpush1.bf16.msra.mxu0 0
      %993 = vmatprep.subr.bf16.mxu0 0
      %994 = vmatpush1.bf16.msra.mxu0 0
      %995 = vmatprep.subr.bf16.mxu0 0
      %996 = vmatpush1.bf16.msra.mxu0 0
      %997 = vmatprep.subr.bf16.mxu0 0
      %998 = vmatpush1.bf16.msra.mxu0 0
      %999 = vmatprep.subr.bf16.mxu0 0
      %1000 = vmatpush1.bf16.msra.mxu0 0
      %1001 = vmatprep.subr.bf16.mxu0 0
      %1002 = vmatpush1.bf16.msra.mxu0 0
      %1003 = vmatprep.subr.bf16.mxu0 0
      %1004 = vmatpush1.bf16.msra.mxu0 0
      %1005 = vmatprep.subr.bf16.mxu0 0
      %1006 = vmatpush1.bf16.msra.mxu0 0
      %1007 = vmatprep.subr.bf16.mxu0 0
      %1008 = vmatpush1.bf16.msra.mxu0 0
      %1009 = vmatprep.subr.bf16.mxu0 0
      %1010 = vmatpush1.bf16.msra.mxu0 0
      %1011 = vmatprep.subr.bf16.mxu0 0
      %1012 = vmatpush1.bf16.msra.mxu0 0
      %1013 = vmatprep.mubr.bf16.mxu0 0
      %1014 = vmatmul.mubr.bf16.gmra.mrb[0].mxu0 %v970
      %v1015 = vpop.f32.mrb[0].mxu0
      %v1016 = vadd.f32 0.0, %v1015
      %v1017 = vpop.f32.mrb[0].mxu0
      %v1018 = vadd.f32 0.0, %v1017
      %v1019 = vpop.f32.mrb[0].mxu0
      %v1020 = vpop.f32.mrb[0].mxu0
      %1021 = vdwg.mxu0
      %1022 = vmatprep.subr.bf16.mxu0 0
      %1023 = vmatpush1.bf16.msra.mxu0 %v979
      %1024 = vmatprep.subr.bf16.mxu0 0
      %1025 = vmatpush1.bf16.msra.mxu0 0
      %1026 = vmatprep.subr.bf16.mxu0 0
      %1027 = vmatpush1.bf16.msra.mxu0 0
      %1028 = vmatprep.subr.bf16.mxu0 0
      %1029 = vmatpush1.bf16.msra.mxu0 0
      %1030 = vmatprep.subr.bf16.mxu0 0
      %1031 = vmatpush1.bf16.msra.mxu0 0
      %1032 = vmatprep.subr.bf16.mxu0 0
      %1033 = vmatpush1.bf16.msra.mxu0 0
      %1034 = vmatprep.subr.bf16.mxu0 0
      %1035 = vmatpush1.bf16.msra.mxu0 0
      %1036 = vmatprep.subr.bf16.mxu0 0
      %1037 = vmatpush1.bf16.msra.mxu0 0
      %1038 = vmatprep.subr.bf16.mxu0 0
      %1039 = vmatpush1.bf16.msra.mxu0 0
      %1040 = vmatprep.subr.bf16.mxu0 0
      %1041 = vmatpush1.bf16.msra.mxu0 0
      %1042 = vmatprep.subr.bf16.mxu0 0
      %1043 = vmatpush1.bf16.msra.mxu0 0
      %1044 = vmatprep.subr.bf16.mxu0 0
      %1045 = vmatpush1.bf16.msra.mxu0 0
      %1046 = vmatprep.subr.bf16.mxu0 0
      %1047 = vmatpush1.bf16.msra.mxu0 0
      %1048 = vmatprep.subr.bf16.mxu0 0
      %1049 = vmatpush1.bf16.msra.mxu0 0
      %1050 = vmatprep.subr.bf16.mxu0 0
      %1051 = vmatpush1.bf16.msra.mxu0 0
      %1052 = vmatprep.subr.bf16.mxu0 0
      %1053 = vmatpush1.bf16.msra.mxu0 0
      %1054 = vmatprep.mubr.bf16.mxu0 0
      %1055 = vmatmul.mubr.bf16.gmra.mrb[0].mxu0 %v970
      %v1056 = vpop.f32.mrb[0].mxu0
      %v1057 = vadd.f32 0.0, %v1056
      %v1058 = vpop.f32.mrb[0].mxu0
      %v1059 = vpop.f32.mrb[0].mxu0
      %v1060 = vpop.f32.mrb[0].mxu0
      %1061 = vdwg.mxu0
      %v1062 = vadd.f32 %v937, %v1016
      %v1063 = vadd.f32 %v938, %v1018
      %v1064 = vadd.f32 %v939, %v1057
      %s1065 = scalar_lea.vmem %s4, 24
      %v1066 = vld [vmem:[%s1065] sm:$0xf]
      %v1067 = vld [vmem:[#allocation2] sm:$0x3f]
      %v1069 = vcombine.high %v1067, %v1067
      %v1071 = vunpack.c.l.s4 1983009808
      %v1072 = vunpack.c.0.s8 %v1071
      %v1073 = vlaneseq
      %v1074 = vshrl.u32 %v1073, 7
      %v1075 = vsub.s32 %v1072, %v1074
      %v1076 = vrot.slane %v1067, %v1075
      %v1078 = vunpack.c.l.s4 1983009808
      %v1079 = vunpack.c.0.s8 %v1078
      %v1080 = vlaneseq
      %v1081 = vshrl.u32 %v1080, 7
      %v1082 = vsub.s32 %v1079, %v1081
      %v1083 = vrot.slane %v1069, %v1082
      %v1084 = vcombine.high %v1076, %v1076
      %1085 = vrot.lane.b32.xlu0 %v1076, 92
      %v1086 = vpop.permute.xlu0 %1085
      %1087 = vrot.lane.b32.xlu0 %v1084, 92
      %v1088 = vpop.permute.xlu0 %1087
      %1089 = vrot.lane.b32.xlu0 %v1083, 92
      %v1090 = vpop.permute.xlu0 %1089
      %vm1091 = vcmask 752640
      %v1092 = vsel %vm1091, %v1086, %v1088
      %v1093 = vsel %vm1091, %v1088, %v1090
      %v1095 = vsel %vm378, %v1066, 0
      %v1098 = vsel %vm306, %v1092, 0
      %v1101 = vsel %vm306, %v1093, 0
      %v1104 = vsel %vm306, %v1090, 0
      %1106 = vmatprep.subr.bf16.mxu0 %v1101
      %1107 = vmatpush1.bf16.msra.mxu0 %v1098
      %1108 = vmatprep.subr.bf16.mxu0 0
      %1109 = vmatpush1.bf16.msra.mxu0 0
      %1110 = vmatprep.subr.bf16.mxu0 0
      %1111 = vmatpush1.bf16.msra.mxu0 0
      %1112 = vmatprep.subr.bf16.mxu0 0
      %1113 = vmatpush1.bf16.msra.mxu0 0
      %1114 = vmatprep.subr.bf16.mxu0 0
      %1115 = vmatpush1.bf16.msra.mxu0 0
      %1116 = vmatprep.subr.bf16.mxu0 0
      %1117 = vmatpush1.bf16.msra.mxu0 0
      %1118 = vmatprep.subr.bf16.mxu0 0
      %1119 = vmatpush1.bf16.msra.mxu0 0
      %1120 = vmatprep.subr.bf16.mxu0 0
      %1121 = vmatpush1.bf16.msra.mxu0 0
      %1122 = vmatprep.subr.bf16.mxu0 0
      %1123 = vmatpush1.bf16.msra.mxu0 0
      %1124 = vmatprep.subr.bf16.mxu0 0
      %1125 = vmatpush1.bf16.msra.mxu0 0
      %1126 = vmatprep.subr.bf16.mxu0 0
      %1127 = vmatpush1.bf16.msra.mxu0 0
      %1128 = vmatprep.subr.bf16.mxu0 0
      %1129 = vmatpush1.bf16.msra.mxu0 0
      %1130 = vmatprep.subr.bf16.mxu0 0
      %1131 = vmatpush1.bf16.msra.mxu0 0
      %1132 = vmatprep.subr.bf16.mxu0 0
      %1133 = vmatpush1.bf16.msra.mxu0 0
      %1134 = vmatprep.subr.bf16.mxu0 0
      %1135 = vmatpush1.bf16.msra.mxu0 0
      %1136 = vmatprep.subr.bf16.mxu0 0
      %1137 = vmatpush1.bf16.msra.mxu0 0
      %1138 = vmatprep.mubr.bf16.mxu0 0
      %1139 = vmatmul.mubr.bf16.gmra.mrb[0].mxu0 %v1095
      %v1140 = vpop.f32.mrb[0].mxu0
      %v1141 = vadd.f32 0.0, %v1140
      %v1142 = vpop.f32.mrb[0].mxu0
      %v1143 = vadd.f32 0.0, %v1142
      %v1144 = vpop.f32.mrb[0].mxu0
      %v1145 = vpop.f32.mrb[0].mxu0
      %1146 = vdwg.mxu0
      %1147 = vmatprep.subr.bf16.mxu0 0
      %1148 = vmatpush1.bf16.msra.mxu0 %v1104
      %1149 = vmatprep.subr.bf16.mxu0 0
      %1150 = vmatpush1.bf16.msra.mxu0 0
      %1151 = vmatprep.subr.bf16.mxu0 0
      %1152 = vmatpush1.bf16.msra.mxu0 0
      %1153 = vmatprep.subr.bf16.mxu0 0
      %1154 = vmatpush1.bf16.msra.mxu0 0
      %1155 = vmatprep.subr.bf16.mxu0 0
      %1156 = vmatpush1.bf16.msra.mxu0 0
      %1157 = vmatprep.subr.bf16.mxu0 0
      %1158 = vmatpush1.bf16.msra.mxu0 0
      %1159 = vmatprep.subr.bf16.mxu0 0
      %1160 = vmatpush1.bf16.msra.mxu0 0
      %1161 = vmatprep.subr.bf16.mxu0 0
      %1162 = vmatpush1.bf16.msra.mxu0 0
      %1163 = vmatprep.subr.bf16.mxu0 0
      %1164 = vmatpush1.bf16.msra.mxu0 0
      %1165 = vmatprep.subr.bf16.mxu0 0
      %1166 = vmatpush1.bf16.msra.mxu0 0
      %1167 = vmatprep.subr.bf16.mxu0 0
      %1168 = vmatpush1.bf16.msra.mxu0 0
      %1169 = vmatprep.subr.bf16.mxu0 0
      %1170 = vmatpush1.bf16.msra.mxu0 0
      %1171 = vmatprep.subr.bf16.mxu0 0
      %1172 = vmatpush1.bf16.msra.mxu0 0
      %1173 = vmatprep.subr.bf16.mxu0 0
      %1174 = vmatpush1.bf16.msra.mxu0 0
      %1175 = vmatprep.subr.bf16.mxu0 0
      %1176 = vmatpush1.bf16.msra.mxu0 0
      %1177 = vmatprep.subr.bf16.mxu0 0
      %1178 = vmatpush1.bf16.msra.mxu0 0
      %1179 = vmatprep.mubr.bf16.mxu0 0
      %1180 = vmatmul.mubr.bf16.gmra.mrb[0].mxu0 %v1095
      %v1181 = vpop.f32.mrb[0].mxu0
      %v1182 = vadd.f32 0.0, %v1181
      %v1183 = vpop.f32.mrb[0].mxu0
      %v1184 = vpop.f32.mrb[0].mxu0
      %v1185 = vpop.f32.mrb[0].mxu0
      %1186 = vdwg.mxu0
      %v1187 = vadd.f32 %v1062, %v1141
      %v1188 = vadd.f32 %v1063, %v1143
      %v1189 = vadd.f32 %v1064, %v1182
      %s1190 = scalar_lea.vmem %s4, 28
      %v1191 = vld [vmem:[%s1190] sm:$0xf]
      %v1192 = vld [vmem:[#allocation2] sm:$0x3f]
      %v1194 = vcombine.high %v1192, %v1192
      %v1196 = vunpack.c.l.s4 1983009808
      %v1197 = vunpack.c.0.s8 %v1196
      %v1198 = vlaneseq
      %v1199 = vshrl.u32 %v1198, 7
      %v1200 = vsub.s32 %v1197, %v1199
      %v1201 = vrot.slane %v1192, %v1200
      %v1203 = vunpack.c.l.s4 1983009808
      %v1204 = vunpack.c.0.s8 %v1203
      %v1205 = vlaneseq
      %v1206 = vshrl.u32 %v1205, 7
      %v1207 = vsub.s32 %v1204, %v1206
      %v1208 = vrot.slane %v1194, %v1207
      %v1209 = vcombine.high %v1201, %v1201
      %1210 = vrot.lane.b32.xlu0 %v1201, 91
      %v1211 = vpop.permute.xlu0 %1210
      %1212 = vrot.lane.b32.xlu0 %v1209, 91
      %v1213 = vpop.permute.xlu0 %1212
      %1214 = vrot.lane.b32.xlu0 %v1208, 91
      %v1215 = vpop.permute.xlu0 %1214
      %vm1216 = vcmask 744448
      %v1217 = vsel %vm1216, %v1211, %v1213
      %v1218 = vsel %vm1216, %v1213, %v1215
      %v1220 = vsel %vm378, %v1191, 0
      %v1223 = vsel %vm306, %v1217, 0
      %v1226 = vsel %vm306, %v1218, 0
      %v1229 = vsel %vm306, %v1215, 0
      %1231 = vmatprep.subr.bf16.mxu0 %v1226
      %1232 = vmatpush1.bf16.msra.mxu0 %v1223
      %1233 = vmatprep.subr.bf16.mxu0 0
      %1234 = vmatpush1.bf16.msra.mxu0 0
      %1235 = vmatprep.subr.bf16.mxu0 0
      %1236 = vmatpush1.bf16.msra.mxu0 0
      %1237 = vmatprep.subr.bf16.mxu0 0
      %1238 = vmatpush1.bf16.msra.mxu0 0
      %1239 = vmatprep.subr.bf16.mxu0 0
      %1240 = vmatpush1.bf16.msra.mxu0 0
      %1241 = vmatprep.subr.bf16.mxu0 0
      %1242 = vmatpush1.bf16.msra.mxu0 0
      %1243 = vmatprep.subr.bf16.mxu0 0
      %1244 = vmatpush1.bf16.msra.mxu0 0
      %1245 = vmatprep.subr.bf16.mxu0 0
      %1246 = vmatpush1.bf16.msra.mxu0 0
      %1247 = vmatprep.subr.bf16.mxu0 0
      %1248 = vmatpush1.bf16.msra.mxu0 0
      %1249 = vmatprep.subr.bf16.mxu0 0
      %1250 = vmatpush1.bf16.msra.mxu0 0
      %1251 = vmatprep.subr.bf16.mxu0 0
      %1252 = vmatpush1.bf16.msra.mxu0 0
      %1253 = vmatprep.subr.bf16.mxu0 0
      %1254 = vmatpush1.bf16.msra.mxu0 0
      %1255 = vmatprep.subr.bf16.mxu0 0
      %1256 = vmatpush1.bf16.msra.mxu0 0
      %1257 = vmatprep.subr.bf16.mxu0 0
      %1258 = vmatpush1.bf16.msra.mxu0 0
      %1259 = vmatprep.subr.bf16.mxu0 0
      %1260 = vmatpush1.bf16.msra.mxu0 0
      %1261 = vmatprep.subr.bf16.mxu0 0
      %1262 = vmatpush1.bf16.msra.mxu0 0
      %1263 = vmatprep.mubr.bf16.mxu0 0
      %1264 = vmatmul.mubr.bf16.gmra.mrb[0].mxu0 %v1220
      %v1265 = vpop.f32.mrb[0].mxu0
      %v1266 = vadd.f32 0.0, %v1265
      %v1267 = vpop.f32.mrb[0].mxu0
      %v1268 = vadd.f32 0.0, %v1267
      %v1269 = vpop.f32.mrb[0].mxu0
      %v1270 = vpop.f32.mrb[0].mxu0
      %1271 = vdwg.mxu0
      %1272 = vmatprep.subr.bf16.mxu0 0
      %1273 = vmatpush1.bf16.msra.mxu0 %v1229
      %1274 = vmatprep.subr.bf16.mxu0 0
      %1275 = vmatpush1.bf16.msra.mxu0 0
      %1276 = vmatprep.subr.bf16.mxu0 0
      %1277 = vmatpush1.bf16.msra.mxu0 0
      %1278 = vmatprep.subr.bf16.mxu0 0
      %1279 = vmatpush1.bf16.msra.mxu0 0
      %1280 = vmatprep.subr.bf16.mxu0 0
      %1281 = vmatpush1.bf16.msra.mxu0 0
      %1282 = vmatprep.subr.bf16.mxu0 0
      %1283 = vmatpush1.bf16.msra.mxu0 0
      %1284 = vmatprep.subr.bf16.mxu0 0
      %1285 = vmatpush1.bf16.msra.mxu0 0
      %1286 = vmatprep.subr.bf16.mxu0 0
      %1287 = vmatpush1.bf16.msra.mxu0 0
      %1288 = vmatprep.subr.bf16.mxu0 0
      %1289 = vmatpush1.bf16.msra.mxu0 0
      %1290 = vmatprep.subr.bf16.mxu0 0
      %1291 = vmatpush1.bf16.msra.mxu0 0
      %1292 = vmatprep.subr.bf16.mxu0 0
      %1293 = vmatpush1.bf16.msra.mxu0 0
      %1294 = vmatprep.subr.bf16.mxu0 0
      %1295 = vmatpush1.bf16.msra.mxu0 0
      %1296 = vmatprep.subr.bf16.mxu0 0
      %1297 = vmatpush1.bf16.msra.mxu0 0
      %1298 = vmatprep.subr.bf16.mxu0 0
      %1299 = vmatpush1.bf16.msra.mxu0 0
      %1300 = vmatprep.subr.bf16.mxu0 0
      %1301 = vmatpush1.bf16.msra.mxu0 0
      %1302 = vmatprep.subr.bf16.mxu0 0
      %1303 = vmatpush1.bf16.msra.mxu0 0
      %1304 = vmatprep.mubr.bf16.mxu0 0
      %1305 = vmatmul.mubr.bf16.gmra.mrb[0].mxu0 %v1220
      %v1306 = vpop.f32.mrb[0].mxu0
      %v1307 = vadd.f32 0.0, %v1306
      %v1308 = vpop.f32.mrb[0].mxu0
      %v1309 = vpop.f32.mrb[0].mxu0
      %v1310 = vpop.f32.mrb[0].mxu0
      %1311 = vdwg.mxu0
      %v1312 = vadd.f32 %v1187, %v1266
      %v1313 = vadd.f32 %v1188, %v1268
      %v1314 = vadd.f32 %v1189, %v1307
      %s1315 = scalar_lea.vmem %s4, 32
      %v1316 = vld [vmem:[%s1315] sm:$0xf]
      %v1317 = vld [vmem:[#allocation2] sm:$0x3f]
      %v1319 = vcombine.high %v1317, %v1317
      %v1321 = vunpack.c.l.s4 1983009808
      %v1322 = vunpack.c.0.s8 %v1321
      %v1323 = vlaneseq
      %v1324 = vshrl.u32 %v1323, 7
      %v1325 = vsub.s32 %v1322, %v1324
      %v1326 = vrot.slane %v1317, %v1325
      %v1328 = vunpack.c.l.s4 1983009808
      %v1329 = vunpack.c.0.s8 %v1328
      %v1330 = vlaneseq
      %v1331 = vshrl.u32 %v1330, 7
      %v1332 = vsub.s32 %v1329, %v1331
      %v1333 = vrot.slane %v1319, %v1332
      %v1334 = vcombine.high %v1326, %v1326
      %1335 = vrot.lane.b32.xlu0 %v1326, 90
      %v1336 = vpop.permute.xlu0 %1335
      %1337 = vrot.lane.b32.xlu0 %v1334, 90
      %v1338 = vpop.permute.xlu0 %1337
      %1339 = vrot.lane.b32.xlu0 %v1333, 90
      %v1340 = vpop.permute.xlu0 %1339
      %vm1341 = vcmask 736256
      %v1342 = vsel %vm1341, %v1336, %v1338
      %v1343 = vsel %vm1341, %v1338, %v1340
      %v1345 = vsel %vm378, %v1316, 0
      %v1348 = vsel %vm306, %v1342, 0
      %v1351 = vsel %vm306, %v1343, 0
      %v1354 = vsel %vm306, %v1340, 0
      %1356 = vmatprep.subr.bf16.mxu0 %v1351
      %1357 = vmatpush1.bf16.msra.mxu0 %v1348
      %1358 = vmatprep.subr.bf16.mxu0 0
      %1359 = vmatpush1.bf16.msra.mxu0 0
      %1360 = vmatprep.subr.bf16.mxu0 0
      %1361 = vmatpush1.bf16.msra.mxu0 0
      %1362 = vmatprep.subr.bf16.mxu0 0
      %1363 = vmatpush1.bf16.msra.mxu0 0
      %1364 = vmatprep.subr.bf16.mxu0 0
      %1365 = vmatpush1.bf16.msra.mxu0 0
      %1366 = vmatprep.subr.bf16.mxu0 0
      %1367 = vmatpush1.bf16.msra.mxu0 0
      %1368 = vmatprep.subr.bf16.mxu0 0
      %1369 = vmatpush1.bf16.msra.mxu0 0
      %1370 = vmatprep.subr.bf16.mxu0 0
      %1371 = vmatpush1.bf16.msra.mxu0 0
      %1372 = vmatprep.subr.bf16.mxu0 0
      %1373 = vmatpush1.bf16.msra.mxu0 0
      %1374 = vmatprep.subr.bf16.mxu0 0
      %1375 = vmatpush1.bf16.msra.mxu0 0
      %1376 = vmatprep.subr.bf16.mxu0 0
      %1377 = vmatpush1.bf16.msra.mxu0 0
      %1378 = vmatprep.subr.bf16.mxu0 0
      %1379 = vmatpush1.bf16.msra.mxu0 0
      %1380 = vmatprep.subr.bf16.mxu0 0
      %1381 = vmatpush1.bf16.msra.mxu0 0
      %1382 = vmatprep.subr.bf16.mxu0 0
      %1383 = vmatpush1.bf16.msra.mxu0 0
      %1384 = vmatprep.subr.bf16.mxu0 0
      %1385 = vmatpush1.bf16.msra.mxu0 0
      %1386 = vmatprep.subr.bf16.mxu0 0
      %1387 = vmatpush1.bf16.msra.mxu0 0
      %1388 = vmatprep.mubr.bf16.mxu0 0
      %1389 = vmatmul.mubr.bf16.gmra.mrb[0].mxu0 %v1345
      %v1390 = vpop.f32.mrb[0].mxu0
      %v1391 = vadd.f32 0.0, %v1390
      %v1392 = vpop.f32.mrb[0].mxu0
      %v1393 = vadd.f32 0.0, %v1392
      %v1394 = vpop.f32.mrb[0].mxu0
      %v1395 = vpop.f32.mrb[0].mxu0
      %1396 = vdwg.mxu0
      %1397 = vmatprep.subr.bf16.mxu0 0
      %1398 = vmatpush1.bf16.msra.mxu0 %v1354
      %1399 = vmatprep.subr.bf16.mxu0 0
      %1400 = vmatpush1.bf16.msra.mxu0 0
      %1401 = vmatprep.subr.bf16.mxu0 0
      %1402 = vmatpush1.bf16.msra.mxu0 0
      %1403 = vmatprep.subr.bf16.mxu0 0
      %1404 = vmatpush1.bf16.msra.mxu0 0
      %1405 = vmatprep.subr.bf16.mxu0 0
      %1406 = vmatpush1.bf16.msra.mxu0 0
      %1407 = vmatprep.subr.bf16.mxu0 0
      %1408 = vmatpush1.bf16.msra.mxu0 0
      %1409 = vmatprep.subr.bf16.mxu0 0
      %1410 = vmatpush1.bf16.msra.mxu0 0
      %1411 = vmatprep.subr.bf16.mxu0 0
      %1412 = vmatpush1.bf16.msra.mxu0 0
      %1413 = vmatprep.subr.bf16.mxu0 0
      %1414 = vmatpush1.bf16.msra.mxu0 0
      %1415 = vmatprep.subr.bf16.mxu0 0
      %1416 = vmatpush1.bf16.msra.mxu0 0
      %1417 = vmatprep.subr.bf16.mxu0 0
      %1418 = vmatpush1.bf16.msra.mxu0 0
      %1419 = vmatprep.subr.bf16.mxu0 0
      %1420 = vmatpush1.bf16.msra.mxu0 0
      %1421 = vmatprep.subr.bf16.mxu0 0
      %1422 = vmatpush1.bf16.msra.mxu0 0
      %1423 = vmatprep.subr.bf16.mxu0 0
      %1424 = vmatpush1.bf16.msra.mxu0 0
      %1425 = vmatprep.subr.bf16.mxu0 0
      %1426 = vmatpush1.bf16.msra.mxu0 0
      %1427 = vmatprep.subr.bf16.mxu0 0
      %1428 = vmatpush1.bf16.msra.mxu0 0
      %1429 = vmatprep.mubr.bf16.mxu0 0
      %1430 = vmatmul.mubr.bf16.gmra.mrb[0].mxu0 %v1345
      %v1431 = vpop.f32.mrb[0].mxu0
      %v1432 = vadd.f32 0.0, %v1431
      %v1433 = vpop.f32.mrb[0].mxu0
      %v1434 = vpop.f32.mrb[0].mxu0
      %v1435 = vpop.f32.mrb[0].mxu0
      %1436 = vdwg.mxu0
      %v1437 = vadd.f32 %v1312, %v1391
      %v1438 = vadd.f32 %v1313, %v1393
      %v1439 = vadd.f32 %v1314, %v1432
      %v1440 = vld [vmem:[%s5] sm:$0xff]
      %1442 = vset.pattern.permute.xlu0 0
      %1443 = vperm.xlu0 %1442, %v1440
      %v1444 = vpop.permute.xlu0 %1443
      %v1446 = vadd.f32 %v1437, %v1444
      %v1447 = vadd.f32 %v1438, %v1444
      %v1448 = vadd.f32 %v1439, %v1444
      %1449 = vst [vmem:[%s251] sm:$0xff] %v1446
      %1450 = vst [vmem:[%s251 + $0x8] sm:$0xff] %v1447
      %vm1451 = vcmask 556032
      %1452 = vst.msk [vmem:[%s251 + $0x10] sm:$0xff] %vm1451, %v1448
      %p1453 = scmp.lt.s32.totalorder %s17, 1
      %s1454 = scalar_select %p1453, %s17, 1
      %s1455 = smul.addr %s1454, 3
      %s1456 = smul.addr %s1455, 8
      %s1457 = scalar_lea.vmem %s6, %s1456
      // Predicated region
      $region45: #{classify_layer.3} parent=43 // pred_check
        %p1458 = pneg %p166
      $region46: #{classify_layer.3} parent=43 // pred_check_branch
        %1460 = sbr.rel (%p1458) target = $region48
      $region47: #{classify_layer.3} parent=43 // pred_region
        _
      $region48: #{classify_layer.3} parent=43 // pred_fallthru
        _
    $region44: #{classify_layer.3} parent=5 // pred_fallthru
      _
    %p1461 = scmp.le.s32.totalorder 2, %s12
    // Predicated region
    $region49: #{classify_layer.3} parent=5 // pred_check
      %p1462 = pneg %p1461
    $region50: #{classify_layer.3} parent=5 // pred_check_branch
      %1464 = sbr.rel (%p1462) target = $region52
    $region51: #{classify_layer.3} parent=5 // pred_region
      %s1465 = ssub.s32 %s12, 2
      // Predicated region
      $region53: #{classify_layer.3} parent=51 // pred_check
        %p1466 = pneg %p172
      $region54: #{classify_layer.3} parent=51 // pred_check_branch
        %1468 = sbr.rel (%p1466) target = $region56
      $region55: #{classify_layer.3} parent=51 // pred_region
        %p1469 = scmp.lt.s32.totalorder %s18, 1
        %s1470 = scalar_select %p1469, %s18, 1
        %s1471 = smul.addr %s1470, 3
        %s1472 = smul.addr %s1471, 8
        %s1473 = scalar_lea.vmem %s6, %s1472
      $region56: #{classify_layer.3} parent=51 // pred_fallthru
        _
    $region52: #{classify_layer.3} parent=5 // pred_fallthru
      _
  $region6: #{classify_layer.3} parent=0 // loop_footer
    %s16 = sadd.s32 1, %s12
  $region7: #{classify_layer.3} parent=0 // loop_footer_branch
    %11 = sbr.rel target = $region3
  $region8: #{classify_layer.3} parent=0 // loop_exit
    _

// kernel: classify_layer.2
$region0: #{classify_layer.2}
  #allocation0 [shape = 'u32[]', space=smem, size = 0x4, offset = 0x4, fixed_abs, tag = 'smem constant byte address 0x4 - core index']
  #allocation1 [shape = 'u32[144,128]{1,0:T(1,128)}', space=vmem, size = 0x12000, scoped, tag = 'internal scratch']
  %s0 = inlined_call_operand.vmem [shape: bf16[2,4,362], index: 0, kind: input, shape index: {}]
  %s1 = inlined_call_operand.vmem [shape: bf16[9,4,4], index: 1, kind: input, shape index: {}]
  %s2 = inlined_call_operand.vmem [shape: f32[1,324], index: 2, kind: input, shape index: {}]
  %s3 = inlined_call_operand.vmem [shape: f32[2,4,324], index: 3, kind: output, shape index: {0}]
  %s4 = inlined_call_operand.vmem [shape: f32[2,4,1], index: 4, kind: output, shape index: {1}]
  %s5 = inlined_call_operand.vmem [shape: f32[2,4,1], index: 5, kind: output, shape index: {2}]
  %6 = xla_tuple %s3, %s4, %s5
  %s7 = sld [smem:[#allocation0]]
  $region61: #{classify_layer.2} parent=0
    _
  %s9 = ssub.s32 1, %s7
  %s10 = scalar_select 0, %s9, %s7
  loop: start=0, step=1, limit=4
  $region2: #{classify_layer.2} parent=0 // loop_pre_header
    _
  $region3: #{classify_layer.2} parent=0 // loop_header
    %s12 = sphi 0, %s16
    %p13 = scmp.ge.s32.totalorder %s12, 4
    %s22 = sphi 0, %s24
    %s25 = sphi 0, %s22
    %s26 = sphi 0, %s25
    %s42 = sphi 0, %s26
    %s46 = sphi 0, %s46
    %s48 = sphi 0, %s46
    %s49 = sphi 0, %s48
    %s63 = sphi 0, %s49
    %s67 = sphi 0, %s67
    %s69 = sphi 0, %s67
    %s70 = sphi 0, %s69
    %s84 = sphi 0, %s70
    %s90 = sphi 0, %s92
    %s93 = sphi 0, %s90
    %s94 = sphi 0, %s93
    %s110 = sphi 0, %s94
    %s116 = sphi 0, %s118
    %s119 = sphi 0, %s116
    %s120 = sphi 0, %s119
    %s136 = sphi 0, %s120
    %s142 = sphi 0, %s144
    %s145 = sphi 0, %s142
    %s146 = sphi 0, %s145
    %s162 = sphi 0, %s146
  $region4: #{classify_layer.2} parent=0 // loop_header_branch
    %15 = sbr.rel (%p13) target = $region8
  $region5: #{classify_layer.2} parent=0 // loop_body
    %s17 = ssub.s32 %s12, 1
    %s18 = ssub.s32 %s12, 2
    %s19 = sadd.s32 %s12, 1
    %s20 = ssub.s32 %s12, %s19
    %p21 = scmp.eq.s32.totalorder %s20, 0
    %s23 = sadd.s32 %s22, 1
    %s24 = scalar_select %p21, %s22, %s23
    %p27 = pneg %p21
    %p28 = scmp.eq.s32.totalorder %s12, 1
    %p29 = por %p27, %p28
    %p30 = scmp.ne.s32.totalorder %s22, %s25
    %p31 = scmp.eq.s32.totalorder %s12, 0
    %p32 = por %p30, %p31
    %p33 = scmp.ne.s32.totalorder %s22, %s25
    %p34 = scmp.eq.s32.totalorder %s17, 1
    %p35 = por %p33, %p34
    %p36 = scmp.ne.s32.totalorder %s25, %s26
    %p37 = scmp.eq.s32.totalorder %s17, 0
    %p38 = por %p36, %p37
    %p39 = scmp.ne.s32.totalorder %s25, %s26
    %p40 = scmp.eq.s32.totalorder %s18, 1
    %p41 = por %p39, %p40
    %p43 = scmp.ne.s32.totalorder %s26, %s42
    %p44 = scmp.eq.s32.totalorder %s18, 0
    %p45 = por %p43, %p44
    %s47 = sadd.s32 %s46, 1
    %p50 = scmp.eq.s32.totalorder %s12, 1
    %p51 = scmp.ne.s32.totalorder %s46, %s48
    %p52 = scmp.eq.s32.totalorder %s12, 0
    %p53 = por %p51, %p52
    %p54 = scmp.ne.s32.totalorder %s46, %s48
    %p55 = scmp.eq.s32.totalorder %s17, 1
    %p56 = por %p54, %p55
    %p57 = scmp.ne.s32.totalorder %s48, %s49
    %p58 = scmp.eq.s32.totalorder %s17, 0
    %p59 = por %p57, %p58
    %p60 = scmp.ne.s32.totalorder %s48, %s49
    %p61 = scmp.eq.s32.totalorder %s18, 1
    %p62 = por %p60, %p61
    %p64 = scmp.ne.s32.totalorder %s49, %s63
    %p65 = scmp.eq.s32.totalorder %s18, 0
    %p66 = por %p64, %p65
    %s68 = sadd.s32 %s67, 1
    %p71 = scmp.eq.s32.totalorder %s12, 1
    %p72 = scmp.ne.s32.totalorder %s67, %s69
    %p73 = scmp.eq.s32.totalorder %s12, 0
    %p74 = por %p72, %p73
    %p75 = scmp.ne.s32.totalorder %s67, %s69
    %p76 = scmp.eq.s32.totalorder %s17, 1
    %p77 = por %p75, %p76
    %p78 = scmp.ne.s32.totalorder %s69, %s70
    %p79 = scmp.eq.s32.totalorder %s17, 0
    %p80 = por %p78, %p79
    %p81 = scmp.ne.s32.totalorder %s69, %s70
    %p82 = scmp.eq.s32.totalorder %s18, 1
    %p83 = por %p81, %p82
    %p85 = scmp.ne.s32.totalorder %s70, %s84
    %p86 = scmp.eq.s32.totalorder %s18, 0
    %p87 = por %p85, %p86
    %s88 = ssub.s32 %s12, %s19
    %p89 = scmp.eq.s32.totalorder %s88, 0
    %s91 = sadd.s32 %s90, 1
    %s92 = scalar_select %p89, %s90, %s91
    %p95 = pneg %p89
    %p96 = scmp.eq.s32.totalorder %s12, 1
    %p97 = por %p95, %p96
    %p98 = scmp.ne.s32.totalorder %s90, %s93
    %p99 = scmp.eq.s32.totalorder %s12, 0
    %p100 = por %p98, %p99
    %p101 = scmp.ne.s32.totalorder %s90, %s93
    %p102 = scmp.eq.s32.totalorder %s17, 1
    %p103 = por %p101, %p102
    %p104 = scmp.ne.s32.totalorder %s93, %s94
    %p105 = scmp.eq.s32.totalorder %s17, 0
    %p106 = por %p104, %p105
    %p107 = scmp.ne.s32.totalorder %s93, %s94
    %p108 = scmp.eq.s32.totalorder %s18, 1
    %p109 = por %p107, %p108
    %p111 = scmp.ne.s32.totalorder %s94, %s110
    %p112 = scmp.eq.s32.totalorder %s18, 0
    %p113 = por %p111, %p112
    %s114 = ssub.s32 %s12, %s19
    %p115 = scmp.eq.s32.totalorder %s114, 0
    %s117 = sadd.s32 %s116, 1
    %s118 = scalar_select %p115, %s116, %s117
    %p121 = pneg %p115
    %p122 = scmp.eq.s32.totalorder %s12, 1
    %p123 = por %p121, %p122
    %p124 = scmp.ne.s32.totalorder %s116, %s119
    %p125 = scmp.eq.s32.totalorder %s12, 0
    %p126 = por %p124, %p125
    %p127 = scmp.ne.s32.totalorder %s116, %s119
    %p128 = scmp.eq.s32.totalorder %s17, 1
    %p129 = por %p127, %p128
    %p130 = scmp.ne.s32.totalorder %s119, %s120
    %p131 = scmp.eq.s32.totalorder %s17, 0
    %p132 = por %p130, %p131
    %p133 = scmp.ne.s32.totalorder %s119, %s120
    %p134 = scmp.eq.s32.totalorder %s18, 1
    %p135 = por %p133, %p134
    %p137 = scmp.ne.s32.totalorder %s120, %s136
    %p138 = scmp.eq.s32.totalorder %s18, 0
    %p139 = por %p137, %p138
    %s140 = ssub.s32 %s12, %s19
    %p141 = scmp.eq.s32.totalorder %s140, 0
    %s143 = sadd.s32 %s142, 1
    %s144 = scalar_select %p141, %s142, %s143
    %p147 = pneg %p141
    %p148 = scmp.eq.s32.totalorder %s12, 1
    %p149 = por %p147, %p148
    %p150 = scmp.ne.s32.totalorder %s142, %s145
    %p151 = scmp.eq.s32.totalorder %s12, 0
    %p152 = por %p150, %p151
    %p153 = scmp.ne.s32.totalorder %s142, %s145
    %p154 = scmp.eq.s32.totalorder %s17, 1
    %p155 = por %p153, %p154
    %p156 = scmp.ne.s32.totalorder %s145, %s146
    %p157 = scmp.eq.s32.totalorder %s17, 0
    %p158 = por %p156, %p157
    %p159 = scmp.ne.s32.totalorder %s145, %s146
    %p160 = scmp.eq.s32.totalorder %s18, 1
    %p161 = por %p159, %p160
    %p163 = scmp.ne.s32.totalorder %s146, %s162
    %p164 = scmp.eq.s32.totalorder %s18, 0
    %p165 = por %p163, %p164
    %p166 = scmp.le.s32.totalorder 1, %s12
    %p167 = scmp.lt.s32.totalorder %s12, 3
    %p168 = pnand %p166, %p167
    %p169 = pneg %p168
    // Predicated region
    $region9: #{classify_layer.2} parent=5 // pred_check
      _
    $region10: #{classify_layer.2} parent=5 // pred_check_branch
      %171 = sbr.rel (%p168) target = $region12
    $region11: #{classify_layer.2} parent=5 // pred_region
      %s172 = ssub.s32 %s12, 1
      // Predicated region
      $region13: #{classify_layer.2} parent=11 // pred_check
        %p173 = pneg %p59
      $region14: #{classify_layer.2} parent=11 // pred_check_branch
        %175 = sbr.rel (%p173) target = $region16
      $region15: #{classify_layer.2} parent=11 // pred_region
        _
      $region16: #{classify_layer.2} parent=11 // pred_fallthru
        _
      // Predicated region
      $region17: #{classify_layer.2} parent=11 // pred_check
        %p176 = pneg %p80
      $region18: #{classify_layer.2} parent=11 // pred_check_branch
        %178 = sbr.rel (%p176) target = $region20
      $region19: #{classify_layer.2} parent=11 // pred_region
        _
      $region20: #{classify_layer.2} parent=11 // pred_fallthru
        _
    $region12: #{classify_layer.2} parent=5 // pred_fallthru
      _
    %p179 = scmp.lt.s32.totalorder %s12, 2
    // Predicated region
    $region21: #{classify_layer.2} parent=5 // pred_check
      %p180 = pneg %p179
    $region22: #{classify_layer.2} parent=5 // pred_check_branch
      %182 = sbr.rel (%p180) target = $region24
    $region23: #{classify_layer.2} parent=5 // pred_region
      // Predicated region
      $region25: #{classify_layer.2} parent=23 // pred_check
        %p183 = pneg %p32
      $region26: #{classify_layer.2} parent=23 // pred_check_branch
        %185 = sbr.rel (%p183) target = $region28
      $region27: #{classify_layer.2} parent=23 // pred_region
        %p186 = scmp.lt.s32.totalorder %s12, 1
        %s187 = scalar_select %p186, %s12, 1
        %s188 = smul.addr %s187, 3
        %s189 = smul.addr %s188, 2
        %s190 = scalar_lea.vmem %s0, %s189
      $region28: #{classify_layer.2} parent=23 // pred_fallthru
        _
    $region24: #{classify_layer.2} parent=5 // pred_fallthru
      _
    %p191 = scmp.le.s32.totalorder 1, %s12
    %p192 = scmp.lt.s32.totalorder %s12, 3
    %p193 = pnand %p191, %p192
    %p194 = pneg %p193
    // Predicated region
    $region29: #{classify_layer.2} parent=5 // pred_check
      _
    $region30: #{classify_layer.2} parent=5 // pred_check_branch
      %196 = sbr.rel (%p193) target = $region32
    $region31: #{classify_layer.2} parent=5 // pred_region
      %s197 = ssub.s32 %s12, 1
      %p198 = scmp.lt.s32.totalorder %s17, 1
      %s199 = scalar_select %p198, %s17, 1
      %s200 = smul.addr %s199, 3
      %s201 = smul.addr %s200, 2
      %s202 = scalar_lea.vmem %s0, %s201
      %p203 = pneg %p38
      %p204 = pneg %p35
      %p205 = pneg %p59
      %p206 = pneg %p56
      %p207 = pneg %p80
      %p208 = pneg %p77
      %p209 = pneg %p106
      %p210 = pneg %p103
      %p211 = scmp.lt.s32.totalorder %s17, 1
      %s212 = scalar_select %p211, %s17, 1
      %s213 = smul.addr %s212, 3
      %s214 = smul.addr %s213, 4
      %s215 = scalar_lea.vmem %s3, %s214
      %p216 = pneg %p132
      %p217 = pneg %p129
      %p218 = scmp.lt.s32.totalorder %s17, 1
      %s219 = scalar_select %p218, %s17, 1
      %s220 = smul.addr %s219, 4
      %s221 = scalar_lea.vmem %s4, %s220
      %p222 = pneg %p158
      %p223 = pneg %p155
      %p224 = scmp.lt.s32.totalorder %s17, 1
      %s225 = scalar_select %p224, %s17, 1
      %s226 = smul.addr %s225, 4
      %s227 = scalar_lea.vmem %s5, %s226
      %p228 = scmp.lt.s32.totalorder %s17, 1
      %s229 = scalar_select %p228, %s17, 1
      %s230 = smul.addr %s229, 3
      %s231 = smul.addr %s230, 2
      %s232 = scalar_lea.vmem %s0, %s231
      %p233 = scmp.lt.s32.totalorder %s17, 1
      %s234 = scalar_select %p233, %s17, 1
      %s235 = smul.addr %s234, 3
      %s236 = smul.addr %s235, 4
      %s237 = scalar_lea.vmem %s3, %s236
      %p238 = scmp.lt.s32.totalorder %s17, 1
      %s239 = scalar_select %p238, %s17, 1
      %s240 = smul.addr %s239, 4
      %s241 = scalar_lea.vmem %s4, %s240
      %p242 = scmp.lt.s32.totalorder %s17, 1
      %s243 = scalar_select %p242, %s17, 1
      %s244 = smul.addr %s243, 4
      %s245 = scalar_lea.vmem %s5, %s244
      %v247 = vld [vmem:[%s1] sm:$0x3]
      %v248 = vld [vmem:[%s232] sm:$0x3f]
      %s249 = scalar_lea.vmem %s1, 2
      %v250 = vld [vmem:[%s249] sm:$0x3]
      %v252 = vcombine.high %v248, %v248
      %v254 = vunpack.c.l.s4 1983009808
      %v255 = vunpack.c.0.s8 %v254
      %v256 = vlaneseq
      %v257 = vshrl.u32 %v256, 7
      %v258 = vsub.s32 %v255, %v257
      %v259 = vrot.slane %v248, %v258
      %v261 = vunpack.c.l.s4 1983009808
      %v262 = vunpack.c.0.s8 %v261
      %v263 = vlaneseq
      %v264 = vshrl.u32 %v263, 7
      %v265 = vsub.s32 %v262, %v264
      %v266 = vrot.slane %v252, %v265
      %v267 = vcombine.high %v259, %v259
      %268 = vrot.lane.b32.xlu0 %v259, 127
      %v269 = vpop.permute.xlu0 %268
      %270 = vrot.lane.b32.xlu0 %v267, 127
      %v271 = vpop.permute.xlu0 %270
      %272 = vrot.lane.b32.xlu0 %v266, 127
      %v273 = vpop.permute.xlu0 %272
      %vm274 = vcmask 1039360
      %v275 = vsel %vm274, %v269, %v271
      %v276 = vsel %vm274, %v271, %v273
      %vm277 = vcmask 31744
      %v279 = vsel %vm277, %v250, 0
      %vm281 = vcmask 1041408
      %v283 = vsel %vm281, %v275, 0
      %v286 = vsel %vm281, %v276, 0
      %v289 = vsel %vm281, %v273, 0
      %291 = vmatprep.subr.bf16.mxu0 %v286
      %292 = vmatpush1.bf16.msra.mxu0 %v283
      %293 = vmatprep.subr.bf16.mxu0 0
      %294 = vmatpush1.bf16.msra.mxu0 0
      %295 = vmatprep.subr.bf16.mxu0 0
      %296 = vmatpush1.bf16.msra.mxu0 0
      %297 = vmatprep.subr.bf16.mxu0 0
      %298 = vmatpush1.bf16.msra.mxu0 0
      %299 = vmatprep.subr.bf16.mxu0 0
      %300 = vmatpush1.bf16.msra.mxu0 0
      %301 = vmatprep.subr.bf16.mxu0 0
      %302 = vmatpush1.bf16.msra.mxu0 0
      %303 = vmatprep.subr.bf16.mxu0 0
      %304 = vmatpush1.bf16.msra.mxu0 0
      %305 = vmatprep.subr.bf16.mxu0 0
      %306 = vmatpush1.bf16.msra.mxu0 0
      %307 = vmatprep.subr.bf16.mxu0 0
      %308 = vmatpush1.bf16.msra.mxu0 0
      %309 = vmatprep.subr.bf16.mxu0 0
      %310 = vmatpush1.bf16.msra.mxu0 0
      %311 = vmatprep.subr.bf16.mxu0 0
      %312 = vmatpush1.bf16.msra.mxu0 0
      %313 = vmatprep.subr.bf16.mxu0 0
      %314 = vmatpush1.bf16.msra.mxu0 0
      %315 = vmatprep.subr.bf16.mxu0 0
      %316 = vmatpush1.bf16.msra.mxu0 0
      %317 = vmatprep.subr.bf16.mxu0 0
      %318 = vmatpush1.bf16.msra.mxu0 0
      %319 = vmatprep.subr.bf16.mxu0 0
      %320 = vmatpush1.bf16.msra.mxu0 0
      %321 = vmatprep.subr.bf16.mxu0 0
      %322 = vmatpush1.bf16.msra.mxu0 0
      %323 = vmatprep.mubr.bf16.mxu0 0
      %324 = vmatmul.mubr.bf16.gmra.mrb[0].mxu0 %v279
      %v325 = vpop.f32.mrb[0].mxu0
      %v326 = vadd.f32 0.0, %v325
      %v327 = vpop.f32.mrb[0].mxu0
      %v328 = vadd.f32 0.0, %v327
      %v329 = vpop.f32.mrb[0].mxu0
      %v330 = vpop.f32.mrb[0].mxu0
      %331 = vdwg.mxu0
      %332 = vmatprep.subr.bf16.mxu0 0
      %333 = vmatpush1.bf16.msra.mxu0 %v289
      %334 = vmatprep.subr.bf16.mxu0 0
      %335 = vmatpush1.bf16.msra.mxu0 0
      %336 = vmatprep.subr.bf16.mxu0 0
      %337 = vmatpush1.bf16.msra.mxu0 0
      %338 = vmatprep.subr.bf16.mxu0 0
      %339 = vmatpush1.bf16.msra.mxu0 0
      %340 = vmatprep.subr.bf16.mxu0 0
      %341 = vmatpush1.bf16.msra.mxu0 0
      %342 = vmatprep.subr.bf16.mxu0 0
      %343 = vmatpush1.bf16.msra.mxu0 0
      %344 = vmatprep.subr.bf16.mxu0 0
      %345 = vmatpush1.bf16.msra.mxu0 0
      %346 = vmatprep.subr.bf16.mxu0 0
      %347 = vmatpush1.bf16.msra.mxu0 0
      %348 = vmatprep.subr.bf16.mxu0 0
      %349 = vmatpush1.bf16.msra.mxu0 0
      %350 = vmatprep.subr.bf16.mxu0 0
      %351 = vmatpush1.bf16.msra.mxu0 0
      %352 = vmatprep.subr.bf16.mxu0 0
      %353 = vmatpush1.bf16.msra.mxu0 0
      %354 = vmatprep.subr.bf16.mxu0 0
      %355 = vmatpush1.bf16.msra.mxu0 0
      %356 = vmatprep.subr.bf16.mxu0 0
      %357 = vmatpush1.bf16.msra.mxu0 0
      %358 = vmatprep.subr.bf16.mxu0 0
      %359 = vmatpush1.bf16.msra.mxu0 0
      %360 = vmatprep.subr.bf16.mxu0 0
      %361 = vmatpush1.bf16.msra.mxu0 0
      %362 = vmatprep.subr.bf16.mxu0 0
      %363 = vmatpush1.bf16.msra.mxu0 0
      %364 = vmatprep.mubr.bf16.mxu0 0
      %365 = vmatmul.mubr.bf16.gmra.mrb[0].mxu0 %v279
      %v366 = vpop.f32.mrb[0].mxu0
      %v367 = vadd.f32 0.0, %v366
      %v368 = vpop.f32.mrb[0].mxu0
      %v369 = vpop.f32.mrb[0].mxu0
      %v370 = vpop.f32.mrb[0].mxu0
      %371 = vdwg.mxu0
      %v373 = vsel %vm277, %v247, 0
      %v376 = vsel %vm281, %v259, 0
      %v379 = vsel %vm281, %v267, 0
      %v382 = vsel %vm281, %v266, 0
      %384 = vmatprep.subr.bf16.mxu0 %v379
      %385 = vmatpush1.bf16.msra.mxu0 %v376
      %386 = vmatprep.subr.bf16.mxu0 0
      %387 = vmatpush1.bf16.msra.mxu0 0
      %388 = vmatprep.subr.bf16.mxu0 0
      %389 = vmatpush1.bf16.msra.mxu0 0
      %390 = vmatprep.subr.bf16.mxu0 0
      %391 = vmatpush1.bf16.msra.mxu0 0
      %392 = vmatprep.subr.bf16.mxu0 0
      %393 = vmatpush1.bf16.msra.mxu0 0
      %394 = vmatprep.subr.bf16.mxu0 0
      %395 = vmatpush1.bf16.msra.mxu0 0
      %396 = vmatprep.subr.bf16.mxu0 0
      %397 = vmatpush1.bf16.msra.mxu0 0
      %398 = vmatprep.subr.bf16.mxu0 0
      %399 = vmatpush1.bf16.msra.mxu0 0
      %400 = vmatprep.subr.bf16.mxu0 0
      %401 = vmatpush1.bf16.msra.mxu0 0
      %402 = vmatprep.subr.bf16.mxu0 0
      %403 = vmatpush1.bf16.msra.mxu0 0
      %404 = vmatprep.subr.bf16.mxu0 0
      %405 = vmatpush1.bf16.msra.mxu0 0
      %406 = vmatprep.subr.bf16.mxu0 0
      %407 = vmatpush1.bf16.msra.mxu0 0
      %408 = vmatprep.subr.bf16.mxu0 0
      %409 = vmatpush1.bf16.msra.mxu0 0
      %410 = vmatprep.subr.bf16.mxu0 0
      %411 = vmatpush1.bf16.msra.mxu0 0
      %412 = vmatprep.subr.bf16.mxu0 0
      %413 = vmatpush1.bf16.msra.mxu0 0
      %414 = vmatprep.subr.bf16.mxu0 0
      %415 = vmatpush1.bf16.msra.mxu0 0
      %416 = vmatprep.mubr.bf16.mxu0 0
      %417 = vmatmul.mubr.bf16.gmra.mrb[0].mxu0 %v373
      %v418 = vpop.f32.mrb[0].mxu0
      %v419 = vadd.f32 %v326, %v418
      %v420 = vpop.f32.mrb[0].mxu0
      %v421 = vadd.f32 %v328, %v420
      %v422 = vpop.f32.mrb[0].mxu0
      %v423 = vpop.f32.mrb[0].mxu0
      %424 = vdwg.mxu0
      %425 = vmatprep.subr.bf16.mxu0 0
      %426 = vmatpush1.bf16.msra.mxu0 %v382
      %427 = vmatprep.subr.bf16.mxu0 0
      %428 = vmatpush1.bf16.msra.mxu0 0
      %429 = vmatprep.subr.bf16.mxu0 0
      %430 = vmatpush1.bf16.msra.mxu0 0
      %431 = vmatprep.subr.bf16.mxu0 0
      %432 = vmatpush1.bf16.msra.mxu0 0
      %433 = vmatprep.subr.bf16.mxu0 0
      %434 = vmatpush1.bf16.msra.mxu0 0
      %435 = vmatprep.subr.bf16.mxu0 0
      %436 = vmatpush1.bf16.msra.mxu0 0
      %437 = vmatprep.subr.bf16.mxu0 0
      %438 = vmatpush1.bf16.msra.mxu0 0
      %439 = vmatprep.subr.bf16.mxu0 0
      %440 = vmatpush1.bf16.msra.mxu0 0
      %441 = vmatprep.subr.bf16.mxu0 0
      %442 = vmatpush1.bf16.msra.mxu0 0
      %443 = vmatprep.subr.bf16.mxu0 0
      %444 = vmatpush1.bf16.msra.mxu0 0
      %445 = vmatprep.subr.bf16.mxu0 0
      %446 = vmatpush1.bf16.msra.mxu0 0
      %447 = vmatprep.subr.bf16.mxu0 0
      %448 = vmatpush1.bf16.msra.mxu0 0
      %449 = vmatprep.subr.bf16.mxu0 0
      %450 = vmatpush1.bf16.msra.mxu0 0
      %451 = vmatprep.subr.bf16.mxu0 0
      %452 = vmatpush1.bf16.msra.mxu0 0
      %453 = vmatprep.subr.bf16.mxu0 0
      %454 = vmatpush1.bf16.msra.mxu0 0
      %455 = vmatprep.subr.bf16.mxu0 0
      %456 = vmatpush1.bf16.msra.mxu0 0
      %457 = vmatprep.mubr.bf16.mxu0 0
      %458 = vmatmul.mubr.bf16.gmra.mrb[0].mxu0 %v373
      %v459 = vpop.f32.mrb[0].mxu0
      %v460 = vadd.f32 %v367, %v459
      %v461 = vpop.f32.mrb[0].mxu0
      %v462 = vpop.f32.mrb[0].mxu0
      %v463 = vpop.f32.mrb[0].mxu0
      %464 = vdwg.mxu0
      %s465 = scalar_lea.vmem %s1, 4
      %v466 = vld [vmem:[%s465] sm:$0x3]
      %v467 = vld [vmem:[%s232] sm:$0x3f]
      %v469 = vcombine.high %v467, %v467
      %v471 = vunpack.c.l.s4 1983009808
      %v472 = vunpack.c.0.s8 %v471
      %v473 = vlaneseq
      %v474 = vshrl.u32 %v473, 7
      %v475 = vsub.s32 %v472, %v474
      %v476 = vrot.slane %v467, %v475
      %v478 = vunpack.c.l.s4 1983009808
      %v479 = vunpack.c.0.s8 %v478
      %v480 = vlaneseq
      %v481 = vshrl.u32 %v480, 7
      %v482 = vsub.s32 %v479, %v481
      %v483 = vrot.slane %v469, %v482
      %v484 = vcombine.high %v476, %v476
      %485 = vrot.lane.b32.xlu0 %v476, 126
      %v486 = vpop.permute.xlu0 %485
      %487 = vrot.lane.b32.xlu0 %v484, 126
      %v488 = vpop.permute.xlu0 %487
      %489 = vrot.lane.b32.xlu0 %v483, 126
      %v490 = vpop.permute.xlu0 %489
      %vm491 = vcmask 1031168
      %v492 = vsel %vm491, %v486, %v488
      %v493 = vsel %vm491, %v488, %v490
      %v495 = vsel %vm277, %v466, 0
      %v498 = vsel %vm281, %v492, 0
      %v501 = vsel %vm281, %v493, 0
      %v504 = vsel %vm281, %v490, 0
      %506 = vmatprep.subr.bf16.mxu0 %v501
      %507 = vmatpush1.bf16.msra.mxu0 %v498
      %508 = vmatprep.subr.bf16.mxu0 0
      %509 = vmatpush1.bf16.msra.mxu0 0
      %510 = vmatprep.subr.bf16.mxu0 0
      %511 = vmatpush1.bf16.msra.mxu0 0
      %512 = vmatprep.subr.bf16.mxu0 0
      %513 = vmatpush1.bf16.msra.mxu0 0
      %514 = vmatprep.subr.bf16.mxu0 0
      %515 = vmatpush1.bf16.msra.mxu0 0
      %516 = vmatprep.subr.bf16.mxu0 0
      %517 = vmatpush1.bf16.msra.mxu0 0
      %518 = vmatprep.subr.bf16.mxu0 0
      %519 = vmatpush1.bf16.msra.mxu0 0
      %520 = vmatprep.subr.bf16.mxu0 0
      %521 = vmatpush1.bf16.msra.mxu0 0
      %522 = vmatprep.subr.bf16.mxu0 0
      %523 = vmatpush1.bf16.msra.mxu0 0
      %524 = vmatprep.subr.bf16.mxu0 0
      %525 = vmatpush1.bf16.msra.mxu0 0
      %526 = vmatprep.subr.bf16.mxu0 0
      %527 = vmatpush1.bf16.msra.mxu0 0
      %528 = vmatprep.subr.bf16.mxu0 0
      %529 = vmatpush1.bf16.msra.mxu0 0
      %530 = vmatprep.subr.bf16.mxu0 0
      %531 = vmatpush1.bf16.msra.mxu0 0
      %532 = vmatprep.subr.bf16.mxu0 0
      %533 = vmatpush1.bf16.msra.mxu0 0
      %534 = vmatprep.subr.bf16.mxu0 0
      %535 = vmatpush1.bf16.msra.mxu0 0
      %536 = vmatprep.subr.bf16.mxu0 0
      %537 = vmatpush1.bf16.msra.mxu0 0
      %538 = vmatprep.mubr.bf16.mxu0 0
      %539 = vmatmul.mubr.bf16.gmra.mrb[0].mxu0 %v495
      %v540 = vpop.f32.mrb[0].mxu0
      %v541 = vadd.f32 0.0, %v540
      %v542 = vpop.f32.mrb[0].mxu0
      %v543 = vadd.f32 0.0, %v542
      %v544 = vpop.f32.mrb[0].mxu0
      %v545 = vpop.f32.mrb[0].mxu0
      %546 = vdwg.mxu0
      %547 = vmatprep.subr.bf16.mxu0 0
      %548 = vmatpush1.bf16.msra.mxu0 %v504
      %549 = vmatprep.subr.bf16.mxu0 0
      %550 = vmatpush1.bf16.msra.mxu0 0
      %551 = vmatprep.subr.bf16.mxu0 0
      %552 = vmatpush1.bf16.msra.mxu0 0
      %553 = vmatprep.subr.bf16.mxu0 0
      %554 = vmatpush1.bf16.msra.mxu0 0
      %555 = vmatprep.subr.bf16.mxu0 0
      %556 = vmatpush1.bf16.msra.mxu0 0
      %557 = vmatprep.subr.bf16.mxu0 0
      %558 = vmatpush1.bf16.msra.mxu0 0
      %559 = vmatprep.subr.bf16.mxu0 0
      %560 = vmatpush1.bf16.msra.mxu0 0
      %561 = vmatprep.subr.bf16.mxu0 0
      %562 = vmatpush1.bf16.msra.mxu0 0
      %563 = vmatprep.subr.bf16.mxu0 0
      %564 = vmatpush1.bf16.msra.mxu0 0
      %565 = vmatprep.subr.bf16.mxu0 0
      %566 = vmatpush1.bf16.msra.mxu0 0
      %567 = vmatprep.subr.bf16.mxu0 0
      %568 = vmatpush1.bf16.msra.mxu0 0
      %569 = vmatprep.subr.bf16.mxu0 0
      %570 = vmatpush1.bf16.msra.mxu0 0
      %571 = vmatprep.subr.bf16.mxu0 0
      %572 = vmatpush1.bf16.msra.mxu0 0
      %573 = vmatprep.subr.bf16.mxu0 0
      %574 = vmatpush1.bf16.msra.mxu0 0
      %575 = vmatprep.subr.bf16.mxu0 0
      %576 = vmatpush1.bf16.msra.mxu0 0
      %577 = vmatprep.subr.bf16.mxu0 0
      %578 = vmatpush1.bf16.msra.mxu0 0
      %579 = vmatprep.mubr.bf16.mxu0 0
      %580 = vmatmul.mubr.bf16.gmra.mrb[0].mxu0 %v495
      %v581 = vpop.f32.mrb[0].mxu0
      %v582 = vadd.f32 0.0, %v581
      %v583 = vpop.f32.mrb[0].mxu0
      %v584 = vpop.f32.mrb[0].mxu0
      %v585 = vpop.f32.mrb[0].mxu0
      %586 = vdwg.mxu0
      %v587 = vadd.f32 %v419, %v541
      %v588 = vadd.f32 %v421, %v543
      %v589 = vadd.f32 %v460, %v582
      %s590 = scalar_lea.vmem %s1, 6
      %v591 = vld [vmem:[%s590] sm:$0x3]
      %v592 = vld [vmem:[%s232] sm:$0x3f]
      %v594 = vcombine.high %v592, %v592
      %v596 = vunpack.c.l.s4 1983009808
      %v597 = vunpack.c.0.s8 %v596
      %v598 = vlaneseq
      %v599 = vshrl.u32 %v598, 7
      %v600 = vsub.s32 %v597, %v599
      %v601 = vrot.slane %v592, %v600
      %v603 = vunpack.c.l.s4 1983009808
      %v604 = vunpack.c.0.s8 %v603
      %v605 = vlaneseq
      %v606 = vshrl.u32 %v605, 7
      %v607 = vsub.s32 %v604, %v606
      %v608 = vrot.slane %v594, %v607
      %v609 = vcombine.high %v601, %v601
      %610 = vrot.lane.b32.xlu0 %v601, 110
      %v611 = vpop.permute.xlu0 %610
      %612 = vrot.lane.b32.xlu0 %v609, 110
      %v613 = vpop.permute.xlu0 %612
      %614 = vrot.lane.b32.xlu0 %v608, 110
      %v615 = vpop.permute.xlu0 %614
      %vm616 = vcmask 900096
      %v617 = vsel %vm616, %v611, %v613
      %v618 = vsel %vm616, %v613, %v615
      %v620 = vsel %vm277, %v591, 0
      %v623 = vsel %vm281, %v617, 0
      %v626 = vsel %vm281, %v618, 0
      %v629 = vsel %vm281, %v615, 0
      %631 = vmatprep.subr.bf16.mxu0 %v626
      %632 = vmatpush1.bf16.msra.mxu0 %v623
      %633 = vmatprep.subr.bf16.mxu0 0
      %634 = vmatpush1.bf16.msra.mxu0 0
      %635 = vmatprep.subr.bf16.mxu0 0
      %636 = vmatpush1.bf16.msra.mxu0 0
      %637 = vmatprep.subr.bf16.mxu0 0
      %638 = vmatpush1.bf16.msra.mxu0 0
      %639 = vmatprep.subr.bf16.mxu0 0
      %640 = vmatpush1.bf16.msra.mxu0 0
      %641 = vmatprep.subr.bf16.mxu0 0
      %642 = vmatpush1.bf16.msra.mxu0 0
      %643 = vmatprep.subr.bf16.mxu0 0
      %644 = vmatpush1.bf16.msra.mxu0 0
      %645 = vmatprep.subr.bf16.mxu0 0
      %646 = vmatpush1.bf16.msra.mxu0 0
      %647 = vmatprep.subr.bf16.mxu0 0
      %648 = vmatpush1.bf16.msra.mxu0 0
      %649 = vmatprep.subr.bf16.mxu0 0
      %650 = vmatpush1.bf16.msra.mxu0 0
      %651 = vmatprep.subr.bf16.mxu0 0
      %652 = vmatpush1.bf16.msra.mxu0 0
      %653 = vmatprep.subr.bf16.mxu0 0
      %654 = vmatpush1.bf16.msra.mxu0 0
      %655 = vmatprep.subr.bf16.mxu0 0
      %656 = vmatpush1.bf16.msra.mxu0 0
      %657 = vmatprep.subr.bf16.mxu0 0
      %658 = vmatpush1.bf16.msra.mxu0 0
      %659 = vmatprep.subr.bf16.mxu0 0
      %660 = vmatpush1.bf16.msra.mxu0 0
      %661 = vmatprep.subr.bf16.mxu0 0
      %662 = vmatpush1.bf16.msra.mxu0 0
      %663 = vmatprep.mubr.bf16.mxu0 0
      %664 = vmatmul.mubr.bf16.gmra.mrb[0].mxu0 %v620
      %v665 = vpop.f32.mrb[0].mxu0
      %v666 = vadd.f32 0.0, %v665
      %v667 = vpop.f32.mrb[0].mxu0
      %v668 = vadd.f32 0.0, %v667
      %v669 = vpop.f32.mrb[0].mxu0
      %v670 = vpop.f32.mrb[0].mxu0
      %671 = vdwg.mxu0
      %672 = vmatprep.subr.bf16.mxu0 0
      %673 = vmatpush1.bf16.msra.mxu0 %v629
      %674 = vmatprep.subr.bf16.mxu0 0
      %675 = vmatpush1.bf16.msra.mxu0 0
      %676 = vmatprep.subr.bf16.mxu0 0
      %677 = vmatpush1.bf16.msra.mxu0 0
      %678 = vmatprep.subr.bf16.mxu0 0
      %679 = vmatpush1.bf16.msra.mxu0 0
      %680 = vmatprep.subr.bf16.mxu0 0
      %681 = vmatpush1.bf16.msra.mxu0 0
      %682 = vmatprep.subr.bf16.mxu0 0
      %683 = vmatpush1.bf16.msra.mxu0 0
      %684 = vmatprep.subr.bf16.mxu0 0
      %685 = vmatpush1.bf16.msra.mxu0 0
      %686 = vmatprep.subr.bf16.mxu0 0
      %687 = vmatpush1.bf16.msra.mxu0 0
      %688 = vmatprep.subr.bf16.mxu0 0
      %689 = vmatpush1.bf16.msra.mxu0 0
      %690 = vmatprep.subr.bf16.mxu0 0
      %691 = vmatpush1.bf16.msra.mxu0 0
      %692 = vmatprep.subr.bf16.mxu0 0
      %693 = vmatpush1.bf16.msra.mxu0 0
      %694 = vmatprep.subr.bf16.mxu0 0
      %695 = vmatpush1.bf16.msra.mxu0 0
      %696 = vmatprep.subr.bf16.mxu0 0
      %697 = vmatpush1.bf16.msra.mxu0 0
      %698 = vmatprep.subr.bf16.mxu0 0
      %699 = vmatpush1.bf16.msra.mxu0 0
      %700 = vmatprep.subr.bf16.mxu0 0
      %701 = vmatpush1.bf16.msra.mxu0 0
      %702 = vmatprep.subr.bf16.mxu0 0
      %703 = vmatpush1.bf16.msra.mxu0 0
      %704 = vmatprep.mubr.bf16.mxu0 0
      %705 = vmatmul.mubr.bf16.gmra.mrb[0].mxu0 %v620
      %v706 = vpop.f32.mrb[0].mxu0
      %v707 = vadd.f32 0.0, %v706
      %v708 = vpop.f32.mrb[0].mxu0
      %v709 = vpop.f32.mrb[0].mxu0
      %v710 = vpop.f32.mrb[0].mxu0
      %711 = vdwg.mxu0
      %v712 = vadd.f32 %v587, %v666
      %v713 = vadd.f32 %v588, %v668
      %v714 = vadd.f32 %v589, %v707
      %s715 = scalar_lea.vmem %s1, 8
      %v716 = vld [vmem:[%s715] sm:$0x3]
      %v717 = vld [vmem:[%s232] sm:$0x3f]
      %v719 = vcombine.high %v717, %v717
      %v721 = vunpack.c.l.s4 1983009808
      %v722 = vunpack.c.0.s8 %v721
      %v723 = vlaneseq
      %v724 = vshrl.u32 %v723, 7
      %v725 = vsub.s32 %v722, %v724
      %v726 = vrot.slane %v717, %v725
      %v728 = vunpack.c.l.s4 1983009808
      %v729 = vunpack.c.0.s8 %v728
      %v730 = vlaneseq
      %v731 = vshrl.u32 %v730, 7
      %v732 = vsub.s32 %v729, %v731
      %v733 = vrot.slane %v719, %v732
      %v734 = vcombine.high %v726, %v726
      %735 = vrot.lane.b32.xlu0 %v726, 109
      %v736 = vpop.permute.xlu0 %735
      %737 = vrot.lane.b32.xlu0 %v734, 109
      %v738 = vpop.permute.xlu0 %737
      %739 = vrot.lane.b32.xlu0 %v733, 109
      %v740 = vpop.permute.xlu0 %739
      %vm741 = vcmask 891904
      %v742 = vsel %vm741, %v736, %v738
      %v743 = vsel %vm741, %v738, %v740
      %v745 = vsel %vm277, %v716, 0
      %v748 = vsel %vm281, %v742, 0
      %v751 = vsel %vm281, %v743, 0
      %v754 = vsel %vm281, %v740, 0
      %756 = vmatprep.subr.bf16.mxu0 %v751
      %757 = vmatpush1.bf16.msra.mxu0 %v748
      %758 = vmatprep.subr.bf16.mxu0 0
      %759 = vmatpush1.bf16.msra.mxu0 0
      %760 = vmatprep.subr.bf16.mxu0 0
      %761 = vmatpush1.bf16.msra.mxu0 0
      %762 = vmatprep.subr.bf16.mxu0 0
      %763 = vmatpush1.bf16.msra.mxu0 0
      %764 = vmatprep.subr.bf16.mxu0 0
      %765 = vmatpush1.bf16.msra.mxu0 0
      %766 = vmatprep.subr.bf16.mxu0 0
      %767 = vmatpush1.bf16.msra.mxu0 0
      %768 = vmatprep.subr.bf16.mxu0 0
      %769 = vmatpush1.bf16.msra.mxu0 0
      %770 = vmatprep.subr.bf16.mxu0 0
      %771 = vmatpush1.bf16.msra.mxu0 0
      %772 = vmatprep.subr.bf16.mxu0 0
      %773 = vmatpush1.bf16.msra.mxu0 0
      %774 = vmatprep.subr.bf16.mxu0 0
      %775 = vmatpush1.bf16.msra.mxu0 0
      %776 = vmatprep.subr.bf16.mxu0 0
      %777 = vmatpush1.bf16.msra.mxu0 0
      %778 = vmatprep.subr.bf16.mxu0 0
      %779 = vmatpush1.bf16.msra.mxu0 0
      %780 = vmatprep.subr.bf16.mxu0 0
      %781 = vmatpush1.bf16.msra.mxu0 0
      %782 = vmatprep.subr.bf16.mxu0 0
      %783 = vmatpush1.bf16.msra.mxu0 0
      %784 = vmatprep.subr.bf16.mxu0 0
      %785 = vmatpush1.bf16.msra.mxu0 0
      %786 = vmatprep.subr.bf16.mxu0 0
      %787 = vmatpush1.bf16.msra.mxu0 0
      %788 = vmatprep.mubr.bf16.mxu0 0
      %789 = vmatmul.mubr.bf16.gmra.mrb[0].mxu0 %v745
      %v790 = vpop.f32.mrb[0].mxu0
      %v791 = vadd.f32 0.0, %v790
      %v792 = vpop.f32.mrb[0].mxu0
      %v793 = vadd.f32 0.0, %v792
      %v794 = vpop.f32.mrb[0].mxu0
      %v795 = vpop.f32.mrb[0].mxu0
      %796 = vdwg.mxu0
      %797 = vmatprep.subr.bf16.mxu0 0
      %798 = vmatpush1.bf16.msra.mxu0 %v754
      %799 = vmatprep.subr.bf16.mxu0 0
      %800 = vmatpush1.bf16.msra.mxu0 0
      %801 = vmatprep.subr.bf16.mxu0 0
      %802 = vmatpush1.bf16.msra.mxu0 0
      %803 = vmatprep.subr.bf16.mxu0 0
      %804 = vmatpush1.bf16.msra.mxu0 0
      %805 = vmatprep.subr.bf16.mxu0 0
      %806 = vmatpush1.bf16.msra.mxu0 0
      %807 = vmatprep.subr.bf16.mxu0 0
      %808 = vmatpush1.bf16.msra.mxu0 0
      %809 = vmatprep.subr.bf16.mxu0 0
      %810 = vmatpush1.bf16.msra.mxu0 0
      %811 = vmatprep.subr.bf16.mxu0 0
      %812 = vmatpush1.bf16.msra.mxu0 0
      %813 = vmatprep.subr.bf16.mxu0 0
      %814 = vmatpush1.bf16.msra.mxu0 0
      %815 = vmatprep.subr.bf16.mxu0 0
      %816 = vmatpush1.bf16.msra.mxu0 0
      %817 = vmatprep.subr.bf16.mxu0 0
      %818 = vmatpush1.bf16.msra.mxu0 0
      %819 = vmatprep.subr.bf16.mxu0 0
      %820 = vmatpush1.bf16.msra.mxu0 0
      %821 = vmatprep.subr.bf16.mxu0 0
      %822 = vmatpush1.bf16.msra.mxu0 0
      %823 = vmatprep.subr.bf16.mxu0 0
      %824 = vmatpush1.bf16.msra.mxu0 0
      %825 = vmatprep.subr.bf16.mxu0 0
      %826 = vmatpush1.bf16.msra.mxu0 0
      %827 = vmatprep.subr.bf16.mxu0 0
      %828 = vmatpush1.bf16.msra.mxu0 0
      %829 = vmatprep.mubr.bf16.mxu0 0
      %830 = vmatmul.mubr.bf16.gmra.mrb[0].mxu0 %v745
      %v831 = vpop.f32.mrb[0].mxu0
      %v832 = vadd.f32 0.0, %v831
      %v833 = vpop.f32.mrb[0].mxu0
      %v834 = vpop.f32.mrb[0].mxu0
      %v835 = vpop.f32.mrb[0].mxu0
      %836 = vdwg.mxu0
      %v837 = vadd.f32 %v712, %v791
      %v838 = vadd.f32 %v713, %v793
      %v839 = vadd.f32 %v714, %v832
      %s840 = scalar_lea.vmem %s1, 10
      %v841 = vld [vmem:[%s840] sm:$0x3]
      %v842 = vld [vmem:[%s232] sm:$0x3f]
      %v844 = vcombine.high %v842, %v842
      %v846 = vunpack.c.l.s4 1983009808
      %v847 = vunpack.c.0.s8 %v846
      %v848 = vlaneseq
      %v849 = vshrl.u32 %v848, 7
      %v850 = vsub.s32 %v847, %v849
      %v851 = vrot.slane %v842, %v850
      %v853 = vunpack.c.l.s4 1983009808
      %v854 = vunpack.c.0.s8 %v853
      %v855 = vlaneseq
      %v856 = vshrl.u32 %v855, 7
      %v857 = vsub.s32 %v854, %v856
      %v858 = vrot.slane %v844, %v857
      %v859 = vcombine.high %v851, %v851
      %860 = vrot.lane.b32.xlu0 %v851, 108
      %v861 = vpop.permute.xlu0 %860
      %862 = vrot.lane.b32.xlu0 %v859, 108
      %v863 = vpop.permute.xlu0 %862
      %864 = vrot.lane.b32.xlu0 %v858, 108
      %v865 = vpop.permute.xlu0 %864
      %vm866 = vcmask 883712
      %v867 = vsel %vm866, %v861, %v863
      %v868 = vsel %vm866, %v863, %v865
      %v870 = vsel %vm277, %v841, 0
      %v873 = vsel %vm281, %v867, 0
      %v876 = vsel %vm281, %v868, 0
      %v879 = vsel %vm281, %v865, 0
      %881 = vmatprep.subr.bf16.mxu0 %v876
      %882 = vmatpush1.bf16.msra.mxu0 %v873
      %883 = vmatprep.subr.bf16.mxu0 0
      %884 = vmatpush1.bf16.msra.mxu0 0
      %885 = vmatprep.subr.bf16.mxu0 0
      %886 = vmatpush1.bf16.msra.mxu0 0
      %887 = vmatprep.subr.bf16.mxu0 0
      %888 = vmatpush1.bf16.msra.mxu0 0
      %889 = vmatprep.subr.bf16.mxu0 0
      %890 = vmatpush1.bf16.msra.mxu0 0
      %891 = vmatprep.subr.bf16.mxu0 0
      %892 = vmatpush1.bf16.msra.mxu0 0
      %893 = vmatprep.subr.bf16.mxu0 0
      %894 = vmatpush1.bf16.msra.mxu0 0
      %895 = vmatprep.subr.bf16.mxu0 0
      %896 = vmatpush1.bf16.msra.mxu0 0
      %897 = vmatprep.subr.bf16.mxu0 0
      %898 = vmatpush1.bf16.msra.mxu0 0
      %899 = vmatprep.subr.bf16.mxu0 0
      %900 = vmatpush1.bf16.msra.mxu0 0
      %901 = vmatprep.subr.bf16.mxu0 0
      %902 = vmatpush1.bf16.msra.mxu0 0
      %903 = vmatprep.subr.bf16.mxu0 0
      %904 = vmatpush1.bf16.msra.mxu0 0
      %905 = vmatprep.subr.bf16.mxu0 0
      %906 = vmatpush1.bf16.msra.mxu0 0
      %907 = vmatprep.subr.bf16.mxu0 0
      %908 = vmatpush1.bf16.msra.mxu0 0
      %909 = vmatprep.subr.bf16.mxu0 0
      %910 = vmatpush1.bf16.msra.mxu0 0
      %911 = vmatprep.subr.bf16.mxu0 0
      %912 = vmatpush1.bf16.msra.mxu0 0
      %913 = vmatprep.mubr.bf16.mxu0 0
      %914 = vmatmul.mubr.bf16.gmra.mrb[0].mxu0 %v870
      %v915 = vpop.f32.mrb[0].mxu0
      %v916 = vadd.f32 0.0, %v915
      %v917 = vpop.f32.mrb[0].mxu0
      %v918 = vadd.f32 0.0, %v917
      %v919 = vpop.f32.mrb[0].mxu0
      %v920 = vpop.f32.mrb[0].mxu0
      %921 = vdwg.mxu0
      %922 = vmatprep.subr.bf16.mxu0 0
      %923 = vmatpush1.bf16.msra.mxu0 %v879
      %924 = vmatprep.subr.bf16.mxu0 0
      %925 = vmatpush1.bf16.msra.mxu0 0
      %926 = vmatprep.subr.bf16.mxu0 0
      %927 = vmatpush1.bf16.msra.mxu0 0
      %928 = vmatprep.subr.bf16.mxu0 0
      %929 = vmatpush1.bf16.msra.mxu0 0
      %930 = vmatprep.subr.bf16.mxu0 0
      %931 = vmatpush1.bf16.msra.mxu0 0
      %932 = vmatprep.subr.bf16.mxu0 0
      %933 = vmatpush1.bf16.msra.mxu0 0
      %934 = vmatprep.subr.bf16.mxu0 0
      %935 = vmatpush1.bf16.msra.mxu0 0
      %936 = vmatprep.subr.bf16.mxu0 0
      %937 = vmatpush1.bf16.msra.mxu0 0
      %938 = vmatprep.subr.bf16.mxu0 0
      %939 = vmatpush1.bf16.msra.mxu0 0
      %940 = vmatprep.subr.bf16.mxu0 0
      %941 = vmatpush1.bf16.msra.mxu0 0
      %942 = vmatprep.subr.bf16.mxu0 0
      %943 = vmatpush1.bf16.msra.mxu0 0
      %944 = vmatprep.subr.bf16.mxu0 0
      %945 = vmatpush1.bf16.msra.mxu0 0
      %946 = vmatprep.subr.bf16.mxu0 0
      %947 = vmatpush1.bf16.msra.mxu0 0
      %948 = vmatprep.subr.bf16.mxu0 0
      %949 = vmatpush1.bf16.msra.mxu0 0
      %950 = vmatprep.subr.bf16.mxu0 0
      %951 = vmatpush1.bf16.msra.mxu0 0
      %952 = vmatprep.subr.bf16.mxu0 0
      %953 = vmatpush1.bf16.msra.mxu0 0
      %954 = vmatprep.mubr.bf16.mxu0 0
      %955 = vmatmul.mubr.bf16.gmra.mrb[0].mxu0 %v870
      %v956 = vpop.f32.mrb[0].mxu0
      %v957 = vadd.f32 0.0, %v956
      %v958 = vpop.f32.mrb[0].mxu0
      %v959 = vpop.f32.mrb[0].mxu0
      %v960 = vpop.f32.mrb[0].mxu0
      %961 = vdwg.mxu0
      %v962 = vadd.f32 %v837, %v916
      %v963 = vadd.f32 %v838, %v918
      %v964 = vadd.f32 %v839, %v957
      %s965 = scalar_lea.vmem %s1, 12
      %v966 = vld [vmem:[%s965] sm:$0x3]
      %v967 = vld [vmem:[%s232] sm:$0x3f]
      %v969 = vcombine.high %v967, %v967
      %v971 = vunpack.c.l.s4 1983009808
      %v972 = vunpack.c.0.s8 %v971
      %v973 = vlaneseq
      %v974 = vshrl.u32 %v973, 7
      %v975 = vsub.s32 %v972, %v974
      %v976 = vrot.slane %v967, %v975
      %v978 = vunpack.c.l.s4 1983009808
      %v979 = vunpack.c.0.s8 %v978
      %v980 = vlaneseq
      %v981 = vshrl.u32 %v980, 7
      %v982 = vsub.s32 %v979, %v981
      %v983 = vrot.slane %v969, %v982
      %v984 = vcombine.high %v976, %v976
      %985 = vrot.lane.b32.xlu0 %v976, 92
      %v986 = vpop.permute.xlu0 %985
      %987 = vrot.lane.b32.xlu0 %v984, 92
      %v988 = vpop.permute.xlu0 %987
      %989 = vrot.lane.b32.xlu0 %v983, 92
      %v990 = vpop.permute.xlu0 %989
      %vm991 = vcmask 752640
      %v992 = vsel %vm991, %v986, %v988
      %v993 = vsel %vm991, %v988, %v990
      %v995 = vsel %vm277, %v966, 0
      %v998 = vsel %vm281, %v992, 0
      %v1001 = vsel %vm281, %v993, 0
      %v1004 = vsel %vm281, %v990, 0
      %1006 = vmatprep.subr.bf16.mxu0 %v1001
      %1007 = vmatpush1.bf16.msra.mxu0 %v998
      %1008 = vmatprep.subr.bf16.mxu0 0
      %1009 = vmatpush1.bf16.msra.mxu0 0
      %1010 = vmatprep.subr.bf16.mxu0 0
      %1011 = vmatpush1.bf16.msra.mxu0 0
      %1012 = vmatprep.subr.bf16.mxu0 0
      %1013 = vmatpush1.bf16.msra.mxu0 0
      %1014 = vmatprep.subr.bf16.mxu0 0
      %1015 = vmatpush1.bf16.msra.mxu0 0
      %1016 = vmatprep.subr.bf16.mxu0 0
      %1017 = vmatpush1.bf16.msra.mxu0 0
      %1018 = vmatprep.subr.bf16.mxu0 0
      %1019 = vmatpush1.bf16.msra.mxu0 0
      %1020 = vmatprep.subr.bf16.mxu0 0
      %1021 = vmatpush1.bf16.msra.mxu0 0
      %1022 = vmatprep.subr.bf16.mxu0 0
      %1023 = vmatpush1.bf16.msra.mxu0 0
      %1024 = vmatprep.subr.bf16.mxu0 0
      %1025 = vmatpush1.bf16.msra.mxu0 0
      %1026 = vmatprep.subr.bf16.mxu0 0
      %1027 = vmatpush1.bf16.msra.mxu0 0
      %1028 = vmatprep.subr.bf16.mxu0 0
      %1029 = vmatpush1.bf16.msra.mxu0 0
      %1030 = vmatprep.subr.bf16.mxu0 0
      %1031 = vmatpush1.bf16.msra.mxu0 0
      %1032 = vmatprep.subr.bf16.mxu0 0
      %1033 = vmatpush1.bf16.msra.mxu0 0
      %1034 = vmatprep.subr.bf16.mxu0 0
      %1035 = vmatpush1.bf16.msra.mxu0 0
      %1036 = vmatprep.subr.bf16.mxu0 0
      %1037 = vmatpush1.bf16.msra.mxu0 0
      %1038 = vmatprep.mubr.bf16.mxu0 0
      %1039 = vmatmul.mubr.bf16.gmra.mrb[0].mxu0 %v995
      %v1040 = vpop.f32.mrb[0].mxu0
      %v1041 = vadd.f32 0.0, %v1040
      %v1042 = vpop.f32.mrb[0].mxu0
      %v1043 = vadd.f32 0.0, %v1042
      %v1044 = vpop.f32.mrb[0].mxu0
      %v1045 = vpop.f32.mrb[0].mxu0
      %1046 = vdwg.mxu0
      %1047 = vmatprep.subr.bf16.mxu0 0
      %1048 = vmatpush1.bf16.msra.mxu0 %v1004
      %1049 = vmatprep.subr.bf16.mxu0 0
      %1050 = vmatpush1.bf16.msra.mxu0 0
      %1051 = vmatprep.subr.bf16.mxu0 0
      %1052 = vmatpush1.bf16.msra.mxu0 0
      %1053 = vmatprep.subr.bf16.mxu0 0
      %1054 = vmatpush1.bf16.msra.mxu0 0
      %1055 = vmatprep.subr.bf16.mxu0 0
      %1056 = vmatpush1.bf16.msra.mxu0 0
      %1057 = vmatprep.subr.bf16.mxu0 0
      %1058 = vmatpush1.bf16.msra.mxu0 0
      %1059 = vmatprep.subr.bf16.mxu0 0
      %1060 = vmatpush1.bf16.msra.mxu0 0
      %1061 = vmatprep.subr.bf16.mxu0 0
      %1062 = vmatpush1.bf16.msra.mxu0 0
      %1063 = vmatprep.subr.bf16.mxu0 0
      %1064 = vmatpush1.bf16.msra.mxu0 0
      %1065 = vmatprep.subr.bf16.mxu0 0
      %1066 = vmatpush1.bf16.msra.mxu0 0
      %1067 = vmatprep.subr.bf16.mxu0 0
      %1068 = vmatpush1.bf16.msra.mxu0 0
      %1069 = vmatprep.subr.bf16.mxu0 0
      %1070 = vmatpush1.bf16.msra.mxu0 0
      %1071 = vmatprep.subr.bf16.mxu0 0
      %1072 = vmatpush1.bf16.msra.mxu0 0
      %1073 = vmatprep.subr.bf16.mxu0 0
      %1074 = vmatpush1.bf16.msra.mxu0 0
      %1075 = vmatprep.subr.bf16.mxu0 0
      %1076 = vmatpush1.bf16.msra.mxu0 0
      %1077 = vmatprep.subr.bf16.mxu0 0
      %1078 = vmatpush1.bf16.msra.mxu0 0
      %1079 = vmatprep.mubr.bf16.mxu0 0
      %1080 = vmatmul.mubr.bf16.gmra.mrb[0].mxu0 %v995
      %v1081 = vpop.f32.mrb[0].mxu0
      %v1082 = vadd.f32 0.0, %v1081
      %v1083 = vpop.f32.mrb[0].mxu0
      %v1084 = vpop.f32.mrb[0].mxu0
      %v1085 = vpop.f32.mrb[0].mxu0
      %1086 = vdwg.mxu0
      %v1087 = vadd.f32 %v962, %v1041
      %v1088 = vadd.f32 %v963, %v1043
      %v1089 = vadd.f32 %v964, %v1082
      %s1090 = scalar_lea.vmem %s1, 14
      %v1091 = vld [vmem:[%s1090] sm:$0x3]
      %v1092 = vld [vmem:[%s232] sm:$0x3f]
      %v1094 = vcombine.high %v1092, %v1092
      %v1096 = vunpack.c.l.s4 1983009808
      %v1097 = vunpack.c.0.s8 %v1096
      %v1098 = vlaneseq
      %v1099 = vshrl.u32 %v1098, 7
      %v1100 = vsub.s32 %v1097, %v1099
      %v1101 = vrot.slane %v1092, %v1100
      %v1103 = vunpack.c.l.s4 1983009808
      %v1104 = vunpack.c.0.s8 %v1103
      %v1105 = vlaneseq
      %v1106 = vshrl.u32 %v1105, 7
      %v1107 = vsub.s32 %v1104, %v1106
      %v1108 = vrot.slane %v1094, %v1107
      %v1109 = vcombine.high %v1101, %v1101
      %1110 = vrot.lane.b32.xlu0 %v1101, 91
      %v1111 = vpop.permute.xlu0 %1110
      %1112 = vrot.lane.b32.xlu0 %v1109, 91
      %v1113 = vpop.permute.xlu0 %1112
      %1114 = vrot.lane.b32.xlu0 %v1108, 91
      %v1115 = vpop.permute.xlu0 %1114
      %vm1116 = vcmask 744448
      %v1117 = vsel %vm1116, %v1111, %v1113
      %v1118 = vsel %vm1116, %v1113, %v1115
      %v1120 = vsel %vm277, %v1091, 0
      %v1123 = vsel %vm281, %v1117, 0
      %v1126 = vsel %vm281, %v1118, 0
      %v1129 = vsel %vm281, %v1115, 0
      %1131 = vmatprep.subr.bf16.mxu0 %v1126
      %1132 = vmatpush1.bf16.msra.mxu0 %v1123
      %1133 = vmatprep.subr.bf16.mxu0 0
      %1134 = vmatpush1.bf16.msra.mxu0 0
      %1135 = vmatprep.subr.bf16.mxu0 0
      %1136 = vmatpush1.bf16.msra.mxu0 0
      %1137 = vmatprep.subr.bf16.mxu0 0
      %1138 = vmatpush1.bf16.msra.mxu0 0
      %1139 = vmatprep.subr.bf16.mxu0 0
      %1140 = vmatpush1.bf16.msra.mxu0 0
      %1141 = vmatprep.subr.bf16.mxu0 0
      %1142 = vmatpush1.bf16.msra.mxu0 0
      %1143 = vmatprep.subr.bf16.mxu0 0
      %1144 = vmatpush1.bf16.msra.mxu0 0
      %1145 = vmatprep.subr.bf16.mxu0 0
      %1146 = vmatpush1.bf16.msra.mxu0 0
      %1147 = vmatprep.subr.bf16.mxu0 0
      %1148 = vmatpush1.bf16.msra.mxu0 0
      %1149 = vmatprep.subr.bf16.mxu0 0
      %1150 = vmatpush1.bf16.msra.mxu0 0
      %1151 = vmatprep.subr.bf16.mxu0 0
      %1152 = vmatpush1.bf16.msra.mxu0 0
      %1153 = vmatprep.subr.bf16.mxu0 0
      %1154 = vmatpush1.bf16.msra.mxu0 0
      %1155 = vmatprep.subr.bf16.mxu0 0
      %1156 = vmatpush1.bf16.msra.mxu0 0
      %1157 = vmatprep.subr.bf16.mxu0 0
      %1158 = vmatpush1.bf16.msra.mxu0 0
      %1159 = vmatprep.subr.bf16.mxu0 0
      %1160 = vmatpush1.bf16.msra.mxu0 0
      %1161 = vmatprep.subr.bf16.mxu0 0
      %1162 = vmatpush1.bf16.msra.mxu0 0
      %1163 = vmatprep.mubr.bf16.mxu0 0
      %1164 = vmatmul.mubr.bf16.gmra.mrb[0].mxu0 %v1120
      %v1165 = vpop.f32.mrb[0].mxu0
      %v1166 = vadd.f32 0.0, %v1165
      %v1167 = vpop.f32.mrb[0].mxu0
      %v1168 = vadd.f32 0.0, %v1167
      %v1169 = vpop.f32.mrb[0].mxu0
      %v1170 = vpop.f32.mrb[0].mxu0
      %1171 = vdwg.mxu0
      %1172 = vmatprep.subr.bf16.mxu0 0
      %1173 = vmatpush1.bf16.msra.mxu0 %v1129
      %1174 = vmatprep.subr.bf16.mxu0 0
      %1175 = vmatpush1.bf16.msra.mxu0 0
      %1176 = vmatprep.subr.bf16.mxu0 0
      %1177 = vmatpush1.bf16.msra.mxu0 0
      %1178 = vmatprep.subr.bf16.mxu0 0
      %1179 = vmatpush1.bf16.msra.mxu0 0
      %1180 = vmatprep.subr.bf16.mxu0 0
      %1181 = vmatpush1.bf16.msra.mxu0 0
      %1182 = vmatprep.subr.bf16.mxu0 0
      %1183 = vmatpush1.bf16.msra.mxu0 0
      %1184 = vmatprep.subr.bf16.mxu0 0
      %1185 = vmatpush1.bf16.msra.mxu0 0
      %1186 = vmatprep.subr.bf16.mxu0 0
      %1187 = vmatpush1.bf16.msra.mxu0 0
      %1188 = vmatprep.subr.bf16.mxu0 0
      %1189 = vmatpush1.bf16.msra.mxu0 0
      %1190 = vmatprep.subr.bf16.mxu0 0
      %1191 = vmatpush1.bf16.msra.mxu0 0
      %1192 = vmatprep.subr.bf16.mxu0 0
      %1193 = vmatpush1.bf16.msra.mxu0 0
      %1194 = vmatprep.subr.bf16.mxu0 0
      %1195 = vmatpush1.bf16.msra.mxu0 0
      %1196 = vmatprep.subr.bf16.mxu0 0
      %1197 = vmatpush1.bf16.msra.mxu0 0
      %1198 = vmatprep.subr.bf16.mxu0 0
      %1199 = vmatpush1.bf16.msra.mxu0 0
      %1200 = vmatprep.subr.bf16.mxu0 0
      %1201 = vmatpush1.bf16.msra.mxu0 0
      %1202 = vmatprep.subr.bf16.mxu0 0
      %1203 = vmatpush1.bf16.msra.mxu0 0
      %1204 = vmatprep.mubr.bf16.mxu0 0
      %1205 = vmatmul.mubr.bf16.gmra.mrb[0].mxu0 %v1120
      %v1206 = vpop.f32.mrb[0].mxu0
      %v1207 = vadd.f32 0.0, %v1206
      %v1208 = vpop.f32.mrb[0].mxu0
      %v1209 = vpop.f32.mrb[0].mxu0
      %v1210 = vpop.f32.mrb[0].mxu0
      %1211 = vdwg.mxu0
      %v1212 = vadd.f32 %v1087, %v1166
      %v1213 = vadd.f32 %v1088, %v1168
      %v1214 = vadd.f32 %v1089, %v1207
      %s1215 = scalar_lea.vmem %s1, 16
      %v1216 = vld [vmem:[%s1215] sm:$0x3]
      %v1217 = vld [vmem:[%s232] sm:$0x3f]
      %v1219 = vcombine.high %v1217, %v1217
      %v1221 = vunpack.c.l.s4 1983009808
      %v1222 = vunpack.c.0.s8 %v1221
      %v1223 = vlaneseq
      %v1224 = vshrl.u32 %v1223, 7
      %v1225 = vsub.s32 %v1222, %v1224
      %v1226 = vrot.slane %v1217, %v1225
      %v1228 = vunpack.c.l.s4 1983009808
      %v1229 = vunpack.c.0.s8 %v1228
      %v1230 = vlaneseq
      %v1231 = vshrl.u32 %v1230, 7
      %v1232 = vsub.s32 %v1229, %v1231
      %v1233 = vrot.slane %v1219, %v1232
      %v1234 = vcombine.high %v1226, %v1226
      %1235 = vrot.lane.b32.xlu0 %v1226, 90
      %v1236 = vpop.permute.xlu0 %1235
      %1237 = vrot.lane.b32.xlu0 %v1234, 90
      %v1238 = vpop.permute.xlu0 %1237
      %1239 = vrot.lane.b32.xlu0 %v1233, 90
      %v1240 = vpop.permute.xlu0 %1239
      %vm1241 = vcmask 736256
      %v1242 = vsel %vm1241, %v1236, %v1238
      %v1243 = vsel %vm1241, %v1238, %v1240
      %v1245 = vsel %vm277, %v1216, 0
      %v1248 = vsel %vm281, %v1242, 0
      %v1251 = vsel %vm281, %v1243, 0
      %v1254 = vsel %vm281, %v1240, 0
      %1256 = vmatprep.subr.bf16.mxu0 %v1251
      %1257 = vmatpush1.bf16.msra.mxu0 %v1248
      %1258 = vmatprep.subr.bf16.mxu0 0
      %1259 = vmatpush1.bf16.msra.mxu0 0
      %1260 = vmatprep.subr.bf16.mxu0 0
      %1261 = vmatpush1.bf16.msra.mxu0 0
      %1262 = vmatprep.subr.bf16.mxu0 0
      %1263 = vmatpush1.bf16.msra.mxu0 0
      %1264 = vmatprep.subr.bf16.mxu0 0
      %1265 = vmatpush1.bf16.msra.mxu0 0
      %1266 = vmatprep.subr.bf16.mxu0 0
      %1267 = vmatpush1.bf16.msra.mxu0 0
      %1268 = vmatprep.subr.bf16.mxu0 0
      %1269 = vmatpush1.bf16.msra.mxu0 0
      %1270 = vmatprep.subr.bf16.mxu0 0
      %1271 = vmatpush1.bf16.msra.mxu0 0
      %1272 = vmatprep.subr.bf16.mxu0 0
      %1273 = vmatpush1.bf16.msra.mxu0 0
      %1274 = vmatprep.subr.bf16.mxu0 0
      %1275 = vmatpush1.bf16.msra.mxu0 0
      %1276 = vmatprep.subr.bf16.mxu0 0
      %1277 = vmatpush1.bf16.msra.mxu0 0
      %1278 = vmatprep.subr.bf16.mxu0 0
      %1279 = vmatpush1.bf16.msra.mxu0 0
      %1280 = vmatprep.subr.bf16.mxu0 0
      %1281 = vmatpush1.bf16.msra.mxu0 0
      %1282 = vmatprep.subr.bf16.mxu0 0
      %1283 = vmatpush1.bf16.msra.mxu0 0
      %1284 = vmatprep.subr.bf16.mxu0 0
      %1285 = vmatpush1.bf16.msra.mxu0 0
      %1286 = vmatprep.subr.bf16.mxu0 0
      %1287 = vmatpush1.bf16.msra.mxu0 0
      %1288 = vmatprep.mubr.bf16.mxu0 0
      %1289 = vmatmul.mubr.bf16.gmra.mrb[0].mxu0 %v1245
      %v1290 = vpop.f32.mrb[0].mxu0
      %v1291 = vadd.f32 0.0, %v1290
      %v1292 = vpop.f32.mrb[0].mxu0
      %v1293 = vadd.f32 0.0, %v1292
      %v1294 = vpop.f32.mrb[0].mxu0
      %v1295 = vpop.f32.mrb[0].mxu0
      %1296 = vdwg.mxu0
      %1297 = vmatprep.subr.bf16.mxu0 0
      %1298 = vmatpush1.bf16.msra.mxu0 %v1254
      %1299 = vmatprep.subr.bf16.mxu0 0
      %1300 = vmatpush1.bf16.msra.mxu0 0
      %1301 = vmatprep.subr.bf16.mxu0 0
      %1302 = vmatpush1.bf16.msra.mxu0 0
      %1303 = vmatprep.subr.bf16.mxu0 0
      %1304 = vmatpush1.bf16.msra.mxu0 0
      %1305 = vmatprep.subr.bf16.mxu0 0
      %1306 = vmatpush1.bf16.msra.mxu0 0
      %1307 = vmatprep.subr.bf16.mxu0 0
      %1308 = vmatpush1.bf16.msra.mxu0 0
      %1309 = vmatprep.subr.bf16.mxu0 0
      %1310 = vmatpush1.bf16.msra.mxu0 0
      %1311 = vmatprep.subr.bf16.mxu0 0
      %1312 = vmatpush1.bf16.msra.mxu0 0
      %1313 = vmatprep.subr.bf16.mxu0 0
      %1314 = vmatpush1.bf16.msra.mxu0 0
      %1315 = vmatprep.subr.bf16.mxu0 0
      %1316 = vmatpush1.bf16.msra.mxu0 0
      %1317 = vmatprep.subr.bf16.mxu0 0
      %1318 = vmatpush1.bf16.msra.mxu0 0
      %1319 = vmatprep.subr.bf16.mxu0 0
      %1320 = vmatpush1.bf16.msra.mxu0 0
      %1321 = vmatprep.subr.bf16.mxu0 0
      %1322 = vmatpush1.bf16.msra.mxu0 0
      %1323 = vmatprep.subr.bf16.mxu0 0
      %1324 = vmatpush1.bf16.msra.mxu0 0
      %1325 = vmatprep.subr.bf16.mxu0 0
      %1326 = vmatpush1.bf16.msra.mxu0 0
      %1327 = vmatprep.subr.bf16.mxu0 0
      %1328 = vmatpush1.bf16.msra.mxu0 0
      %1329 = vmatprep.mubr.bf16.mxu0 0
      %1330 = vmatmul.mubr.bf16.gmra.mrb[0].mxu0 %v1245
      %v1331 = vpop.f32.mrb[0].mxu0
      %v1332 = vadd.f32 0.0, %v1331
      %v1333 = vpop.f32.mrb[0].mxu0
      %v1334 = vpop.f32.mrb[0].mxu0
      %v1335 = vpop.f32.mrb[0].mxu0
      %1336 = vdwg.mxu0
      %v1337 = vadd.f32 %v1212, %v1291
      %v1338 = vadd.f32 %v1213, %v1293
      %v1339 = vadd.f32 %v1214, %v1332
      %v1342 = vcombine.low %v1337, %v1338
      %1344 = vst [vmem:[%s237] sm:$0xff] %v1342
      %vm1345 = vcmask 551936
      %1346 = vst.msk [vmem:[%s237 + $0x8] sm:$0xf] %vm1345, %v1339
      %v1347 = vld [vmem:[%s2] sm:$0x7]
      %v1349 = vlaneseq
      %v1350 = vshrl.u32 %v1349, 7
      %v1351 = vsub.s32 0, %v1350
      %v1352 = vrot.slane %v1347, %v1351
      %v1353 = vlaneseq
      %v1354 = vshrl.u32 %v1353, 7
      %v1355 = vsub.s32 1, %v1354
      %v1356 = vrot.slane %v1347, %v1355
      %v1357 = vlaneseq
      %v1358 = vshrl.u32 %v1357, 7
      %v1359 = vsub.s32 2, %v1358
      %v1360 = vrot.slane %v1347, %v1359
      %v1364 = vmul.f32 %v1337, %v1352
      %v1365 = vmul.f32 %v1338, %v1356
      %v1366 = vmul.f32 %v1339, %v1360
      %vm1367 = vcmask 1043456
      %v1368 = vsel %vm1367, %v1364, 0.0
      %v1369 = vsel %vm1367, %v1365, 0.0
      %v1370 = vadd.f32 %v1368, %v1369
      %v1371 = vsel %vm1345, %v1366, 0.0
      %v1372 = vadd.f32 %v1370, %v1371
      %1373 = vadd.xlane.f32.xlu0 %v1372
      %v1374 = vpop.xlane.xlu0 %1373
      %vm1375 = vcmask 3072
      %1376 = vst.msk [vmem:[%s241] sm:$0xf] %vm1375, %v1374
      %v1377 = vmul.f32 %v1364, %v1337
      %v1378 = vmul.f32 %v1365, %v1338
      %v1379 = vmul.f32 %v1366, %v1339
      %v1380 = vsel %vm1367, %v1377, 0.0
      %v1381 = vsel %vm1367, %v1378, 0.0
      %v1382 = vadd.f32 %v1380, %v1381
      %v1383 = vsel %vm1345, %v1379, 0.0
      %v1384 = vadd.f32 %v1382, %v1383
      %1385 = vadd.xlane.f32.xlu0 %v1384
      %v1386 = vpop.xlane.xlu0 %1385
      %1387 = vst.msk [vmem:[%s245] sm:$0xf] %vm1375, %v1386
      %p1388 = scmp.lt.s32.totalorder %s17, 1
      %s1389 = scalar_select %p1388, %s17, 1
      %s1390 = smul.addr %s1389, 3
      %s1391 = smul.addr %s1390, 4
      %s1392 = scalar_lea.vmem %s3, %s1391
      %p1393 = scmp.lt.s32.totalorder %s17, 1
      %s1394 = scalar_select %p1393, %s17, 1
      %s1395 = smul.addr %s1394, 4
      %s1396 = scalar_lea.vmem %s4, %s1395
      %p1397 = scmp.lt.s32.totalorder %s17, 1
      %s1398 = scalar_select %p1397, %s17, 1
      %s1399 = smul.addr %s1398, 4
      %s1400 = scalar_lea.vmem %s5, %s1399
      // Predicated region
      $region33: #{classify_layer.2} parent=31 // pred_check
        %p1401 = pneg %p103
      $region34: #{classify_layer.2} parent=31 // pred_check_branch
        %1403 = sbr.rel (%p1401) target = $region36
      $region35: #{classify_layer.2} parent=31 // pred_region
        _
      $region36: #{classify_layer.2} parent=31 // pred_fallthru
        _
      // Predicated region
      $region37: #{classify_layer.2} parent=31 // pred_check
        %p1404 = pneg %p129
      $region38: #{classify_layer.2} parent=31 // pred_check_branch
        %1406 = sbr.rel (%p1404) target = $region40
      $region39: #{classify_layer.2} parent=31 // pred_region
        _
      $region40: #{classify_layer.2} parent=31 // pred_fallthru
        _
      // Predicated region
      $region41: #{classify_layer.2} parent=31 // pred_check
        %p1407 = pneg %p155
      $region42: #{classify_layer.2} parent=31 // pred_check_branch
        %1409 = sbr.rel (%p1407) target = $region44
      $region43: #{classify_layer.2} parent=31 // pred_region
        _
      $region44: #{classify_layer.2} parent=31 // pred_fallthru
        _
    $region32: #{classify_layer.2} parent=5 // pred_fallthru
      _
    %p1410 = scmp.le.s32.totalorder 2, %s12
    // Predicated region
    $region45: #{classify_layer.2} parent=5 // pred_check
      %p1411 = pneg %p1410
    $region46: #{classify_layer.2} parent=5 // pred_check_branch
      %1413 = sbr.rel (%p1411) target = $region48
    $region47: #{classify_layer.2} parent=5 // pred_region
      %s1414 = ssub.s32 %s12, 2
      // Predicated region
      $region49: #{classify_layer.2} parent=47 // pred_check
        %p1415 = pneg %p109
      $region50: #{classify_layer.2} parent=47 // pred_check_branch
        %1417 = sbr.rel (%p1415) target = $region52
      $region51: #{classify_layer.2} parent=47 // pred_region
        %p1418 = scmp.lt.s32.totalorder %s18, 1
        %s1419 = scalar_select %p1418, %s18, 1
        %s1420 = smul.addr %s1419, 3
        %s1421 = smul.addr %s1420, 4
        %s1422 = scalar_lea.vmem %s3, %s1421
      $region52: #{classify_layer.2} parent=47 // pred_fallthru
        _
      // Predicated region
      $region53: #{classify_layer.2} parent=47 // pred_check
        %p1423 = pneg %p135
      $region54: #{classify_layer.2} parent=47 // pred_check_branch
        %1425 = sbr.rel (%p1423) target = $region56
      $region55: #{classify_layer.2} parent=47 // pred_region
        %p1426 = scmp.lt.s32.totalorder %s18, 1
        %s1427 = scalar_select %p1426, %s18, 1
        %s1428 = smul.addr %s1427, 4
        %s1429 = scalar_lea.vmem %s4, %s1428
      $region56: #{classify_layer.2} parent=47 // pred_fallthru
        _
      // Predicated region
      $region57: #{classify_layer.2} parent=47 // pred_check
        %p1430 = pneg %p161
      $region58: #{classify_layer.2} parent=47 // pred_check_branch
        %1432 = sbr.rel (%p1430) target = $region60
      $region59: #{classify_layer.2} parent=47 // pred_region
        %p1433 = scmp.lt.s32.totalorder %s18, 1
        %s1434 = scalar_select %p1433, %s18, 1
        %s1435 = smul.addr %s1434, 4
        %s1436 = scalar_lea.vmem %s5, %s1435
      $region60: #{classify_layer.2} parent=47 // pred_fallthru
        _
    $region48: #{classify_layer.2} parent=5 // pred_fallthru
      _
  $region6: #{classify_layer.2} parent=0 // loop_footer
    %s16 = sadd.s32 1, %s12
  $region7: #{classify_layer.2} parent=0 // loop_footer_branch
    %11 = sbr.rel target = $region3
  $region8: #{classify_layer.2} parent=0 // loop_exit
    _

</llo_original>
